<compile_context>
chip_gen: v6e
topology: v6e:2x2x1
jax: 0.10.0
libtpu: 0.0.40
codegen_flags: <defaults>
</compile_context>

<pallas_src>
import jax
import jax.numpy as jnp
from jax.experimental import pallas as pl
from jax.experimental.pallas import tpu as pltpu

NPAD = 128      # lane-padded output-feature width for every matmul
K1P = 80        # conv1 im2col K (5*5*3 = 75) padded to a multiple of 16 (bf16 sublane)
K2P = 160       # conv2 im2col K (5*5*6 = 150) padded to a multiple of 16
BN_EPS = 1e-5


# ----------------------------------------------------------------------------
# Pallas kernels
# ----------------------------------------------------------------------------
def _conv_bn_relu_pool_kernel(x00_ref, x01_ref, x10_ref, x11_ref, w_ref, b_ref, o_ref):
    """Fused conv (im2col matmul) + folded-BN bias + ReLU + 2x2 stride-2 max-pool.

    Each x??_ref holds the im2col rows of one pooling phase, already ordered as
    ph*PW + pw, so the pool is a 4-way elementwise max and the store is the pooled,
    lane-dense (NPAD=128) tile."""
    w = w_ref[...]            # (KP, NPAD) bf16, resident across the 4 matmuls
    b = b_ref[...]            # (1, NPAD)  f32  (BN already folded in)

    def branch(x_ref):
        y = jnp.dot(x_ref[...], w, preferred_element_type=jnp.float32)
        return jnp.maximum(y + b, 0.0)

    p = jnp.maximum(jnp.maximum(branch(x00_ref), branch(x01_ref)),
                    jnp.maximum(branch(x10_ref), branch(x11_ref)))
    o_ref[...] = p.astype(o_ref.dtype)


def _fc_head_kernel(x_ref, w1_ref, b1_ref, w2_ref, b2_ref, w3_ref, b3_ref, o_ref):
    """fc1+relu -> fc2+relu -> fc3 -> sigmoid, fused in one kernel (weights stay in VMEM)."""
    h = jnp.dot(x_ref[...], w1_ref[...], preferred_element_type=jnp.float32)
    h = jnp.maximum(h + b1_ref[...], 0.0)
    h = jnp.dot(h.astype(w2_ref.dtype), w2_ref[...], preferred_element_type=jnp.float32)
    h = jnp.maximum(h + b2_ref[...], 0.0)
    h = jnp.dot(h.astype(w3_ref.dtype), w3_ref[...], preferred_element_type=jnp.float32)
    h = h + b3_ref[...]
    # exact sigmoid: exp runs on the EUP; single divide keeps [0,1] bounds exact in f32
    o_ref[...] = (1.0 / (1.0 + jnp.exp(-h))).astype(o_ref.dtype)


# ----------------------------------------------------------------------------
# Kernel wrappers
# ----------------------------------------------------------------------------
def conv_bn_relu_pool(groups, w, b, pooled_hw):
    """groups: 4 arrays (B, PH*PW, KP) bf16 — one per 2x2 pool phase.
    Returns (B, PH*PW, NPAD) bf16 pooled activations."""
    ph, pw = pooled_hw
    B, PHW, KP = groups[0].shape
    assert PHW == ph * pw
    flops = 2 * B * 4 * PHW * KP * NPAD
    bytes_accessed = (4 * B * PHW * KP * 2 + KP * NPAD * 2 + NPAD * 4
                      + B * PHW * NPAD * 2)
    grp_spec = pl.BlockSpec((None, PHW, KP), lambda i: (i, 0, 0))
    return pl.pallas_call(
        _conv_bn_relu_pool_kernel,
        out_shape=jax.ShapeDtypeStruct((B, PHW, NPAD), jnp.bfloat16),
        grid=(B,),
        in_specs=[grp_spec, grp_spec, grp_spec, grp_spec,
                  pl.BlockSpec((KP, NPAD), lambda i: (0, 0)),
                  pl.BlockSpec((1, NPAD), lambda i: (0, 0))],
        out_specs=pl.BlockSpec((None, PHW, NPAD), lambda i: (i, 0, 0)),
        compiler_params=pltpu.CompilerParams(dimension_semantics=("parallel",)),
        cost_estimate=pl.CostEstimate(flops=flops, transcendentals=0,
                                      bytes_accessed=bytes_accessed),
    )(*groups, w, b)


def fc_head(x, w1, b1, w2, b2, w3, b3):
    """x: (B, 25*NPAD) bf16. Returns (B, NPAD) f32 (column 0 is the real logit->sigmoid)."""
    B = x.shape[0]
    vmem = pl.BlockSpec(memory_space=pltpu.MemorySpace.VMEM)
    return pl.pallas_call(
        _fc_head_kernel,
        out_shape=jax.ShapeDtypeStruct((B, NPAD), jnp.float32),
        in_specs=[vmem] * 7,
        out_specs=vmem,
    )(x, w1, b1, w2, b2, w3, b3)


# ----------------------------------------------------------------------------
# Glue: im2col (split into pooling phases), parameter prep, forward
# ----------------------------------------------------------------------------
def im2col_pool_groups(x, k, k_pad):
    """x: (B,H,W,C) NHWC (valid conv, stride 1, H-k+1 / W-k+1 even).
    Returns 4 arrays (B, (OH//2)*(OW//2), k_pad) — im2col rows of the 2x2 pool phases
    (0,0),(0,1),(1,0),(1,1) — plus (OH//2, OW//2). Patch ordering is (ky, kx, cin)."""
    B, H, W, C = x.shape
    OH, OW = H - k + 1, W - k + 1
    cols = [x[:, dy:dy + OH, dx:dx + OW, :] for dy in range(k) for dx in range(k)]
    p = jnp.concatenate(cols, axis=-1)                       # (B, OH, OW, k*k*C)
    K = k * k * C
    if k_pad > K:
        p = jnp.pad(p, ((0, 0), (0, 0), (0, 0), (0, k_pad - K)))
    groups = []
    for po in (0, 1):
        for pc in (0, 1):
            groups.append(p[:, po::2, pc::2, :].reshape(B, (OH // 2) * (OW // 2), k_pad))
    return groups, (OH // 2, OW // 2)


def init_params(key):
    ks = jax.random.split(key, 10)

    def u(k, shape, fan_in):
        bound = 1.0 / jnp.sqrt(float(fan_in))
        return jax.random.uniform(k, shape, jnp.float32, -bound, bound)

    p = {}
    # Conv weights stored in PyTorch layout (Cout, Cin, KH, KW)
    p["conv1_w"] = u(ks[0], (6, 3, 5, 5), 3 * 25)
    p["conv1_b"] = u(ks[1], (6,), 3 * 25)
    p["conv2_w"] = u(ks[2], (16, 6, 5, 5), 6 * 25)
    p["conv2_b"] = u(ks[3], (16,), 6 * 25)
    # Linear weights stored in PyTorch layout (out, in)
    p["fc1_w"] = u(ks[4], (120, 400), 400)
    p["fc1_b"] = u(ks[5], (120,), 400)
    p["fc2_w"] = u(ks[6], (84, 120), 120)
    p["fc2_b"] = u(ks[7], (84,), 120)
    p["fc3_w"] = u(ks[8], (1, 84), 84)
    p["fc3_b"] = u(ks[9], (1,), 84)
    # BatchNorm (fresh-module defaults, eval mode)
    for name, c in (("bn1", 6), ("bn2", 16)):
        p[f"{name}_gamma"] = jnp.ones((c,), jnp.float32)
        p[f"{name}_beta"] = jnp.zeros((c,), jnp.float32)
        p[f"{name}_mean"] = jnp.zeros((c,), jnp.float32)
        p[f"{name}_var"] = jnp.ones((c,), jnp.float32)
    return p


def prepare_params(params):
    """One-time prep: fold BN into conv weights/bias, transpose/reshape/pad everything
    to the kernel layouts (lane-dense N=128, sublane-aligned K), cast MXU operands to bf16."""
    def bn_fold(name):
        scale = params[f"{name}_gamma"] * jax.lax.rsqrt(params[f"{name}_var"] + BN_EPS)
        shift = params[f"{name}_beta"] - params[f"{name}_mean"] * scale
        return scale, shift

    def pad_bias(b):
        return jnp.pad(b.astype(jnp.float32), (0, NPAD - b.shape[0])).reshape(1, NPAD)

    prep = {}
    # conv1 (+ bn1 folded)
    s, t = bn_fold("bn1")
    w = jnp.transpose(params["conv1_w"], (2, 3, 1, 0)).reshape(75, 6) * s[None, :]
    b = params["conv1_b"] * s + t
    prep["w1"] = jnp.pad(w, ((0, K1P - 75), (0, NPAD - 6))).astype(jnp.bfloat16)
    prep["b1"] = pad_bias(b)
    # conv2 (+ bn2 folded)
    s, t = bn_fold("bn2")
    w = jnp.transpose(params["conv2_w"], (2, 3, 1, 0)).reshape(150, 16) * s[None, :]
    b = params["conv2_b"] * s + t
    prep["w2"] = jnp.pad(w, ((0, K2P - 150), (0, NPAD - 16))).astype(jnp.bfloat16)
    prep["b2"] = pad_bias(b)
    # fc1: PyTorch input ordering is c*25 + s (NCHW flatten); our activation is s*128 + c
    w = params["fc1_w"].T.reshape(16, 25, 120)                 # (c, s, out)
    w = jnp.transpose(w, (1, 0, 2))                            # (s, c, out)
    w = jnp.pad(w, ((0, 0), (0, NPAD - 16), (0, NPAD - 120))).reshape(25 * NPAD, NPAD)
    prep["fw1"] = w.astype(jnp.bfloat16)
    prep["fb1"] = pad_bias(params["fc1_b"])
    # fc2
    prep["fw2"] = jnp.pad(params["fc2_w"].T, ((0, NPAD - 120), (0, NPAD - 84))).astype(jnp.bfloat16)
    prep["fb2"] = pad_bias(params["fc2_b"])
    # fc3
    prep["fw3"] = jnp.pad(params["fc3_w"].T, ((0, NPAD - 84), (0, NPAD - 1))).astype(jnp.bfloat16)
    prep["fb3"] = pad_bias(params["fc3_b"])
    return prep


@jax.jit
def net_forward(x_nchw, prep):
    B = x_nchw.shape[0]
    x = jnp.transpose(x_nchw, (0, 2, 3, 1)).astype(jnp.bfloat16)       # NCHW -> NHWC

    # conv1 + bn1 + relu + pool : (B,3,32,32) -> (B,14,14,6[pad 128])
    groups, (ph, pw) = im2col_pool_groups(x, 5, K1P)
    y = conv_bn_relu_pool(groups, prep["w1"], prep["b1"], (ph, pw))     # (B, 196, 128)
    y = y.reshape(B, ph, pw, NPAD)[..., :6]

    # conv2 + bn2 + relu + pool : -> (B,5,5,16[pad 128])
    groups, (ph, pw) = im2col_pool_groups(y, 5, K2P)
    y = conv_bn_relu_pool(groups, prep["w2"], prep["b2"], (ph, pw))     # (B, 25, 128)

    # fused fc1/fc2/fc3 + sigmoid head (drop1 is identity in eval mode)
    y = y.reshape(B, ph * pw * NPAD)                                    # (B, 3200)
    out = fc_head(y, prep["fw1"], prep["fb1"], prep["fw2"], prep["fb2"],
                  prep["fw3"], prep["fb3"])
    return out[:, :1]                                                   # (B, 1) f32


if __name__ == "__main__":
    key = jax.random.PRNGKey(0)
    k_params, k_x = jax.random.split(key)
    params = init_params(k_params)
    prep = prepare_params(params)   # one-time parameter prep (hoisted out of the forward)

    # Module implies 3x32x32 inputs (so the flatten is 5*5*16); batch=2.
    x = jax.random.normal(k_x, (2, 3, 32, 32), jnp.float32)

    out = net_forward(x, prep)
    out = jax.block_until_ready(out)
    assert out.shape == (2, 1)
    assert bool(jnp.all(jnp.isfinite(out)))
    assert bool(jnp.all((out >= 0.0) & (out <= 1.0)))
    print("KERNEL_OK")
</pallas_src>

<mosaic_0001>
module attributes {stable_mosaic.version = 11 : i64} {
  func.func @_conv_bn_relu_pool_kernel(%arg0: i32, %arg1: memref<1x196x80xbf16, #tpu.memory_space<vmem>>, %arg2: memref<1x196x80xbf16, #tpu.memory_space<vmem>>, %arg3: memref<1x196x80xbf16, #tpu.memory_space<vmem>>, %arg4: memref<1x196x80xbf16, #tpu.memory_space<vmem>>, %arg5: memref<80x128xbf16, #tpu.memory_space<vmem>>, %arg6: memref<1x128xf32, #tpu.memory_space<vmem>>, %arg7: memref<1x196x128xbf16, #tpu.memory_space<vmem>>) attributes {dimension_semantics = [#tpu.dimension_semantics<parallel>], iteration_bounds = array<i64: 2>, scalar_prefetch = 0 : i64, scratch_operands = 0 : i64, tpu.core_type = #tpu.core_type<tc>, window_params = [{transform_indices = @transform_0, window_bounds = array<i64: 1, 196, 80>}, {transform_indices = @transform_1, window_bounds = array<i64: 1, 196, 80>}, {transform_indices = @transform_2, window_bounds = array<i64: 1, 196, 80>}, {transform_indices = @transform_3, window_bounds = array<i64: 1, 196, 80>}, {pipeline_mode = #tpu.pipeline_mode<synchronous>, transform_indices = @transform_4, window_bounds = array<i64: 80, 128>}, {pipeline_mode = #tpu.pipeline_mode<synchronous>, transform_indices = @transform_5, window_bounds = array<i64: 1, 128>}, {transform_indices = @transform_6, window_bounds = array<i64: 1, 196, 128>}]} {
    %c0 = arith.constant 0 : index
    %c0_0 = arith.constant 0 : index
    %0 = vector.load %arg5[%c0, %c0_0] : memref<80x128xbf16, #tpu.memory_space<vmem>>, vector<80x128xbf16>
    %c0_1 = arith.constant 0 : index
    %c0_2 = arith.constant 0 : index
    %1 = vector.load %arg6[%c0_1, %c0_2] : memref<1x128xf32, #tpu.memory_space<vmem>>, vector<1x128xf32>
    %c0_3 = arith.constant 0 : index
    %c0_4 = arith.constant 0 : index
    %c0_5 = arith.constant 0 : index
    %2 = vector.load %arg1[%c0_3, %c0_4, %c0_5] : memref<1x196x80xbf16, #tpu.memory_space<vmem>>, vector<1x196x80xbf16>
    %3 = vector.shape_cast %2 : vector<1x196x80xbf16> to vector<196x80xbf16>
    %cst = arith.constant dense<0.000000e+00> : vector<196x128xf32>
    %4 = tpu.matmul %3, %0, %cst {dimension_numbers = #tpu.dot_dimension_numbers<[1], [0], [0], [1], [0, 0, 1, 1], [], []>} : vector<196x80xbf16>, vector<80x128xbf16>, vector<196x128xf32> -> vector<196x128xf32>
    %5 = vector.broadcast %1 : vector<1x128xf32> to vector<196x128xf32>
    %6 = arith.addf %4, %5 : vector<196x128xf32>
    %cst_6 = arith.constant 0.000000e+00 : f32
    %7 = vector.broadcast %cst_6 : f32 to vector<196x128xf32>
    %8 = arith.maximumf %6, %7 : vector<196x128xf32>
    %c0_7 = arith.constant 0 : index
    %c0_8 = arith.constant 0 : index
    %c0_9 = arith.constant 0 : index
    %9 = vector.load %arg2[%c0_7, %c0_8, %c0_9] : memref<1x196x80xbf16, #tpu.memory_space<vmem>>, vector<1x196x80xbf16>
    %10 = vector.shape_cast %9 : vector<1x196x80xbf16> to vector<196x80xbf16>
    %cst_10 = arith.constant dense<0.000000e+00> : vector<196x128xf32>
    %11 = tpu.matmul %10, %0, %cst_10 {dimension_numbers = #tpu.dot_dimension_numbers<[1], [0], [0], [1], [0, 0, 1, 1], [], []>} : vector<196x80xbf16>, vector<80x128xbf16>, vector<196x128xf32> -> vector<196x128xf32>
    %12 = vector.broadcast %1 : vector<1x128xf32> to vector<196x128xf32>
    %13 = arith.addf %11, %12 : vector<196x128xf32>
    %cst_11 = arith.constant 0.000000e+00 : f32
    %14 = vector.broadcast %cst_11 : f32 to vector<196x128xf32>
    %15 = arith.maximumf %13, %14 : vector<196x128xf32>
    %16 = arith.maximumf %8, %15 : vector<196x128xf32>
    %c0_12 = arith.constant 0 : index
    %c0_13 = arith.constant 0 : index
    %c0_14 = arith.constant 0 : index
    %17 = vector.load %arg3[%c0_12, %c0_13, %c0_14] : memref<1x196x80xbf16, #tpu.memory_space<vmem>>, vector<1x196x80xbf16>
    %18 = vector.shape_cast %17 : vector<1x196x80xbf16> to vector<196x80xbf16>
    %cst_15 = arith.constant dense<0.000000e+00> : vector<196x128xf32>
    %19 = tpu.matmul %18, %0, %cst_15 {dimension_numbers = #tpu.dot_dimension_numbers<[1], [0], [0], [1], [0, 0, 1, 1], [], []>} : vector<196x80xbf16>, vector<80x128xbf16>, vector<196x128xf32> -> vector<196x128xf32>
    %20 = vector.broadcast %1 : vector<1x128xf32> to vector<196x128xf32>
    %21 = arith.addf %19, %20 : vector<196x128xf32>
    %cst_16 = arith.constant 0.000000e+00 : f32
    %22 = vector.broadcast %cst_16 : f32 to vector<196x128xf32>
    %23 = arith.maximumf %21, %22 : vector<196x128xf32>
    %c0_17 = arith.constant 0 : index
    %c0_18 = arith.constant 0 : index
    %c0_19 = arith.constant 0 : index
    %24 = vector.load %arg4[%c0_17, %c0_18, %c0_19] : memref<1x196x80xbf16, #tpu.memory_space<vmem>>, vector<1x196x80xbf16>
    %25 = vector.shape_cast %24 : vector<1x196x80xbf16> to vector<196x80xbf16>
    %cst_20 = arith.constant dense<0.000000e+00> : vector<196x128xf32>
    %26 = tpu.matmul %25, %0, %cst_20 {dimension_numbers = #tpu.dot_dimension_numbers<[1], [0], [0], [1], [0, 0, 1, 1], [], []>} : vector<196x80xbf16>, vector<80x128xbf16>, vector<196x128xf32> -> vector<196x128xf32>
    %27 = vector.broadcast %1 : vector<1x128xf32> to vector<196x128xf32>
    %28 = arith.addf %26, %27 : vector<196x128xf32>
    %cst_21 = arith.constant 0.000000e+00 : f32
    %29 = vector.broadcast %cst_21 : f32 to vector<196x128xf32>
    %30 = arith.maximumf %28, %29 : vector<196x128xf32>
    %31 = arith.maximumf %23, %30 : vector<196x128xf32>
    %32 = arith.maximumf %16, %31 : vector<196x128xf32>
    %33 = arith.truncf %32 : vector<196x128xf32> to vector<196x128xbf16>
    %c0_22 = arith.constant 0 : index
    %c0_23 = arith.constant 0 : index
    %c0_24 = arith.constant 0 : index
    %34 = vector.load %arg7[%c0_22, %c0_23, %c0_24] : memref<1x196x128xbf16, #tpu.memory_space<vmem>>, vector<1x196x128xbf16>
    %35 = vector.shape_cast %34 : vector<1x196x128xbf16> to vector<196x128xbf16>
    %36 = vector.shape_cast %33 : vector<196x128xbf16> to vector<1x196x128xbf16>
    tpu.vector_store %arg7[%c0_22, %c0_23, %c0_24], %36 {strides = array<i32>} : memref<1x196x128xbf16, #tpu.memory_space<vmem>>, vector<1x196x128xbf16>,
    return
  }
  func.func @transform_0(%arg0: i32) -> (i32, i32, i32) {
    %c0_i32 = arith.constant 0 : i32
    %c0_i32_0 = arith.constant 0 : i32
    %c0_i32_1 = arith.constant 0 : i32
    return %arg0, %c0_i32, %c0_i32_0 : i32, i32, i32
  }
  func.func @transform_1(%arg0: i32) -> (i32, i32, i32) {
    %c0_i32 = arith.constant 0 : i32
    %c0_i32_0 = arith.constant 0 : i32
    %c0_i32_1 = arith.constant 0 : i32
    return %arg0, %c0_i32, %c0_i32_0 : i32, i32, i32
  }
  func.func @transform_2(%arg0: i32) -> (i32, i32, i32) {
    %c0_i32 = arith.constant 0 : i32
    %c0_i32_0 = arith.constant 0 : i32
    %c0_i32_1 = arith.constant 0 : i32
    return %arg0, %c0_i32, %c0_i32_0 : i32, i32, i32
  }
  func.func @transform_3(%arg0: i32) -> (i32, i32, i32) {
    %c0_i32 = arith.constant 0 : i32
    %c0_i32_0 = arith.constant 0 : i32
    %c0_i32_1 = arith.constant 0 : i32
    return %arg0, %c0_i32, %c0_i32_0 : i32, i32, i32
  }
  func.func @transform_4(%arg0: i32) -> (i32, i32) {
    %c0_i32 = arith.constant 0 : i32
    %c0_i32_0 = arith.constant 0 : i32
    %c0_i32_1 = arith.constant 0 : i32
    return %c0_i32, %c0_i32_0 : i32, i32
  }
  func.func @transform_5(%arg0: i32) -> (i32, i32) {
    %c0_i32 = arith.constant 0 : i32
    %c0_i32_0 = arith.constant 0 : i32
    %c0_i32_1 = arith.constant 0 : i32
    return %c0_i32, %c0_i32_0 : i32, i32
  }
  func.func @transform_6(%arg0: i32) -> (i32, i32, i32) {
    %c0_i32 = arith.constant 0 : i32
    %c0_i32_0 = arith.constant 0 : i32
    %c0_i32_1 = arith.constant 0 : i32
    return %arg0, %c0_i32, %c0_i32_0 : i32, i32, i32
  }
}

module attributes {stable_mosaic.version = 11 : i64} {
  func.func @_conv_bn_relu_pool_kernel(%arg0: i32, %arg1: memref<1x25x160xbf16, #tpu.memory_space<vmem>>, %arg2: memref<1x25x160xbf16, #tpu.memory_space<vmem>>, %arg3: memref<1x25x160xbf16, #tpu.memory_space<vmem>>, %arg4: memref<1x25x160xbf16, #tpu.memory_space<vmem>>, %arg5: memref<160x128xbf16, #tpu.memory_space<vmem>>, %arg6: memref<1x128xf32, #tpu.memory_space<vmem>>, %arg7: memref<1x25x128xbf16, #tpu.memory_space<vmem>>) attributes {dimension_semantics = [#tpu.dimension_semantics<parallel>], iteration_bounds = array<i64: 2>, scalar_prefetch = 0 : i64, scratch_operands = 0 : i64, tpu.core_type = #tpu.core_type<tc>, window_params = [{transform_indices = @transform_0, window_bounds = array<i64: 1, 25, 160>}, {transform_indices = @transform_1, window_bounds = array<i64: 1, 25, 160>}, {transform_indices = @transform_2, window_bounds = array<i64: 1, 25, 160>}, {transform_indices = @transform_3, window_bounds = array<i64: 1, 25, 160>}, {pipeline_mode = #tpu.pipeline_mode<synchronous>, transform_indices = @transform_4, window_bounds = array<i64: 160, 128>}, {pipeline_mode = #tpu.pipeline_mode<synchronous>, transform_indices = @transform_5, window_bounds = array<i64: 1, 128>}, {transform_indices = @transform_6, window_bounds = array<i64: 1, 25, 128>}]} {
    %c0 = arith.constant 0 : index
    %c0_0 = arith.constant 0 : index
    %0 = vector.load %arg5[%c0, %c0_0] : memref<160x128xbf16, #tpu.memory_space<vmem>>, vector<160x128xbf16>
    %c0_1 = arith.constant 0 : index
    %c0_2 = arith.constant 0 : index
    %1 = vector.load %arg6[%c0_1, %c0_2] : memref<1x128xf32, #tpu.memory_space<vmem>>, vector<1x128xf32>
    %c0_3 = arith.constant 0 : index
    %c0_4 = arith.constant 0 : index
    %c0_5 = arith.constant 0 : index
    %2 = vector.load %arg1[%c0_3, %c0_4, %c0_5] : memref<1x25x160xbf16, #tpu.memory_space<vmem>>, vector<1x25x160xbf16>
    %3 = vector.shape_cast %2 : vector<1x25x160xbf16> to vector<25x160xbf16>
    %cst = arith.constant dense<0.000000e+00> : vector<25x128xf32>
    %4 = tpu.matmul %3, %0, %cst {dimension_numbers = #tpu.dot_dimension_numbers<[1], [0], [0], [1], [0, 0, 1, 1], [], []>} : vector<25x160xbf16>, vector<160x128xbf16>, vector<25x128xf32> -> vector<25x128xf32>
    %5 = vector.broadcast %1 : vector<1x128xf32> to vector<25x128xf32>
    %6 = arith.addf %4, %5 : vector<25x128xf32>
    %cst_6 = arith.constant 0.000000e+00 : f32
    %7 = vector.broadcast %cst_6 : f32 to vector<25x128xf32>
    %8 = arith.maximumf %6, %7 : vector<25x128xf32>
    %c0_7 = arith.constant 0 : index
    %c0_8 = arith.constant 0 : index
    %c0_9 = arith.constant 0 : index
    %9 = vector.load %arg2[%c0_7, %c0_8, %c0_9] : memref<1x25x160xbf16, #tpu.memory_space<vmem>>, vector<1x25x160xbf16>
    %10 = vector.shape_cast %9 : vector<1x25x160xbf16> to vector<25x160xbf16>
    %cst_10 = arith.constant dense<0.000000e+00> : vector<25x128xf32>
    %11 = tpu.matmul %10, %0, %cst_10 {dimension_numbers = #tpu.dot_dimension_numbers<[1], [0], [0], [1], [0, 0, 1, 1], [], []>} : vector<25x160xbf16>, vector<160x128xbf16>, vector<25x128xf32> -> vector<25x128xf32>
    %12 = vector.broadcast %1 : vector<1x128xf32> to vector<25x128xf32>
    %13 = arith.addf %11, %12 : vector<25x128xf32>
    %cst_11 = arith.constant 0.000000e+00 : f32
    %14 = vector.broadcast %cst_11 : f32 to vector<25x128xf32>
    %15 = arith.maximumf %13, %14 : vector<25x128xf32>
    %16 = arith.maximumf %8, %15 : vector<25x128xf32>
    %c0_12 = arith.constant 0 : index
    %c0_13 = arith.constant 0 : index
    %c0_14 = arith.constant 0 : index
    %17 = vector.load %arg3[%c0_12, %c0_13, %c0_14] : memref<1x25x160xbf16, #tpu.memory_space<vmem>>, vector<1x25x160xbf16>
    %18 = vector.shape_cast %17 : vector<1x25x160xbf16> to vector<25x160xbf16>
    %cst_15 = arith.constant dense<0.000000e+00> : vector<25x128xf32>
    %19 = tpu.matmul %18, %0, %cst_15 {dimension_numbers = #tpu.dot_dimension_numbers<[1], [0], [0], [1], [0, 0, 1, 1], [], []>} : vector<25x160xbf16>, vector<160x128xbf16>, vector<25x128xf32> -> vector<25x128xf32>
    %20 = vector.broadcast %1 : vector<1x128xf32> to vector<25x128xf32>
    %21 = arith.addf %19, %20 : vector<25x128xf32>
    %cst_16 = arith.constant 0.000000e+00 : f32
    %22 = vector.broadcast %cst_16 : f32 to vector<25x128xf32>
    %23 = arith.maximumf %21, %22 : vector<25x128xf32>
    %c0_17 = arith.constant 0 : index
    %c0_18 = arith.constant 0 : index
    %c0_19 = arith.constant 0 : index
    %24 = vector.load %arg4[%c0_17, %c0_18, %c0_19] : memref<1x25x160xbf16, #tpu.memory_space<vmem>>, vector<1x25x160xbf16>
    %25 = vector.shape_cast %24 : vector<1x25x160xbf16> to vector<25x160xbf16>
    %cst_20 = arith.constant dense<0.000000e+00> : vector<25x128xf32>
    %26 = tpu.matmul %25, %0, %cst_20 {dimension_numbers = #tpu.dot_dimension_numbers<[1], [0], [0], [1], [0, 0, 1, 1], [], []>} : vector<25x160xbf16>, vector<160x128xbf16>, vector<25x128xf32> -> vector<25x128xf32>
    %27 = vector.broadcast %1 : vector<1x128xf32> to vector<25x128xf32>
    %28 = arith.addf %26, %27 : vector<25x128xf32>
    %cst_21 = arith.constant 0.000000e+00 : f32
    %29 = vector.broadcast %cst_21 : f32 to vector<25x128xf32>
    %30 = arith.maximumf %28, %29 : vector<25x128xf32>
    %31 = arith.maximumf %23, %30 : vector<25x128xf32>
    %32 = arith.maximumf %16, %31 : vector<25x128xf32>
    %33 = arith.truncf %32 : vector<25x128xf32> to vector<25x128xbf16>
    %c0_22 = arith.constant 0 : index
    %c0_23 = arith.constant 0 : index
    %c0_24 = arith.constant 0 : index
    %34 = vector.load %arg7[%c0_22, %c0_23, %c0_24] : memref<1x25x128xbf16, #tpu.memory_space<vmem>>, vector<1x25x128xbf16>
    %35 = vector.shape_cast %34 : vector<1x25x128xbf16> to vector<25x128xbf16>
    %36 = vector.shape_cast %33 : vector<25x128xbf16> to vector<1x25x128xbf16>
    tpu.vector_store %arg7[%c0_22, %c0_23, %c0_24], %36 {strides = array<i32>} : memref<1x25x128xbf16, #tpu.memory_space<vmem>>, vector<1x25x128xbf16>,
    return
  }
  func.func @transform_0(%arg0: i32) -> (i32, i32, i32) {
    %c0_i32 = arith.constant 0 : i32
    %c0_i32_0 = arith.constant 0 : i32
    %c0_i32_1 = arith.constant 0 : i32
    return %arg0, %c0_i32, %c0_i32_0 : i32, i32, i32
  }
  func.func @transform_1(%arg0: i32) -> (i32, i32, i32) {
    %c0_i32 = arith.constant 0 : i32
    %c0_i32_0 = arith.constant 0 : i32
    %c0_i32_1 = arith.constant 0 : i32
    return %arg0, %c0_i32, %c0_i32_0 : i32, i32, i32
  }
  func.func @transform_2(%arg0: i32) -> (i32, i32, i32) {
    %c0_i32 = arith.constant 0 : i32
    %c0_i32_0 = arith.constant 0 : i32
    %c0_i32_1 = arith.constant 0 : i32
    return %arg0, %c0_i32, %c0_i32_0 : i32, i32, i32
  }
  func.func @transform_3(%arg0: i32) -> (i32, i32, i32) {
    %c0_i32 = arith.constant 0 : i32
    %c0_i32_0 = arith.constant 0 : i32
    %c0_i32_1 = arith.constant 0 : i32
    return %arg0, %c0_i32, %c0_i32_0 : i32, i32, i32
  }
  func.func @transform_4(%arg0: i32) -> (i32, i32) {
    %c0_i32 = arith.constant 0 : i32
    %c0_i32_0 = arith.constant 0 : i32
    %c0_i32_1 = arith.constant 0 : i32
    return %c0_i32, %c0_i32_0 : i32, i32
  }
  func.func @transform_5(%arg0: i32) -> (i32, i32) {
    %c0_i32 = arith.constant 0 : i32
    %c0_i32_0 = arith.constant 0 : i32
    %c0_i32_1 = arith.constant 0 : i32
    return %c0_i32, %c0_i32_0 : i32, i32
  }
  func.func @transform_6(%arg0: i32) -> (i32, i32, i32) {
    %c0_i32 = arith.constant 0 : i32
    %c0_i32_0 = arith.constant 0 : i32
    %c0_i32_1 = arith.constant 0 : i32
    return %arg0, %c0_i32, %c0_i32_0 : i32, i32, i32
  }
}

module attributes {stable_mosaic.version = 11 : i64} {
  func.func @_fc_head_kernel(%arg0: memref<2x3200xbf16, #tpu.memory_space<vmem>>, %arg1: memref<3200x128xbf16, #tpu.memory_space<vmem>>, %arg2: memref<1x128xf32, #tpu.memory_space<vmem>>, %arg3: memref<128x128xbf16, #tpu.memory_space<vmem>>, %arg4: memref<1x128xf32, #tpu.memory_space<vmem>>, %arg5: memref<128x128xbf16, #tpu.memory_space<vmem>>, %arg6: memref<1x128xf32, #tpu.memory_space<vmem>>, %arg7: memref<2x128xf32, #tpu.memory_space<vmem>>) attributes {dimension_semantics = [], scalar_prefetch = 0 : i64, scratch_operands = 0 : i64, tpu.core_type = #tpu.core_type<tc>} {
    %c0 = arith.constant 0 : index
    %c0_0 = arith.constant 0 : index
    %0 = vector.load %arg0[%c0, %c0_0] : memref<2x3200xbf16, #tpu.memory_space<vmem>>, vector<2x3200xbf16>
    %c0_1 = arith.constant 0 : index
    %c0_2 = arith.constant 0 : index
    %1 = vector.load %arg1[%c0_1, %c0_2] : memref<3200x128xbf16, #tpu.memory_space<vmem>>, vector<3200x128xbf16>
    %cst = arith.constant dense<0.000000e+00> : vector<2x128xf32>
    %2 = tpu.matmul %0, %1, %cst {dimension_numbers = #tpu.dot_dimension_numbers<[1], [0], [0], [1], [0, 0, 1, 1], [], []>} : vector<2x3200xbf16>, vector<3200x128xbf16>, vector<2x128xf32> -> vector<2x128xf32>
    %c0_3 = arith.constant 0 : index
    %c0_4 = arith.constant 0 : index
    %3 = vector.load %arg2[%c0_3, %c0_4] : memref<1x128xf32, #tpu.memory_space<vmem>>, vector<1x128xf32>
    %4 = vector.broadcast %3 : vector<1x128xf32> to vector<2x128xf32>
    %5 = arith.addf %2, %4 : vector<2x128xf32>
    %cst_5 = arith.constant 0.000000e+00 : f32
    %6 = vector.broadcast %cst_5 : f32 to vector<2x128xf32>
    %7 = arith.maximumf %5, %6 : vector<2x128xf32>
    %8 = arith.truncf %7 : vector<2x128xf32> to vector<2x128xbf16>
    %c0_6 = arith.constant 0 : index
    %c0_7 = arith.constant 0 : index
    %9 = vector.load %arg3[%c0_6, %c0_7] : memref<128x128xbf16, #tpu.memory_space<vmem>>, vector<128x128xbf16>
    %cst_8 = arith.constant dense<0.000000e+00> : vector<2x128xf32>
    %10 = tpu.matmul %8, %9, %cst_8 {dimension_numbers = #tpu.dot_dimension_numbers<[1], [0], [0], [1], [0, 0, 1, 1], [], []>} : vector<2x128xbf16>, vector<128x128xbf16>, vector<2x128xf32> -> vector<2x128xf32>
    %c0_9 = arith.constant 0 : index
    %c0_10 = arith.constant 0 : index
    %11 = vector.load %arg4[%c0_9, %c0_10] : memref<1x128xf32, #tpu.memory_space<vmem>>, vector<1x128xf32>
    %12 = vector.broadcast %11 : vector<1x128xf32> to vector<2x128xf32>
    %13 = arith.addf %10, %12 : vector<2x128xf32>
    %cst_11 = arith.constant 0.000000e+00 : f32
    %14 = vector.broadcast %cst_11 : f32 to vector<2x128xf32>
    %15 = arith.maximumf %13, %14 : vector<2x128xf32>
    %16 = arith.truncf %15 : vector<2x128xf32> to vector<2x128xbf16>
    %c0_12 = arith.constant 0 : index
    %c0_13 = arith.constant 0 : index
    %17 = vector.load %arg5[%c0_12, %c0_13] : memref<128x128xbf16, #tpu.memory_space<vmem>>, vector<128x128xbf16>
    %cst_14 = arith.constant dense<0.000000e+00> : vector<2x128xf32>
    %18 = tpu.matmul %16, %17, %cst_14 {dimension_numbers = #tpu.dot_dimension_numbers<[1], [0], [0], [1], [0, 0, 1, 1], [], []>} : vector<2x128xbf16>, vector<128x128xbf16>, vector<2x128xf32> -> vector<2x128xf32>
    %c0_15 = arith.constant 0 : index
    %c0_16 = arith.constant 0 : index
    %19 = vector.load %arg6[%c0_15, %c0_16] : memref<1x128xf32, #tpu.memory_space<vmem>>, vector<1x128xf32>
    %20 = vector.broadcast %19 : vector<1x128xf32> to vector<2x128xf32>
    %21 = arith.addf %18, %20 : vector<2x128xf32>
    %cst_17 = arith.constant 0.000000e+00 : f32
    %22 = vector.broadcast %cst_17 : f32 to vector<2x128xf32>
    %23 = arith.subf %22, %21 : vector<2x128xf32>
    %24 = math.exp %23 : vector<2x128xf32>
    %cst_18 = arith.constant 1.000000e+00 : f32
    %25 = vector.broadcast %cst_18 : f32 to vector<2x128xf32>
    %26 = arith.addf %25, %24 : vector<2x128xf32>
    %cst_19 = arith.constant 1.000000e+00 : f32
    %27 = vector.broadcast %cst_19 : f32 to vector<2x128xf32>
    %28 = arith.divf %27, %26 : vector<2x128xf32>
    %c0_20 = arith.constant 0 : index
    %c0_21 = arith.constant 0 : index
    %29 = vector.load %arg7[%c0_20, %c0_21] : memref<2x128xf32, #tpu.memory_space<vmem>>, vector<2x128xf32>
    tpu.vector_store %arg7[%c0_20, %c0_21], %28 {strides = array<i32>} : memref<2x128xf32, #tpu.memory_space<vmem>>, vector<2x128xf32>,
    return
  }
}

</mosaic_0001>

<llo_original>
// kernel: net_forward.3
$region0: #{net_forward.3}
  #allocation0 [shape = 'u32[]', space=smem, size = 0x4, offset = 0x4, fixed_abs, tag = 'smem constant byte address 0x4 - core index']
  #allocation1 [shape = 'u32[144,128]{1,0:T(1,128)}', space=vmem, size = 0x12000, scoped, tag = 'internal scratch']
  %s0 = inlined_call_operand.vmem [shape: bf16[2,196,80], index: 0, kind: input, shape index: {}]
  %s1 = inlined_call_operand.vmem [shape: bf16[2,196,80], index: 1, kind: input, shape index: {}]
  %s2 = inlined_call_operand.vmem [shape: bf16[2,196,80], index: 2, kind: input, shape index: {}]
  %s3 = inlined_call_operand.vmem [shape: bf16[2,196,80], index: 3, kind: input, shape index: {}]
  %s4 = inlined_call_operand.vmem [shape: bf16[80,128], index: 4, kind: input, shape index: {}]
  %s5 = inlined_call_operand.vmem [shape: f32[1,128], index: 5, kind: input, shape index: {}]
  %s6 = inlined_call_operand.vmem [shape: bf16[2,196,128], index: 6, kind: output, shape index: {}]
  %s7 = sld [smem:[#allocation0]]
  $region57: #{net_forward.3} parent=0
    _
  %s9 = ssub.s32 1, %s7
  %s10 = scalar_select 0, %s9, %s7
  loop: start=0, step=1, limit=4
  $region2: #{net_forward.3} parent=0 // loop_pre_header
    _
  $region3: #{net_forward.3} parent=0 // loop_header
    %s12 = sphi 0, %s16
    %p13 = scmp.ge.s32.totalorder %s12, 4
    %s22 = sphi 0, %s24
    %s25 = sphi 0, %s22
    %s26 = sphi 0, %s25
    %s42 = sphi 0, %s26
    %s48 = sphi 0, %s50
    %s51 = sphi 0, %s48
    %s52 = sphi 0, %s51
    %s68 = sphi 0, %s52
    %s74 = sphi 0, %s76
    %s77 = sphi 0, %s74
    %s78 = sphi 0, %s77
    %s94 = sphi 0, %s78
    %s100 = sphi 0, %s102
    %s103 = sphi 0, %s100
    %s104 = sphi 0, %s103
    %s120 = sphi 0, %s104
    %s124 = sphi 0, %s124
    %s126 = sphi 0, %s124
    %s127 = sphi 0, %s126
    %s141 = sphi 0, %s127
    %s145 = sphi 0, %s145
    %s147 = sphi 0, %s145
    %s148 = sphi 0, %s147
    %s162 = sphi 0, %s148
    %s168 = sphi 0, %s170
    %s171 = sphi 0, %s168
    %s172 = sphi 0, %s171
    %s188 = sphi 0, %s172
  $region4: #{net_forward.3} parent=0 // loop_header_branch
    %15 = sbr.rel (%p13) target = $region8
  $region5: #{net_forward.3} parent=0 // loop_body
    %s17 = ssub.s32 %s12, 1
    %s18 = ssub.s32 %s12, 2
    %s19 = sadd.s32 %s12, 1
    %s20 = ssub.s32 %s12, %s19
    %p21 = scmp.eq.s32.totalorder %s20, 0
    %s23 = sadd.s32 %s22, 1
    %s24 = scalar_select %p21, %s22, %s23
    %p27 = pneg %p21
    %p28 = scmp.eq.s32.totalorder %s12, 1
    %p29 = por %p27, %p28
    %p30 = scmp.ne.s32.totalorder %s22, %s25
    %p31 = scmp.eq.s32.totalorder %s12, 0
    %p32 = por %p30, %p31
    %p33 = scmp.ne.s32.totalorder %s22, %s25
    %p34 = scmp.eq.s32.totalorder %s17, 1
    %p35 = por %p33, %p34
    %p36 = scmp.ne.s32.totalorder %s25, %s26
    %p37 = scmp.eq.s32.totalorder %s17, 0
    %p38 = por %p36, %p37
    %p39 = scmp.ne.s32.totalorder %s25, %s26
    %p40 = scmp.eq.s32.totalorder %s18, 1
    %p41 = por %p39, %p40
    %p43 = scmp.ne.s32.totalorder %s26, %s42
    %p44 = scmp.eq.s32.totalorder %s18, 0
    %p45 = por %p43, %p44
    %s46 = ssub.s32 %s12, %s19
    %p47 = scmp.eq.s32.totalorder %s46, 0
    %s49 = sadd.s32 %s48, 1
    %s50 = scalar_select %p47, %s48, %s49
    %p53 = pneg %p47
    %p54 = scmp.eq.s32.totalorder %s12, 1
    %p55 = por %p53, %p54
    %p56 = scmp.ne.s32.totalorder %s48, %s51
    %p57 = scmp.eq.s32.totalorder %s12, 0
    %p58 = por %p56, %p57
    %p59 = scmp.ne.s32.totalorder %s48, %s51
    %p60 = scmp.eq.s32.totalorder %s17, 1
    %p61 = por %p59, %p60
    %p62 = scmp.ne.s32.totalorder %s51, %s52
    %p63 = scmp.eq.s32.totalorder %s17, 0
    %p64 = por %p62, %p63
    %p65 = scmp.ne.s32.totalorder %s51, %s52
    %p66 = scmp.eq.s32.totalorder %s18, 1
    %p67 = por %p65, %p66
    %p69 = scmp.ne.s32.totalorder %s52, %s68
    %p70 = scmp.eq.s32.totalorder %s18, 0
    %p71 = por %p69, %p70
    %s72 = ssub.s32 %s12, %s19
    %p73 = scmp.eq.s32.totalorder %s72, 0
    %s75 = sadd.s32 %s74, 1
    %s76 = scalar_select %p73, %s74, %s75
    %p79 = pneg %p73
    %p80 = scmp.eq.s32.totalorder %s12, 1
    %p81 = por %p79, %p80
    %p82 = scmp.ne.s32.totalorder %s74, %s77
    %p83 = scmp.eq.s32.totalorder %s12, 0
    %p84 = por %p82, %p83
    %p85 = scmp.ne.s32.totalorder %s74, %s77
    %p86 = scmp.eq.s32.totalorder %s17, 1
    %p87 = por %p85, %p86
    %p88 = scmp.ne.s32.totalorder %s77, %s78
    %p89 = scmp.eq.s32.totalorder %s17, 0
    %p90 = por %p88, %p89
    %p91 = scmp.ne.s32.totalorder %s77, %s78
    %p92 = scmp.eq.s32.totalorder %s18, 1
    %p93 = por %p91, %p92
    %p95 = scmp.ne.s32.totalorder %s78, %s94
    %p96 = scmp.eq.s32.totalorder %s18, 0
    %p97 = por %p95, %p96
    %s98 = ssub.s32 %s12, %s19
    %p99 = scmp.eq.s32.totalorder %s98, 0
    %s101 = sadd.s32 %s100, 1
    %s102 = scalar_select %p99, %s100, %s101
    %p105 = pneg %p99
    %p106 = scmp.eq.s32.totalorder %s12, 1
    %p107 = por %p105, %p106
    %p108 = scmp.ne.s32.totalorder %s100, %s103
    %p109 = scmp.eq.s32.totalorder %s12, 0
    %p110 = por %p108, %p109
    %p111 = scmp.ne.s32.totalorder %s100, %s103
    %p112 = scmp.eq.s32.totalorder %s17, 1
    %p113 = por %p111, %p112
    %p114 = scmp.ne.s32.totalorder %s103, %s104
    %p115 = scmp.eq.s32.totalorder %s17, 0
    %p116 = por %p114, %p115
    %p117 = scmp.ne.s32.totalorder %s103, %s104
    %p118 = scmp.eq.s32.totalorder %s18, 1
    %p119 = por %p117, %p118
    %p121 = scmp.ne.s32.totalorder %s104, %s120
    %p122 = scmp.eq.s32.totalorder %s18, 0
    %p123 = por %p121, %p122
    %s125 = sadd.s32 %s124, 1
    %p128 = scmp.eq.s32.totalorder %s12, 1
    %p129 = scmp.ne.s32.totalorder %s124, %s126
    %p130 = scmp.eq.s32.totalorder %s12, 0
    %p131 = por %p129, %p130
    %p132 = scmp.ne.s32.totalorder %s124, %s126
    %p133 = scmp.eq.s32.totalorder %s17, 1
    %p134 = por %p132, %p133
    %p135 = scmp.ne.s32.totalorder %s126, %s127
    %p136 = scmp.eq.s32.totalorder %s17, 0
    %p137 = por %p135, %p136
    %p138 = scmp.ne.s32.totalorder %s126, %s127
    %p139 = scmp.eq.s32.totalorder %s18, 1
    %p140 = por %p138, %p139
    %p142 = scmp.ne.s32.totalorder %s127, %s141
    %p143 = scmp.eq.s32.totalorder %s18, 0
    %p144 = por %p142, %p143
    %s146 = sadd.s32 %s145, 1
    %p149 = scmp.eq.s32.totalorder %s12, 1
    %p150 = scmp.ne.s32.totalorder %s145, %s147
    %p151 = scmp.eq.s32.totalorder %s12, 0
    %p152 = por %p150, %p151
    %p153 = scmp.ne.s32.totalorder %s145, %s147
    %p154 = scmp.eq.s32.totalorder %s17, 1
    %p155 = por %p153, %p154
    %p156 = scmp.ne.s32.totalorder %s147, %s148
    %p157 = scmp.eq.s32.totalorder %s17, 0
    %p158 = por %p156, %p157
    %p159 = scmp.ne.s32.totalorder %s147, %s148
    %p160 = scmp.eq.s32.totalorder %s18, 1
    %p161 = por %p159, %p160
    %p163 = scmp.ne.s32.totalorder %s148, %s162
    %p164 = scmp.eq.s32.totalorder %s18, 0
    %p165 = por %p163, %p164
    %s166 = ssub.s32 %s12, %s19
    %p167 = scmp.eq.s32.totalorder %s166, 0
    %s169 = sadd.s32 %s168, 1
    %s170 = scalar_select %p167, %s168, %s169
    %p173 = pneg %p167
    %p174 = scmp.eq.s32.totalorder %s12, 1
    %p175 = por %p173, %p174
    %p176 = scmp.ne.s32.totalorder %s168, %s171
    %p177 = scmp.eq.s32.totalorder %s12, 0
    %p178 = por %p176, %p177
    %p179 = scmp.ne.s32.totalorder %s168, %s171
    %p180 = scmp.eq.s32.totalorder %s17, 1
    %p181 = por %p179, %p180
    %p182 = scmp.ne.s32.totalorder %s171, %s172
    %p183 = scmp.eq.s32.totalorder %s17, 0
    %p184 = por %p182, %p183
    %p185 = scmp.ne.s32.totalorder %s171, %s172
    %p186 = scmp.eq.s32.totalorder %s18, 1
    %p187 = por %p185, %p186
    %p189 = scmp.ne.s32.totalorder %s172, %s188
    %p190 = scmp.eq.s32.totalorder %s18, 0
    %p191 = por %p189, %p190
    %p192 = scmp.le.s32.totalorder 1, %s12
    %p193 = scmp.lt.s32.totalorder %s12, 3
    %p194 = pnand %p192, %p193
    %p195 = pneg %p194
    // Predicated region
    $region9: #{net_forward.3} parent=5 // pred_check
      _
    $region10: #{net_forward.3} parent=5 // pred_check_branch
      %197 = sbr.rel (%p194) target = $region12
    $region11: #{net_forward.3} parent=5 // pred_region
      %s198 = ssub.s32 %s12, 1
      // Predicated region
      $region13: #{net_forward.3} parent=11 // pred_check
        %p199 = pneg %p137
      $region14: #{net_forward.3} parent=11 // pred_check_branch
        %201 = sbr.rel (%p199) target = $region16
      $region15: #{net_forward.3} parent=11 // pred_region
        _
      $region16: #{net_forward.3} parent=11 // pred_fallthru
        _
      // Predicated region
      $region17: #{net_forward.3} parent=11 // pred_check
        %p202 = pneg %p158
      $region18: #{net_forward.3} parent=11 // pred_check_branch
        %204 = sbr.rel (%p202) target = $region20
      $region19: #{net_forward.3} parent=11 // pred_region
        _
      $region20: #{net_forward.3} parent=11 // pred_fallthru
        _
    $region12: #{net_forward.3} parent=5 // pred_fallthru
      _
    %p205 = scmp.lt.s32.totalorder %s12, 2
    // Predicated region
    $region21: #{net_forward.3} parent=5 // pred_check
      %p206 = pneg %p205
    $region22: #{net_forward.3} parent=5 // pred_check_branch
      %208 = sbr.rel (%p206) target = $region24
    $region23: #{net_forward.3} parent=5 // pred_region
      // Predicated region
      $region25: #{net_forward.3} parent=23 // pred_check
        %p209 = pneg %p32
      $region26: #{net_forward.3} parent=23 // pred_check_branch
        %211 = sbr.rel (%p209) target = $region28
      $region27: #{net_forward.3} parent=23 // pred_region
        %p212 = scmp.lt.s32.totalorder %s12, 1
        %s213 = scalar_select %p212, %s12, 1
        %s214 = smul.addr %s213, 25
        %s215 = smul.addr %s214, 4
        %s216 = scalar_lea.vmem %s0, %s215
      $region28: #{net_forward.3} parent=23 // pred_fallthru
        _
      // Predicated region
      $region29: #{net_forward.3} parent=23 // pred_check
        %p217 = pneg %p58
      $region30: #{net_forward.3} parent=23 // pred_check_branch
        %219 = sbr.rel (%p217) target = $region32
      $region31: #{net_forward.3} parent=23 // pred_region
        %p220 = scmp.lt.s32.totalorder %s12, 1
        %s221 = scalar_select %p220, %s12, 1
        %s222 = smul.addr %s221, 25
        %s223 = smul.addr %s222, 4
        %s224 = scalar_lea.vmem %s1, %s223
      $region32: #{net_forward.3} parent=23 // pred_fallthru
        _
      // Predicated region
      $region33: #{net_forward.3} parent=23 // pred_check
        %p225 = pneg %p84
      $region34: #{net_forward.3} parent=23 // pred_check_branch
        %227 = sbr.rel (%p225) target = $region36
      $region35: #{net_forward.3} parent=23 // pred_region
        %p228 = scmp.lt.s32.totalorder %s12, 1
        %s229 = scalar_select %p228, %s12, 1
        %s230 = smul.addr %s229, 25
        %s231 = smul.addr %s230, 4
        %s232 = scalar_lea.vmem %s2, %s231
      $region36: #{net_forward.3} parent=23 // pred_fallthru
        _
      // Predicated region
      $region37: #{net_forward.3} parent=23 // pred_check
        %p233 = pneg %p110
      $region38: #{net_forward.3} parent=23 // pred_check_branch
        %235 = sbr.rel (%p233) target = $region40
      $region39: #{net_forward.3} parent=23 // pred_region
        %p236 = scmp.lt.s32.totalorder %s12, 1
        %s237 = scalar_select %p236, %s12, 1
        %s238 = smul.addr %s237, 25
        %s239 = smul.addr %s238, 4
        %s240 = scalar_lea.vmem %s3, %s239
      $region40: #{net_forward.3} parent=23 // pred_fallthru
        _
    $region24: #{net_forward.3} parent=5 // pred_fallthru
      _
    %p241 = scmp.le.s32.totalorder 1, %s12
    %p242 = scmp.lt.s32.totalorder %s12, 3
    %p243 = pnand %p241, %p242
    %p244 = pneg %p243
    // Predicated region
    $region41: #{net_forward.3} parent=5 // pred_check
      _
    $region42: #{net_forward.3} parent=5 // pred_check_branch
      %246 = sbr.rel (%p243) target = $region44
    $region43: #{net_forward.3} parent=5 // pred_region
      %s247 = ssub.s32 %s12, 1
      %p248 = scmp.lt.s32.totalorder %s17, 1
      %s249 = scalar_select %p248, %s17, 1
      %s250 = smul.addr %s249, 25
      %s251 = smul.addr %s250, 4
      %s252 = scalar_lea.vmem %s0, %s251
      %p253 = pneg %p38
      %p254 = pneg %p35
      %p255 = scmp.lt.s32.totalorder %s17, 1
      %s256 = scalar_select %p255, %s17, 1
      %s257 = smul.addr %s256, 25
      %s258 = smul.addr %s257, 4
      %s259 = scalar_lea.vmem %s1, %s258
      %p260 = pneg %p64
      %p261 = pneg %p61
      %p262 = scmp.lt.s32.totalorder %s17, 1
      %s263 = scalar_select %p262, %s17, 1
      %s264 = smul.addr %s263, 25
      %s265 = smul.addr %s264, 4
      %s266 = scalar_lea.vmem %s2, %s265
      %p267 = pneg %p90
      %p268 = pneg %p87
      %p269 = scmp.lt.s32.totalorder %s17, 1
      %s270 = scalar_select %p269, %s17, 1
      %s271 = smul.addr %s270, 25
      %s272 = smul.addr %s271, 4
      %s273 = scalar_lea.vmem %s3, %s272
      %p274 = pneg %p116
      %p275 = pneg %p113
      %p276 = pneg %p137
      %p277 = pneg %p134
      %p278 = pneg %p158
      %p279 = pneg %p155
      %p280 = pneg %p184
      %p281 = pneg %p181
      %p282 = scmp.lt.s32.totalorder %s17, 1
      %s283 = scalar_select %p282, %s17, 1
      %s284 = smul.addr %s283, 25
      %s285 = smul.addr %s284, 4
      %s286 = scalar_lea.vmem %s6, %s285
      %p287 = scmp.lt.s32.totalorder %s17, 1
      %s288 = scalar_select %p287, %s17, 1
      %s289 = smul.addr %s288, 25
      %s290 = smul.addr %s289, 4
      %s291 = scalar_lea.vmem %s0, %s290
      %p292 = scmp.lt.s32.totalorder %s17, 1
      %s293 = scalar_select %p292, %s17, 1
      %s294 = smul.addr %s293, 25
      %s295 = smul.addr %s294, 4
      %s296 = scalar_lea.vmem %s1, %s295
      %p297 = scmp.lt.s32.totalorder %s17, 1
      %s298 = scalar_select %p297, %s17, 1
      %s299 = smul.addr %s298, 25
      %s300 = smul.addr %s299, 4
      %s301 = scalar_lea.vmem %s2, %s300
      %p302 = scmp.lt.s32.totalorder %s17, 1
      %s303 = scalar_select %p302, %s17, 1
      %s304 = smul.addr %s303, 25
      %s305 = smul.addr %s304, 4
      %s306 = scalar_lea.vmem %s3, %s305
      %p307 = scmp.lt.s32.totalorder %s17, 1
      %s308 = scalar_select %p307, %s17, 1
      %s309 = smul.addr %s308, 25
      %s310 = smul.addr %s309, 4
      %s311 = scalar_lea.vmem %s6, %s310
      %v313 = vld [vmem:[%s4] sm:$0xf]
      %v314 = vld [vmem:[%s4 + $0x4] sm:$0xf]
      %v315 = vld [vmem:[%s4 + $0x8] sm:$0xf]
      %v316 = vld [vmem:[%s4 + $0xc] sm:$0xf]
      %v317 = vld [vmem:[%s4 + $0x10] sm:$0xf]
      %v318 = vld [vmem:[%s4 + $0x14] sm:$0xf]
      %v319 = vld [vmem:[%s4 + $0x18] sm:$0xf]
      %v320 = vld [vmem:[%s4 + $0x1c] sm:$0xf]
      %v321 = vld [vmem:[%s4 + $0x20] sm:$0xf]
      %v322 = vld [vmem:[%s4 + $0x24] sm:$0xf]
      %v323 = vld [vmem:[%s5] sm:$0x1]
      %v324 = vld [vmem:[%s291] sm:$0xf]
      %v325 = vld [vmem:[%s291 + $0x4] sm:$0xf]
      %v326 = vld [vmem:[%s291 + $0x8] sm:$0xf]
      %v327 = vld [vmem:[%s291 + $0xc] sm:$0xf]
      %v328 = vld [vmem:[%s291 + $0x10] sm:$0xf]
      %v329 = vld [vmem:[%s291 + $0x14] sm:$0xf]
      %v330 = vld [vmem:[%s291 + $0x18] sm:$0xf]
      %v331 = vld [vmem:[%s291 + $0x1c] sm:$0xf]
      %v332 = vld [vmem:[%s291 + $0x20] sm:$0xf]
      %v333 = vld [vmem:[%s291 + $0x24] sm:$0xf]
      %v334 = vld [vmem:[%s291 + $0x28] sm:$0xf]
      %v335 = vld [vmem:[%s291 + $0x2c] sm:$0xf]
      %v336 = vld [vmem:[%s291 + $0x30] sm:$0xf]
      %v337 = vld [vmem:[%s291 + $0x34] sm:$0xf]
      %v338 = vld [vmem:[%s291 + $0x38] sm:$0xf]
      %v339 = vld [vmem:[%s291 + $0x3c] sm:$0xf]
      %v340 = vld [vmem:[%s291 + $0x40] sm:$0xf]
      %v341 = vld [vmem:[%s291 + $0x44] sm:$0xf]
      %v342 = vld [vmem:[%s291 + $0x48] sm:$0xf]
      %v343 = vld [vmem:[%s291 + $0x4c] sm:$0xf]
      %v344 = vld [vmem:[%s291 + $0x50] sm:$0xf]
      %v345 = vld [vmem:[%s291 + $0x54] sm:$0xf]
      %v346 = vld [vmem:[%s291 + $0x58] sm:$0xf]
      %v347 = vld [vmem:[%s291 + $0x5c] sm:$0xf]
      %v348 = vld [vmem:[%s291 + $0x60] sm:$0x3]
      %v350 = vlaneseq
      %v351 = vshrl.u32 %v350, 7
      %v352 = vsub.s32 0, %v351
      %v353 = vrot.slane %v323, %v352
      %v380 = vunpack.c.l.b16 %v324
      %v381 = vunpack.c.l.b16 %v325
      %v382 = vunpack.c.l.b16 %v326
      %v383 = vunpack.c.l.b16 %v327
      %v384 = vunpack.c.l.b16 %v328
      %v385 = vunpack.c.l.b16 %v329
      %v386 = vunpack.c.l.b16 %v330
      %v387 = vunpack.c.l.b16 %v331
      %v388 = vunpack.c.l.b16 %v332
      %v389 = vunpack.c.l.b16 %v333
      %v390 = vunpack.c.l.b16 %v334
      %v391 = vunpack.c.l.b16 %v335
      %v392 = vunpack.c.l.b16 %v336
      %v393 = vunpack.c.l.b16 %v337
      %v394 = vunpack.c.l.b16 %v338
      %v395 = vunpack.c.l.b16 %v339
      %v396 = vunpack.c.l.b16 %v340
      %v397 = vunpack.c.l.b16 %v341
      %v398 = vunpack.c.l.b16 %v342
      %v399 = vunpack.c.l.b16 %v343
      %v400 = vunpack.c.l.b16 %v344
      %v401 = vunpack.c.l.b16 %v345
      %v402 = vunpack.c.l.b16 %v346
      %v403 = vunpack.c.l.b16 %v347
      %v404 = vunpack.c.l.b16 %v348
      %v405 = vpack.c.b16 %v381, %v380
      %v406 = vpack.c.b16 %v383, %v382
      %v407 = vpack.c.b16 %v385, %v384
      %v408 = vpack.c.b16 %v387, %v386
      %v409 = vpack.c.b16 %v389, %v388
      %v410 = vpack.c.b16 %v391, %v390
      %v411 = vpack.c.b16 %v393, %v392
      %v412 = vpack.c.b16 %v395, %v394
      %v413 = vpack.c.b16 %v397, %v396
      %v414 = vpack.c.b16 %v399, %v398
      %v415 = vpack.c.b16 %v401, %v400
      %v416 = vpack.c.b16 %v403, %v402
      %v417 = vpack.c.b16 %v404, %v404
      %v428 = vunpack.c.l.b16 %v313
      %v429 = vunpack.c.l.b16 %v314
      %v430 = vunpack.c.l.b16 %v315
      %v431 = vunpack.c.l.b16 %v316
      %v432 = vunpack.c.l.b16 %v317
      %v433 = vunpack.c.l.b16 %v318
      %v434 = vunpack.c.l.b16 %v319
      %v435 = vunpack.c.l.b16 %v320
      %v436 = vunpack.c.l.b16 %v321
      %v437 = vunpack.c.l.b16 %v322
      %v438 = vpack.c.b16 %v429, %v428
      %v439 = vpack.c.b16 %v431, %v430
      %v440 = vpack.c.b16 %v433, %v432
      %v441 = vpack.c.b16 %v435, %v434
      %v442 = vpack.c.b16 %v437, %v436
      %vm448 = vcmask 654336
      %v450 = vsel %vm448, %v405, 0
      %v453 = vsel %vm448, %v406, 0
      %v456 = vsel %vm448, %v407, 0
      %v459 = vsel %vm448, %v408, 0
      %v462 = vsel %vm448, %v409, 0
      %v465 = vsel %vm448, %v410, 0
      %v468 = vsel %vm448, %v411, 0
      %v471 = vsel %vm448, %v412, 0
      %v474 = vsel %vm448, %v413, 0
      %v477 = vsel %vm448, %v414, 0
      %v480 = vsel %vm448, %v415, 0
      %v483 = vsel %vm448, %v416, 0
      %v486 = vsel %vm448, %v417, 0
      %488 = vmatprep.subr.bf16.mxu0 0
      %489 = vmatpush1.bf16.msra.mxu0 0
      %490 = vmatprep.subr.bf16.mxu0 0
      %491 = vmatpush1.bf16.msra.mxu0 0
      %492 = vmatprep.subr.bf16.mxu0 0
      %493 = vmatpush1.bf16.msra.mxu0 0
      %494 = vmatprep.subr.bf16.mxu0 0
      %495 = vmatpush1.bf16.msra.mxu0 %v442
      %496 = vmatprep.subr.bf16.mxu0 0
      %497 = vmatpush1.bf16.msra.mxu0 %v441
      %498 = vmatprep.subr.bf16.mxu0 0
      %499 = vmatpush1.bf16.msra.mxu0 %v440
      %500 = vmatprep.subr.bf16.mxu0 0
      %501 = vmatpush1.bf16.msra.mxu0 %v439
      %502 = vmatprep.subr.bf16.mxu0 0
      %503 = vmatpush1.bf16.msra.mxu0 %v438
      %504 = vmatprep.subr.bf16.mxu0 0
      %505 = vmatpush2.bf16.msra.mxu0 0
      %506 = vmatprep.subr.bf16.mxu0 0
      %507 = vmatpush2.bf16.msra.mxu0 0
      %508 = vmatprep.subr.bf16.mxu0 0
      %509 = vmatpush2.bf16.msra.mxu0 0
      %510 = vmatprep.subr.bf16.mxu0 0
      %511 = vmatpush2.bf16.msra.mxu0 0
      %512 = vmatprep.subr.bf16.mxu0 0
      %513 = vmatpush2.bf16.msra.mxu0 0
      %514 = vmatprep.subr.bf16.mxu0 0
      %515 = vmatpush2.bf16.msra.mxu0 0
      %516 = vmatprep.subr.bf16.mxu0 0
      %517 = vmatpush2.bf16.msra.mxu0 0
      %518 = vmatprep.subr.bf16.mxu0 0
      %519 = vmatpush2.bf16.msra.mxu0 0
      %520 = vmatprep.mubr.bf16.mxu0 0
      %521 = vmatmul.mubr.bf16.gmra.mxu0 %v450
      %v522 = vpop.f32.mrf.mxu0
      %v523 = vadd.f32 %v353, %v522
      %v524 = vpop.f32.mrf.mxu0
      %v525 = vpop.f32.mrf.mxu0
      %v526 = vadd.f32 %v353, %v525
      %v527 = vpop.f32.mrf.mxu0
      %528 = vmatprep.mubr.bf16.mxu0 0
      %529 = vmatmul.mubr.bf16.gmra.mxu0 %v453
      %v530 = vpop.f32.mrf.mxu0
      %v531 = vadd.f32 %v353, %v530
      %v532 = vpop.f32.mrf.mxu0
      %v533 = vpop.f32.mrf.mxu0
      %v534 = vadd.f32 %v353, %v533
      %v535 = vpop.f32.mrf.mxu0
      %536 = vmatprep.mubr.bf16.mxu0 0
      %537 = vmatmul.mubr.bf16.gmra.mxu0 %v456
      %v538 = vpop.f32.mrf.mxu0
      %v539 = vadd.f32 %v353, %v538
      %v540 = vpop.f32.mrf.mxu0
      %v541 = vpop.f32.mrf.mxu0
      %v542 = vadd.f32 %v353, %v541
      %v543 = vpop.f32.mrf.mxu0
      %544 = vmatprep.mubr.bf16.mxu0 0
      %545 = vmatmul.mubr.bf16.gmra.mxu0 %v459
      %v546 = vpop.f32.mrf.mxu0
      %v547 = vadd.f32 %v353, %v546
      %v548 = vpop.f32.mrf.mxu0
      %v549 = vpop.f32.mrf.mxu0
      %v550 = vadd.f32 %v353, %v549
      %v551 = vpop.f32.mrf.mxu0
      %552 = vmatprep.mubr.bf16.mxu0 0
      %553 = vmatmul.mubr.bf16.gmra.mxu0 %v462
      %v554 = vpop.f32.mrf.mxu0
      %v555 = vadd.f32 %v353, %v554
      %v556 = vpop.f32.mrf.mxu0
      %v557 = vpop.f32.mrf.mxu0
      %v558 = vadd.f32 %v353, %v557
      %v559 = vpop.f32.mrf.mxu0
      %560 = vmatprep.mubr.bf16.mxu0 0
      %561 = vmatmul.mubr.bf16.gmra.mxu0 %v465
      %v562 = vpop.f32.mrf.mxu0
      %v563 = vadd.f32 %v353, %v562
      %v564 = vpop.f32.mrf.mxu0
      %v565 = vpop.f32.mrf.mxu0
      %v566 = vadd.f32 %v353, %v565
      %v567 = vpop.f32.mrf.mxu0
      %568 = vmatprep.mubr.bf16.mxu0 0
      %569 = vmatmul.mubr.bf16.gmra.mxu0 %v468
      %v570 = vpop.f32.mrf.mxu0
      %v571 = vadd.f32 %v353, %v570
      %v572 = vpop.f32.mrf.mxu0
      %v573 = vpop.f32.mrf.mxu0
      %v574 = vadd.f32 %v353, %v573
      %v575 = vpop.f32.mrf.mxu0
      %576 = vmatprep.mubr.bf16.mxu0 0
      %577 = vmatmul.mubr.bf16.gmra.mxu0 %v471
      %v578 = vpop.f32.mrf.mxu0
      %v579 = vadd.f32 %v353, %v578
      %v580 = vpop.f32.mrf.mxu0
      %v581 = vpop.f32.mrf.mxu0
      %v582 = vadd.f32 %v353, %v581
      %v583 = vpop.f32.mrf.mxu0
      %584 = vmatprep.mubr.bf16.mxu0 0
      %585 = vmatmul.mubr.bf16.gmra.mxu0 %v474
      %v586 = vpop.f32.mrf.mxu0
      %v587 = vadd.f32 %v353, %v586
      %v588 = vpop.f32.mrf.mxu0
      %v589 = vpop.f32.mrf.mxu0
      %v590 = vadd.f32 %v353, %v589
      %v591 = vpop.f32.mrf.mxu0
      %592 = vmatprep.mubr.bf16.mxu0 0
      %593 = vmatmul.mubr.bf16.gmra.mxu0 %v477
      %v594 = vpop.f32.mrf.mxu0
      %v595 = vadd.f32 %v353, %v594
      %v596 = vpop.f32.mrf.mxu0
      %v597 = vpop.f32.mrf.mxu0
      %v598 = vadd.f32 %v353, %v597
      %v599 = vpop.f32.mrf.mxu0
      %600 = vmatprep.mubr.bf16.mxu0 0
      %601 = vmatmul.mubr.bf16.gmra.mxu0 %v480
      %v602 = vpop.f32.mrf.mxu0
      %v603 = vadd.f32 %v353, %v602
      %v604 = vpop.f32.mrf.mxu0
      %v605 = vpop.f32.mrf.mxu0
      %v606 = vadd.f32 %v353, %v605
      %v607 = vpop.f32.mrf.mxu0
      %608 = vmatprep.mubr.bf16.mxu0 0
      %609 = vmatmul.mubr.bf16.gmra.mxu0 %v483
      %v610 = vpop.f32.mrf.mxu0
      %v611 = vadd.f32 %v353, %v610
      %v612 = vpop.f32.mrf.mxu0
      %v613 = vpop.f32.mrf.mxu0
      %v614 = vadd.f32 %v353, %v613
      %v615 = vpop.f32.mrf.mxu0
      %616 = vmatprep.mubr.bf16.mxu0 0
      %617 = vmatmul.mubr.bf16.gmra.mxu0 %v486
      %v618 = vpop.f32.mrf.mxu0
      %v619 = vadd.f32 %v353, %v618
      %v620 = vpop.f32.mrf.mxu0
      %v621 = vpop.f32.mrf.mxu0
      %v622 = vpop.f32.mrf.mxu0
      %623 = vdwg.mxu0
      %v624 = vmax.f32 %v523, 0.0
      %v625 = vmax.f32 %v526, 0.0
      %v626 = vmax.f32 %v531, 0.0
      %v627 = vmax.f32 %v534, 0.0
      %v628 = vmax.f32 %v539, 0.0
      %v629 = vmax.f32 %v542, 0.0
      %v630 = vmax.f32 %v547, 0.0
      %v631 = vmax.f32 %v550, 0.0
      %v632 = vmax.f32 %v555, 0.0
      %v633 = vmax.f32 %v558, 0.0
      %v634 = vmax.f32 %v563, 0.0
      %v635 = vmax.f32 %v566, 0.0
      %v636 = vmax.f32 %v571, 0.0
      %v637 = vmax.f32 %v574, 0.0
      %v638 = vmax.f32 %v579, 0.0
      %v639 = vmax.f32 %v582, 0.0
      %v640 = vmax.f32 %v587, 0.0
      %v641 = vmax.f32 %v590, 0.0
      %v642 = vmax.f32 %v595, 0.0
      %v643 = vmax.f32 %v598, 0.0
      %v644 = vmax.f32 %v603, 0.0
      %v645 = vmax.f32 %v606, 0.0
      %v646 = vmax.f32 %v611, 0.0
      %v647 = vmax.f32 %v614, 0.0
      %v648 = vmax.f32 %v619, 0.0
      %v649 = vld [vmem:[%s296] sm:$0xf]
      %v650 = vld [vmem:[%s296 + $0x4] sm:$0xf]
      %v651 = vld [vmem:[%s296 + $0x8] sm:$0xf]
      %v652 = vld [vmem:[%s296 + $0xc] sm:$0xf]
      %v653 = vld [vmem:[%s296 + $0x10] sm:$0xf]
      %v654 = vld [vmem:[%s296 + $0x14] sm:$0xf]
      %v655 = vld [vmem:[%s296 + $0x18] sm:$0xf]
      %v656 = vld [vmem:[%s296 + $0x1c] sm:$0xf]
      %v657 = vld [vmem:[%s296 + $0x20] sm:$0xf]
      %v658 = vld [vmem:[%s296 + $0x24] sm:$0xf]
      %v659 = vld [vmem:[%s296 + $0x28] sm:$0xf]
      %v660 = vld [vmem:[%s296 + $0x2c] sm:$0xf]
      %v661 = vld [vmem:[%s296 + $0x30] sm:$0xf]
      %v662 = vld [vmem:[%s296 + $0x34] sm:$0xf]
      %v663 = vld [vmem:[%s296 + $0x38] sm:$0xf]
      %v664 = vld [vmem:[%s296 + $0x3c] sm:$0xf]
      %v665 = vld [vmem:[%s296 + $0x40] sm:$0xf]
      %v666 = vld [vmem:[%s296 + $0x44] sm:$0xf]
      %v667 = vld [vmem:[%s296 + $0x48] sm:$0xf]
      %v668 = vld [vmem:[%s296 + $0x4c] sm:$0xf]
      %v669 = vld [vmem:[%s296 + $0x50] sm:$0xf]
      %v670 = vld [vmem:[%s296 + $0x54] sm:$0xf]
      %v671 = vld [vmem:[%s296 + $0x58] sm:$0xf]
      %v672 = vld [vmem:[%s296 + $0x5c] sm:$0xf]
      %v673 = vld [vmem:[%s296 + $0x60] sm:$0x3]
      %v699 = vunpack.c.l.b16 %v649
      %v700 = vunpack.c.l.b16 %v650
      %v701 = vunpack.c.l.b16 %v651
      %v702 = vunpack.c.l.b16 %v652
      %v703 = vunpack.c.l.b16 %v653
      %v704 = vunpack.c.l.b16 %v654
      %v705 = vunpack.c.l.b16 %v655
      %v706 = vunpack.c.l.b16 %v656
      %v707 = vunpack.c.l.b16 %v657
      %v708 = vunpack.c.l.b16 %v658
      %v709 = vunpack.c.l.b16 %v659
      %v710 = vunpack.c.l.b16 %v660
      %v711 = vunpack.c.l.b16 %v661
      %v712 = vunpack.c.l.b16 %v662
      %v713 = vunpack.c.l.b16 %v663
      %v714 = vunpack.c.l.b16 %v664
      %v715 = vunpack.c.l.b16 %v665
      %v716 = vunpack.c.l.b16 %v666
      %v717 = vunpack.c.l.b16 %v667
      %v718 = vunpack.c.l.b16 %v668
      %v719 = vunpack.c.l.b16 %v669
      %v720 = vunpack.c.l.b16 %v670
      %v721 = vunpack.c.l.b16 %v671
      %v722 = vunpack.c.l.b16 %v672
      %v723 = vunpack.c.l.b16 %v673
      %v724 = vpack.c.b16 %v700, %v699
      %v725 = vpack.c.b16 %v702, %v701
      %v726 = vpack.c.b16 %v704, %v703
      %v727 = vpack.c.b16 %v706, %v705
      %v728 = vpack.c.b16 %v708, %v707
      %v729 = vpack.c.b16 %v710, %v709
      %v730 = vpack.c.b16 %v712, %v711
      %v731 = vpack.c.b16 %v714, %v713
      %v732 = vpack.c.b16 %v716, %v715
      %v733 = vpack.c.b16 %v718, %v717
      %v734 = vpack.c.b16 %v720, %v719
      %v735 = vpack.c.b16 %v722, %v721
      %v736 = vpack.c.b16 %v723, %v723
      %v738 = vsel %vm448, %v724, 0
      %v741 = vsel %vm448, %v725, 0
      %v744 = vsel %vm448, %v726, 0
      %v747 = vsel %vm448, %v727, 0
      %v750 = vsel %vm448, %v728, 0
      %v753 = vsel %vm448, %v729, 0
      %v756 = vsel %vm448, %v730, 0
      %v759 = vsel %vm448, %v731, 0
      %v762 = vsel %vm448, %v732, 0
      %v765 = vsel %vm448, %v733, 0
      %v768 = vsel %vm448, %v734, 0
      %v771 = vsel %vm448, %v735, 0
      %v774 = vsel %vm448, %v736, 0
      %776 = vmatprep.subr.bf16.mxu0 0
      %777 = vmatpush1.bf16.msra.mxu0 0
      %778 = vmatprep.subr.bf16.mxu0 0
      %779 = vmatpush1.bf16.msra.mxu0 0
      %780 = vmatprep.subr.bf16.mxu0 0
      %781 = vmatpush1.bf16.msra.mxu0 0
      %782 = vmatprep.subr.bf16.mxu0 0
      %783 = vmatpush1.bf16.msra.mxu0 %v442
      %784 = vmatprep.subr.bf16.mxu0 0
      %785 = vmatpush1.bf16.msra.mxu0 %v441
      %786 = vmatprep.subr.bf16.mxu0 0
      %787 = vmatpush1.bf16.msra.mxu0 %v440
      %788 = vmatprep.subr.bf16.mxu0 0
      %789 = vmatpush1.bf16.msra.mxu0 %v439
      %790 = vmatprep.subr.bf16.mxu0 0
      %791 = vmatpush1.bf16.msra.mxu0 %v438
      %792 = vmatprep.subr.bf16.mxu0 0
      %793 = vmatpush2.bf16.msra.mxu0 0
      %794 = vmatprep.subr.bf16.mxu0 0
      %795 = vmatpush2.bf16.msra.mxu0 0
      %796 = vmatprep.subr.bf16.mxu0 0
      %797 = vmatpush2.bf16.msra.mxu0 0
      %798 = vmatprep.subr.bf16.mxu0 0
      %799 = vmatpush2.bf16.msra.mxu0 0
      %800 = vmatprep.subr.bf16.mxu0 0
      %801 = vmatpush2.bf16.msra.mxu0 0
      %802 = vmatprep.subr.bf16.mxu0 0
      %803 = vmatpush2.bf16.msra.mxu0 0
      %804 = vmatprep.subr.bf16.mxu0 0
      %805 = vmatpush2.bf16.msra.mxu0 0
      %806 = vmatprep.subr.bf16.mxu0 0
      %807 = vmatpush2.bf16.msra.mxu0 0
      %808 = vmatprep.mubr.bf16.mxu0 0
      %809 = vmatmul.mubr.bf16.gmra.mxu0 %v738
      %v810 = vpop.f32.mrf.mxu0
      %v811 = vadd.f32 %v353, %v810
      %v812 = vpop.f32.mrf.mxu0
      %v813 = vpop.f32.mrf.mxu0
      %v814 = vadd.f32 %v353, %v813
      %v815 = vpop.f32.mrf.mxu0
      %816 = vmatprep.mubr.bf16.mxu0 0
      %817 = vmatmul.mubr.bf16.gmra.mxu0 %v741
      %v818 = vpop.f32.mrf.mxu0
      %v819 = vadd.f32 %v353, %v818
      %v820 = vpop.f32.mrf.mxu0
      %v821 = vpop.f32.mrf.mxu0
      %v822 = vadd.f32 %v353, %v821
      %v823 = vpop.f32.mrf.mxu0
      %824 = vmatprep.mubr.bf16.mxu0 0
      %825 = vmatmul.mubr.bf16.gmra.mxu0 %v744
      %v826 = vpop.f32.mrf.mxu0
      %v827 = vadd.f32 %v353, %v826
      %v828 = vpop.f32.mrf.mxu0
      %v829 = vpop.f32.mrf.mxu0
      %v830 = vadd.f32 %v353, %v829
      %v831 = vpop.f32.mrf.mxu0
      %832 = vmatprep.mubr.bf16.mxu0 0
      %833 = vmatmul.mubr.bf16.gmra.mxu0 %v747
      %v834 = vpop.f32.mrf.mxu0
      %v835 = vadd.f32 %v353, %v834
      %v836 = vpop.f32.mrf.mxu0
      %v837 = vpop.f32.mrf.mxu0
      %v838 = vadd.f32 %v353, %v837
      %v839 = vpop.f32.mrf.mxu0
      %840 = vmatprep.mubr.bf16.mxu0 0
      %841 = vmatmul.mubr.bf16.gmra.mxu0 %v750
      %v842 = vpop.f32.mrf.mxu0
      %v843 = vadd.f32 %v353, %v842
      %v844 = vpop.f32.mrf.mxu0
      %v845 = vpop.f32.mrf.mxu0
      %v846 = vadd.f32 %v353, %v845
      %v847 = vpop.f32.mrf.mxu0
      %848 = vmatprep.mubr.bf16.mxu0 0
      %849 = vmatmul.mubr.bf16.gmra.mxu0 %v753
      %v850 = vpop.f32.mrf.mxu0
      %v851 = vadd.f32 %v353, %v850
      %v852 = vpop.f32.mrf.mxu0
      %v853 = vpop.f32.mrf.mxu0
      %v854 = vadd.f32 %v353, %v853
      %v855 = vpop.f32.mrf.mxu0
      %856 = vmatprep.mubr.bf16.mxu0 0
      %857 = vmatmul.mubr.bf16.gmra.mxu0 %v756
      %v858 = vpop.f32.mrf.mxu0
      %v859 = vadd.f32 %v353, %v858
      %v860 = vpop.f32.mrf.mxu0
      %v861 = vpop.f32.mrf.mxu0
      %v862 = vadd.f32 %v353, %v861
      %v863 = vpop.f32.mrf.mxu0
      %864 = vmatprep.mubr.bf16.mxu0 0
      %865 = vmatmul.mubr.bf16.gmra.mxu0 %v759
      %v866 = vpop.f32.mrf.mxu0
      %v867 = vadd.f32 %v353, %v866
      %v868 = vpop.f32.mrf.mxu0
      %v869 = vpop.f32.mrf.mxu0
      %v870 = vadd.f32 %v353, %v869
      %v871 = vpop.f32.mrf.mxu0
      %872 = vmatprep.mubr.bf16.mxu0 0
      %873 = vmatmul.mubr.bf16.gmra.mxu0 %v762
      %v874 = vpop.f32.mrf.mxu0
      %v875 = vadd.f32 %v353, %v874
      %v876 = vpop.f32.mrf.mxu0
      %v877 = vpop.f32.mrf.mxu0
      %v878 = vadd.f32 %v353, %v877
      %v879 = vpop.f32.mrf.mxu0
      %880 = vmatprep.mubr.bf16.mxu0 0
      %881 = vmatmul.mubr.bf16.gmra.mxu0 %v765
      %v882 = vpop.f32.mrf.mxu0
      %v883 = vadd.f32 %v353, %v882
      %v884 = vpop.f32.mrf.mxu0
      %v885 = vpop.f32.mrf.mxu0
      %v886 = vadd.f32 %v353, %v885
      %v887 = vpop.f32.mrf.mxu0
      %888 = vmatprep.mubr.bf16.mxu0 0
      %889 = vmatmul.mubr.bf16.gmra.mxu0 %v768
      %v890 = vpop.f32.mrf.mxu0
      %v891 = vadd.f32 %v353, %v890
      %v892 = vpop.f32.mrf.mxu0
      %v893 = vpop.f32.mrf.mxu0
      %v894 = vadd.f32 %v353, %v893
      %v895 = vpop.f32.mrf.mxu0
      %896 = vmatprep.mubr.bf16.mxu0 0
      %897 = vmatmul.mubr.bf16.gmra.mxu0 %v771
      %v898 = vpop.f32.mrf.mxu0
      %v899 = vadd.f32 %v353, %v898
      %v900 = vpop.f32.mrf.mxu0
      %v901 = vpop.f32.mrf.mxu0
      %v902 = vadd.f32 %v353, %v901
      %v903 = vpop.f32.mrf.mxu0
      %904 = vmatprep.mubr.bf16.mxu0 0
      %905 = vmatmul.mubr.bf16.gmra.mxu0 %v774
      %v906 = vpop.f32.mrf.mxu0
      %v907 = vadd.f32 %v353, %v906
      %v908 = vpop.f32.mrf.mxu0
      %v909 = vpop.f32.mrf.mxu0
      %v910 = vpop.f32.mrf.mxu0
      %911 = vdwg.mxu0
      %v912 = vmax.f32 %v811, 0.0
      %v913 = vmax.f32 %v814, 0.0
      %v914 = vmax.f32 %v819, 0.0
      %v915 = vmax.f32 %v822, 0.0
      %v916 = vmax.f32 %v827, 0.0
      %v917 = vmax.f32 %v830, 0.0
      %v918 = vmax.f32 %v835, 0.0
      %v919 = vmax.f32 %v838, 0.0
      %v920 = vmax.f32 %v843, 0.0
      %v921 = vmax.f32 %v846, 0.0
      %v922 = vmax.f32 %v851, 0.0
      %v923 = vmax.f32 %v854, 0.0
      %v924 = vmax.f32 %v859, 0.0
      %v925 = vmax.f32 %v862, 0.0
      %v926 = vmax.f32 %v867, 0.0
      %v927 = vmax.f32 %v870, 0.0
      %v928 = vmax.f32 %v875, 0.0
      %v929 = vmax.f32 %v878, 0.0
      %v930 = vmax.f32 %v883, 0.0
      %v931 = vmax.f32 %v886, 0.0
      %v932 = vmax.f32 %v891, 0.0
      %v933 = vmax.f32 %v894, 0.0
      %v934 = vmax.f32 %v899, 0.0
      %v935 = vmax.f32 %v902, 0.0
      %v936 = vmax.f32 %v907, 0.0
      %v937 = vmax.f32 %v624, %v912
      %v938 = vmax.f32 %v625, %v913
      %v939 = vmax.f32 %v626, %v914
      %v940 = vmax.f32 %v627, %v915
      %v941 = vmax.f32 %v628, %v916
      %v942 = vmax.f32 %v629, %v917
      %v943 = vmax.f32 %v630, %v918
      %v944 = vmax.f32 %v631, %v919
      %v945 = vmax.f32 %v632, %v920
      %v946 = vmax.f32 %v633, %v921
      %v947 = vmax.f32 %v634, %v922
      %v948 = vmax.f32 %v635, %v923
      %v949 = vmax.f32 %v636, %v924
      %v950 = vmax.f32 %v637, %v925
      %v951 = vmax.f32 %v638, %v926
      %v952 = vmax.f32 %v639, %v927
      %v953 = vmax.f32 %v640, %v928
      %v954 = vmax.f32 %v641, %v929
      %v955 = vmax.f32 %v642, %v930
      %v956 = vmax.f32 %v643, %v931
      %v957 = vmax.f32 %v644, %v932
      %v958 = vmax.f32 %v645, %v933
      %v959 = vmax.f32 %v646, %v934
      %v960 = vmax.f32 %v647, %v935
      %v961 = vmax.f32 %v648, %v936
      %v962 = vld [vmem:[%s301] sm:$0xf]
      %v963 = vld [vmem:[%s301 + $0x4] sm:$0xf]
      %v964 = vld [vmem:[%s301 + $0x8] sm:$0xf]
      %v965 = vld [vmem:[%s301 + $0xc] sm:$0xf]
      %v966 = vld [vmem:[%s301 + $0x10] sm:$0xf]
      %v967 = vld [vmem:[%s301 + $0x14] sm:$0xf]
      %v968 = vld [vmem:[%s301 + $0x18] sm:$0xf]
      %v969 = vld [vmem:[%s301 + $0x1c] sm:$0xf]
      %v970 = vld [vmem:[%s301 + $0x20] sm:$0xf]
      %v971 = vld [vmem:[%s301 + $0x24] sm:$0xf]
      %v972 = vld [vmem:[%s301 + $0x28] sm:$0xf]
      %v973 = vld [vmem:[%s301 + $0x2c] sm:$0xf]
      %v974 = vld [vmem:[%s301 + $0x30] sm:$0xf]
      %v975 = vld [vmem:[%s301 + $0x34] sm:$0xf]
      %v976 = vld [vmem:[%s301 + $0x38] sm:$0xf]
      %v977 = vld [vmem:[%s301 + $0x3c] sm:$0xf]
      %v978 = vld [vmem:[%s301 + $0x40] sm:$0xf]
      %v979 = vld [vmem:[%s301 + $0x44] sm:$0xf]
      %v980 = vld [vmem:[%s301 + $0x48] sm:$0xf]
      %v981 = vld [vmem:[%s301 + $0x4c] sm:$0xf]
      %v982 = vld [vmem:[%s301 + $0x50] sm:$0xf]
      %v983 = vld [vmem:[%s301 + $0x54] sm:$0xf]
      %v984 = vld [vmem:[%s301 + $0x58] sm:$0xf]
      %v985 = vld [vmem:[%s301 + $0x5c] sm:$0xf]
      %v986 = vld [vmem:[%s301 + $0x60] sm:$0x3]
      %v1012 = vunpack.c.l.b16 %v962
      %v1013 = vunpack.c.l.b16 %v963
      %v1014 = vunpack.c.l.b16 %v964
      %v1015 = vunpack.c.l.b16 %v965
      %v1016 = vunpack.c.l.b16 %v966
      %v1017 = vunpack.c.l.b16 %v967
      %v1018 = vunpack.c.l.b16 %v968
      %v1019 = vunpack.c.l.b16 %v969
      %v1020 = vunpack.c.l.b16 %v970
      %v1021 = vunpack.c.l.b16 %v971
      %v1022 = vunpack.c.l.b16 %v972
      %v1023 = vunpack.c.l.b16 %v973
      %v1024 = vunpack.c.l.b16 %v974
      %v1025 = vunpack.c.l.b16 %v975
      %v1026 = vunpack.c.l.b16 %v976
      %v1027 = vunpack.c.l.b16 %v977
      %v1028 = vunpack.c.l.b16 %v978
      %v1029 = vunpack.c.l.b16 %v979
      %v1030 = vunpack.c.l.b16 %v980
      %v1031 = vunpack.c.l.b16 %v981
      %v1032 = vunpack.c.l.b16 %v982
      %v1033 = vunpack.c.l.b16 %v983
      %v1034 = vunpack.c.l.b16 %v984
      %v1035 = vunpack.c.l.b16 %v985
      %v1036 = vunpack.c.l.b16 %v986
      %v1037 = vpack.c.b16 %v1013, %v1012
      %v1038 = vpack.c.b16 %v1015, %v1014
      %v1039 = vpack.c.b16 %v1017, %v1016
      %v1040 = vpack.c.b16 %v1019, %v1018
      %v1041 = vpack.c.b16 %v1021, %v1020
      %v1042 = vpack.c.b16 %v1023, %v1022
      %v1043 = vpack.c.b16 %v1025, %v1024
      %v1044 = vpack.c.b16 %v1027, %v1026
      %v1045 = vpack.c.b16 %v1029, %v1028
      %v1046 = vpack.c.b16 %v1031, %v1030
      %v1047 = vpack.c.b16 %v1033, %v1032
      %v1048 = vpack.c.b16 %v1035, %v1034
      %v1049 = vpack.c.b16 %v1036, %v1036
      %v1051 = vsel %vm448, %v1037, 0
      %v1054 = vsel %vm448, %v1038, 0
      %v1057 = vsel %vm448, %v1039, 0
      %v1060 = vsel %vm448, %v1040, 0
      %v1063 = vsel %vm448, %v1041, 0
      %v1066 = vsel %vm448, %v1042, 0
      %v1069 = vsel %vm448, %v1043, 0
      %v1072 = vsel %vm448, %v1044, 0
      %v1075 = vsel %vm448, %v1045, 0
      %v1078 = vsel %vm448, %v1046, 0
      %v1081 = vsel %vm448, %v1047, 0
      %v1084 = vsel %vm448, %v1048, 0
      %v1087 = vsel %vm448, %v1049, 0
      %1089 = vmatprep.subr.bf16.mxu0 0
      %1090 = vmatpush1.bf16.msra.mxu0 0
      %1091 = vmatprep.subr.bf16.mxu0 0
      %1092 = vmatpush1.bf16.msra.mxu0 0
      %1093 = vmatprep.subr.bf16.mxu0 0
      %1094 = vmatpush1.bf16.msra.mxu0 0
      %1095 = vmatprep.subr.bf16.mxu0 0
      %1096 = vmatpush1.bf16.msra.mxu0 %v442
      %1097 = vmatprep.subr.bf16.mxu0 0
      %1098 = vmatpush1.bf16.msra.mxu0 %v441
      %1099 = vmatprep.subr.bf16.mxu0 0
      %1100 = vmatpush1.bf16.msra.mxu0 %v440
      %1101 = vmatprep.subr.bf16.mxu0 0
      %1102 = vmatpush1.bf16.msra.mxu0 %v439
      %1103 = vmatprep.subr.bf16.mxu0 0
      %1104 = vmatpush1.bf16.msra.mxu0 %v438
      %1105 = vmatprep.subr.bf16.mxu0 0
      %1106 = vmatpush2.bf16.msra.mxu0 0
      %1107 = vmatprep.subr.bf16.mxu0 0
      %1108 = vmatpush2.bf16.msra.mxu0 0
      %1109 = vmatprep.subr.bf16.mxu0 0
      %1110 = vmatpush2.bf16.msra.mxu0 0
      %1111 = vmatprep.subr.bf16.mxu0 0
      %1112 = vmatpush2.bf16.msra.mxu0 0
      %1113 = vmatprep.subr.bf16.mxu0 0
      %1114 = vmatpush2.bf16.msra.mxu0 0
      %1115 = vmatprep.subr.bf16.mxu0 0
      %1116 = vmatpush2.bf16.msra.mxu0 0
      %1117 = vmatprep.subr.bf16.mxu0 0
      %1118 = vmatpush2.bf16.msra.mxu0 0
      %1119 = vmatprep.subr.bf16.mxu0 0
      %1120 = vmatpush2.bf16.msra.mxu0 0
      %1121 = vmatprep.mubr.bf16.mxu0 0
      %1122 = vmatmul.mubr.bf16.gmra.mxu0 %v1051
      %v1123 = vpop.f32.mrf.mxu0
      %v1124 = vadd.f32 %v353, %v1123
      %v1125 = vpop.f32.mrf.mxu0
      %v1126 = vpop.f32.mrf.mxu0
      %v1127 = vadd.f32 %v353, %v1126
      %v1128 = vpop.f32.mrf.mxu0
      %1129 = vmatprep.mubr.bf16.mxu0 0
      %1130 = vmatmul.mubr.bf16.gmra.mxu0 %v1054
      %v1131 = vpop.f32.mrf.mxu0
      %v1132 = vadd.f32 %v353, %v1131
      %v1133 = vpop.f32.mrf.mxu0
      %v1134 = vpop.f32.mrf.mxu0
      %v1135 = vadd.f32 %v353, %v1134
      %v1136 = vpop.f32.mrf.mxu0
      %1137 = vmatprep.mubr.bf16.mxu0 0
      %1138 = vmatmul.mubr.bf16.gmra.mxu0 %v1057
      %v1139 = vpop.f32.mrf.mxu0
      %v1140 = vadd.f32 %v353, %v1139
      %v1141 = vpop.f32.mrf.mxu0
      %v1142 = vpop.f32.mrf.mxu0
      %v1143 = vadd.f32 %v353, %v1142
      %v1144 = vpop.f32.mrf.mxu0
      %1145 = vmatprep.mubr.bf16.mxu0 0
      %1146 = vmatmul.mubr.bf16.gmra.mxu0 %v1060
      %v1147 = vpop.f32.mrf.mxu0
      %v1148 = vadd.f32 %v353, %v1147
      %v1149 = vpop.f32.mrf.mxu0
      %v1150 = vpop.f32.mrf.mxu0
      %v1151 = vadd.f32 %v353, %v1150
      %v1152 = vpop.f32.mrf.mxu0
      %1153 = vmatprep.mubr.bf16.mxu0 0
      %1154 = vmatmul.mubr.bf16.gmra.mxu0 %v1063
      %v1155 = vpop.f32.mrf.mxu0
      %v1156 = vadd.f32 %v353, %v1155
      %v1157 = vpop.f32.mrf.mxu0
      %v1158 = vpop.f32.mrf.mxu0
      %v1159 = vadd.f32 %v353, %v1158
      %v1160 = vpop.f32.mrf.mxu0
      %1161 = vmatprep.mubr.bf16.mxu0 0
      %1162 = vmatmul.mubr.bf16.gmra.mxu0 %v1066
      %v1163 = vpop.f32.mrf.mxu0
      %v1164 = vadd.f32 %v353, %v1163
      %v1165 = vpop.f32.mrf.mxu0
      %v1166 = vpop.f32.mrf.mxu0
      %v1167 = vadd.f32 %v353, %v1166
      %v1168 = vpop.f32.mrf.mxu0
      %1169 = vmatprep.mubr.bf16.mxu0 0
      %1170 = vmatmul.mubr.bf16.gmra.mxu0 %v1069
      %v1171 = vpop.f32.mrf.mxu0
      %v1172 = vadd.f32 %v353, %v1171
      %v1173 = vpop.f32.mrf.mxu0
      %v1174 = vpop.f32.mrf.mxu0
      %v1175 = vadd.f32 %v353, %v1174
      %v1176 = vpop.f32.mrf.mxu0
      %1177 = vmatprep.mubr.bf16.mxu0 0
      %1178 = vmatmul.mubr.bf16.gmra.mxu0 %v1072
      %v1179 = vpop.f32.mrf.mxu0
      %v1180 = vadd.f32 %v353, %v1179
      %v1181 = vpop.f32.mrf.mxu0
      %v1182 = vpop.f32.mrf.mxu0
      %v1183 = vadd.f32 %v353, %v1182
      %v1184 = vpop.f32.mrf.mxu0
      %1185 = vmatprep.mubr.bf16.mxu0 0
      %1186 = vmatmul.mubr.bf16.gmra.mxu0 %v1075
      %v1187 = vpop.f32.mrf.mxu0
      %v1188 = vadd.f32 %v353, %v1187
      %v1189 = vpop.f32.mrf.mxu0
      %v1190 = vpop.f32.mrf.mxu0
      %v1191 = vadd.f32 %v353, %v1190
      %v1192 = vpop.f32.mrf.mxu0
      %1193 = vmatprep.mubr.bf16.mxu0 0
      %1194 = vmatmul.mubr.bf16.gmra.mxu0 %v1078
      %v1195 = vpop.f32.mrf.mxu0
      %v1196 = vadd.f32 %v353, %v1195
      %v1197 = vpop.f32.mrf.mxu0
      %v1198 = vpop.f32.mrf.mxu0
      %v1199 = vadd.f32 %v353, %v1198
      %v1200 = vpop.f32.mrf.mxu0
      %1201 = vmatprep.mubr.bf16.mxu0 0
      %1202 = vmatmul.mubr.bf16.gmra.mxu0 %v1081
      %v1203 = vpop.f32.mrf.mxu0
      %v1204 = vadd.f32 %v353, %v1203
      %v1205 = vpop.f32.mrf.mxu0
      %v1206 = vpop.f32.mrf.mxu0
      %v1207 = vadd.f32 %v353, %v1206
      %v1208 = vpop.f32.mrf.mxu0
      %1209 = vmatprep.mubr.bf16.mxu0 0
      %1210 = vmatmul.mubr.bf16.gmra.mxu0 %v1084
      %v1211 = vpop.f32.mrf.mxu0
      %v1212 = vadd.f32 %v353, %v1211
      %v1213 = vpop.f32.mrf.mxu0
      %v1214 = vpop.f32.mrf.mxu0
      %v1215 = vadd.f32 %v353, %v1214
      %v1216 = vpop.f32.mrf.mxu0
      %1217 = vmatprep.mubr.bf16.mxu0 0
      %1218 = vmatmul.mubr.bf16.gmra.mxu0 %v1087
      %v1219 = vpop.f32.mrf.mxu0
      %v1220 = vadd.f32 %v353, %v1219
      %v1221 = vpop.f32.mrf.mxu0
      %v1222 = vpop.f32.mrf.mxu0
      %v1223 = vpop.f32.mrf.mxu0
      %1224 = vdwg.mxu0
      %v1225 = vmax.f32 %v1124, 0.0
      %v1226 = vmax.f32 %v1127, 0.0
      %v1227 = vmax.f32 %v1132, 0.0
      %v1228 = vmax.f32 %v1135, 0.0
      %v1229 = vmax.f32 %v1140, 0.0
      %v1230 = vmax.f32 %v1143, 0.0
      %v1231 = vmax.f32 %v1148, 0.0
      %v1232 = vmax.f32 %v1151, 0.0
      %v1233 = vmax.f32 %v1156, 0.0
      %v1234 = vmax.f32 %v1159, 0.0
      %v1235 = vmax.f32 %v1164, 0.0
      %v1236 = vmax.f32 %v1167, 0.0
      %v1237 = vmax.f32 %v1172, 0.0
      %v1238 = vmax.f32 %v1175, 0.0
      %v1239 = vmax.f32 %v1180, 0.0
      %v1240 = vmax.f32 %v1183, 0.0
      %v1241 = vmax.f32 %v1188, 0.0
      %v1242 = vmax.f32 %v1191, 0.0
      %v1243 = vmax.f32 %v1196, 0.0
      %v1244 = vmax.f32 %v1199, 0.0
      %v1245 = vmax.f32 %v1204, 0.0
      %v1246 = vmax.f32 %v1207, 0.0
      %v1247 = vmax.f32 %v1212, 0.0
      %v1248 = vmax.f32 %v1215, 0.0
      %v1249 = vmax.f32 %v1220, 0.0
      %v1250 = vld [vmem:[%s306] sm:$0xf]
      %v1251 = vld [vmem:[%s306 + $0x4] sm:$0xf]
      %v1252 = vld [vmem:[%s306 + $0x8] sm:$0xf]
      %v1253 = vld [vmem:[%s306 + $0xc] sm:$0xf]
      %v1254 = vld [vmem:[%s306 + $0x10] sm:$0xf]
      %v1255 = vld [vmem:[%s306 + $0x14] sm:$0xf]
      %v1256 = vld [vmem:[%s306 + $0x18] sm:$0xf]
      %v1257 = vld [vmem:[%s306 + $0x1c] sm:$0xf]
      %v1258 = vld [vmem:[%s306 + $0x20] sm:$0xf]
      %v1259 = vld [vmem:[%s306 + $0x24] sm:$0xf]
      %v1260 = vld [vmem:[%s306 + $0x28] sm:$0xf]
      %v1261 = vld [vmem:[%s306 + $0x2c] sm:$0xf]
      %v1262 = vld [vmem:[%s306 + $0x30] sm:$0xf]
      %v1263 = vld [vmem:[%s306 + $0x34] sm:$0xf]
      %v1264 = vld [vmem:[%s306 + $0x38] sm:$0xf]
      %v1265 = vld [vmem:[%s306 + $0x3c] sm:$0xf]
      %v1266 = vld [vmem:[%s306 + $0x40] sm:$0xf]
      %v1267 = vld [vmem:[%s306 + $0x44] sm:$0xf]
      %v1268 = vld [vmem:[%s306 + $0x48] sm:$0xf]
      %v1269 = vld [vmem:[%s306 + $0x4c] sm:$0xf]
      %v1270 = vld [vmem:[%s306 + $0x50] sm:$0xf]
      %v1271 = vld [vmem:[%s306 + $0x54] sm:$0xf]
      %v1272 = vld [vmem:[%s306 + $0x58] sm:$0xf]
      %v1273 = vld [vmem:[%s306 + $0x5c] sm:$0xf]
      %v1274 = vld [vmem:[%s306 + $0x60] sm:$0x3]
      %v1300 = vunpack.c.l.b16 %v1250
      %v1301 = vunpack.c.l.b16 %v1251
      %v1302 = vunpack.c.l.b16 %v1252
      %v1303 = vunpack.c.l.b16 %v1253
      %v1304 = vunpack.c.l.b16 %v1254
      %v1305 = vunpack.c.l.b16 %v1255
      %v1306 = vunpack.c.l.b16 %v1256
      %v1307 = vunpack.c.l.b16 %v1257
      %v1308 = vunpack.c.l.b16 %v1258
      %v1309 = vunpack.c.l.b16 %v1259
      %v1310 = vunpack.c.l.b16 %v1260
      %v1311 = vunpack.c.l.b16 %v1261
      %v1312 = vunpack.c.l.b16 %v1262
      %v1313 = vunpack.c.l.b16 %v1263
      %v1314 = vunpack.c.l.b16 %v1264
      %v1315 = vunpack.c.l.b16 %v1265
      %v1316 = vunpack.c.l.b16 %v1266
      %v1317 = vunpack.c.l.b16 %v1267
      %v1318 = vunpack.c.l.b16 %v1268
      %v1319 = vunpack.c.l.b16 %v1269
      %v1320 = vunpack.c.l.b16 %v1270
      %v1321 = vunpack.c.l.b16 %v1271
      %v1322 = vunpack.c.l.b16 %v1272
      %v1323 = vunpack.c.l.b16 %v1273
      %v1324 = vunpack.c.l.b16 %v1274
      %v1325 = vpack.c.b16 %v1301, %v1300
      %v1326 = vpack.c.b16 %v1303, %v1302
      %v1327 = vpack.c.b16 %v1305, %v1304
      %v1328 = vpack.c.b16 %v1307, %v1306
      %v1329 = vpack.c.b16 %v1309, %v1308
      %v1330 = vpack.c.b16 %v1311, %v1310
      %v1331 = vpack.c.b16 %v1313, %v1312
      %v1332 = vpack.c.b16 %v1315, %v1314
      %v1333 = vpack.c.b16 %v1317, %v1316
      %v1334 = vpack.c.b16 %v1319, %v1318
      %v1335 = vpack.c.b16 %v1321, %v1320
      %v1336 = vpack.c.b16 %v1323, %v1322
      %v1337 = vpack.c.b16 %v1324, %v1324
      %v1339 = vsel %vm448, %v1325, 0
      %v1342 = vsel %vm448, %v1326, 0
      %v1345 = vsel %vm448, %v1327, 0
      %v1348 = vsel %vm448, %v1328, 0
      %v1351 = vsel %vm448, %v1329, 0
      %v1354 = vsel %vm448, %v1330, 0
      %v1357 = vsel %vm448, %v1331, 0
      %v1360 = vsel %vm448, %v1332, 0
      %v1363 = vsel %vm448, %v1333, 0
      %v1366 = vsel %vm448, %v1334, 0
      %v1369 = vsel %vm448, %v1335, 0
      %v1372 = vsel %vm448, %v1336, 0
      %v1375 = vsel %vm448, %v1337, 0
      %1377 = vmatprep.subr.bf16.mxu0 0
      %1378 = vmatpush1.bf16.msra.mxu0 0
      %1379 = vmatprep.subr.bf16.mxu0 0
      %1380 = vmatpush1.bf16.msra.mxu0 0
      %1381 = vmatprep.subr.bf16.mxu0 0
      %1382 = vmatpush1.bf16.msra.mxu0 0
      %1383 = vmatprep.subr.bf16.mxu0 0
      %1384 = vmatpush1.bf16.msra.mxu0 %v442
      %1385 = vmatprep.subr.bf16.mxu0 0
      %1386 = vmatpush1.bf16.msra.mxu0 %v441
      %1387 = vmatprep.subr.bf16.mxu0 0
      %1388 = vmatpush1.bf16.msra.mxu0 %v440
      %1389 = vmatprep.subr.bf16.mxu0 0
      %1390 = vmatpush1.bf16.msra.mxu0 %v439
      %1391 = vmatprep.subr.bf16.mxu0 0
      %1392 = vmatpush1.bf16.msra.mxu0 %v438
      %1393 = vmatprep.subr.bf16.mxu0 0
      %1394 = vmatpush2.bf16.msra.mxu0 0
      %1395 = vmatprep.subr.bf16.mxu0 0
      %1396 = vmatpush2.bf16.msra.mxu0 0
      %1397 = vmatprep.subr.bf16.mxu0 0
      %1398 = vmatpush2.bf16.msra.mxu0 0
      %1399 = vmatprep.subr.bf16.mxu0 0
      %1400 = vmatpush2.bf16.msra.mxu0 0
      %1401 = vmatprep.subr.bf16.mxu0 0
      %1402 = vmatpush2.bf16.msra.mxu0 0
      %1403 = vmatprep.subr.bf16.mxu0 0
      %1404 = vmatpush2.bf16.msra.mxu0 0
      %1405 = vmatprep.subr.bf16.mxu0 0
      %1406 = vmatpush2.bf16.msra.mxu0 0
      %1407 = vmatprep.subr.bf16.mxu0 0
      %1408 = vmatpush2.bf16.msra.mxu0 0
      %1409 = vmatprep.mubr.bf16.mxu0 0
      %1410 = vmatmul.mubr.bf16.gmra.mxu0 %v1339
      %v1411 = vpop.f32.mrf.mxu0
      %v1412 = vadd.f32 %v353, %v1411
      %v1413 = vpop.f32.mrf.mxu0
      %v1414 = vpop.f32.mrf.mxu0
      %v1415 = vadd.f32 %v353, %v1414
      %v1416 = vpop.f32.mrf.mxu0
      %1417 = vmatprep.mubr.bf16.mxu0 0
      %1418 = vmatmul.mubr.bf16.gmra.mxu0 %v1342
      %v1419 = vpop.f32.mrf.mxu0
      %v1420 = vadd.f32 %v353, %v1419
      %v1421 = vpop.f32.mrf.mxu0
      %v1422 = vpop.f32.mrf.mxu0
      %v1423 = vadd.f32 %v353, %v1422
      %v1424 = vpop.f32.mrf.mxu0
      %1425 = vmatprep.mubr.bf16.mxu0 0
      %1426 = vmatmul.mubr.bf16.gmra.mxu0 %v1345
      %v1427 = vpop.f32.mrf.mxu0
      %v1428 = vadd.f32 %v353, %v1427
      %v1429 = vpop.f32.mrf.mxu0
      %v1430 = vpop.f32.mrf.mxu0
      %v1431 = vadd.f32 %v353, %v1430
      %v1432 = vpop.f32.mrf.mxu0
      %1433 = vmatprep.mubr.bf16.mxu0 0
      %1434 = vmatmul.mubr.bf16.gmra.mxu0 %v1348
      %v1435 = vpop.f32.mrf.mxu0
      %v1436 = vadd.f32 %v353, %v1435
      %v1437 = vpop.f32.mrf.mxu0
      %v1438 = vpop.f32.mrf.mxu0
      %v1439 = vadd.f32 %v353, %v1438
      %v1440 = vpop.f32.mrf.mxu0
      %1441 = vmatprep.mubr.bf16.mxu0 0
      %1442 = vmatmul.mubr.bf16.gmra.mxu0 %v1351
      %v1443 = vpop.f32.mrf.mxu0
      %v1444 = vadd.f32 %v353, %v1443
      %v1445 = vpop.f32.mrf.mxu0
      %v1446 = vpop.f32.mrf.mxu0
      %v1447 = vadd.f32 %v353, %v1446
      %v1448 = vpop.f32.mrf.mxu0
      %1449 = vmatprep.mubr.bf16.mxu0 0
      %1450 = vmatmul.mubr.bf16.gmra.mxu0 %v1354
      %v1451 = vpop.f32.mrf.mxu0
      %v1452 = vadd.f32 %v353, %v1451
      %v1453 = vpop.f32.mrf.mxu0
      %v1454 = vpop.f32.mrf.mxu0
      %v1455 = vadd.f32 %v353, %v1454
      %v1456 = vpop.f32.mrf.mxu0
      %1457 = vmatprep.mubr.bf16.mxu0 0
      %1458 = vmatmul.mubr.bf16.gmra.mxu0 %v1357
      %v1459 = vpop.f32.mrf.mxu0
      %v1460 = vadd.f32 %v353, %v1459
      %v1461 = vpop.f32.mrf.mxu0
      %v1462 = vpop.f32.mrf.mxu0
      %v1463 = vadd.f32 %v353, %v1462
      %v1464 = vpop.f32.mrf.mxu0
      %1465 = vmatprep.mubr.bf16.mxu0 0
      %1466 = vmatmul.mubr.bf16.gmra.mxu0 %v1360
      %v1467 = vpop.f32.mrf.mxu0
      %v1468 = vadd.f32 %v353, %v1467
      %v1469 = vpop.f32.mrf.mxu0
      %v1470 = vpop.f32.mrf.mxu0
      %v1471 = vadd.f32 %v353, %v1470
      %v1472 = vpop.f32.mrf.mxu0
      %1473 = vmatprep.mubr.bf16.mxu0 0
      %1474 = vmatmul.mubr.bf16.gmra.mxu0 %v1363
      %v1475 = vpop.f32.mrf.mxu0
      %v1476 = vadd.f32 %v353, %v1475
      %v1477 = vpop.f32.mrf.mxu0
      %v1478 = vpop.f32.mrf.mxu0
      %v1479 = vadd.f32 %v353, %v1478
      %v1480 = vpop.f32.mrf.mxu0
      %1481 = vmatprep.mubr.bf16.mxu0 0
      %1482 = vmatmul.mubr.bf16.gmra.mxu0 %v1366
      %v1483 = vpop.f32.mrf.mxu0
      %v1484 = vadd.f32 %v353, %v1483
      %v1485 = vpop.f32.mrf.mxu0
      %v1486 = vpop.f32.mrf.mxu0
      %v1487 = vadd.f32 %v353, %v1486
      %v1488 = vpop.f32.mrf.mxu0
      %1489 = vmatprep.mubr.bf16.mxu0 0
      %1490 = vmatmul.mubr.bf16.gmra.mxu0 %v1369
      %v1491 = vpop.f32.mrf.mxu0
      %v1492 = vadd.f32 %v353, %v1491
      %v1493 = vpop.f32.mrf.mxu0
      %v1494 = vpop.f32.mrf.mxu0
      %v1495 = vadd.f32 %v353, %v1494
      %v1496 = vpop.f32.mrf.mxu0
      %1497 = vmatprep.mubr.bf16.mxu0 0
      %1498 = vmatmul.mubr.bf16.gmra.mxu0 %v1372
      %v1499 = vpop.f32.mrf.mxu0
      %v1500 = vadd.f32 %v353, %v1499
      %v1501 = vpop.f32.mrf.mxu0
      %v1502 = vpop.f32.mrf.mxu0
      %v1503 = vadd.f32 %v353, %v1502
      %v1504 = vpop.f32.mrf.mxu0
      %1505 = vmatprep.mubr.bf16.mxu0 0
      %1506 = vmatmul.mubr.bf16.gmra.mxu0 %v1375
      %v1507 = vpop.f32.mrf.mxu0
      %v1508 = vadd.f32 %v353, %v1507
      %v1509 = vpop.f32.mrf.mxu0
      %v1510 = vpop.f32.mrf.mxu0
      %v1511 = vpop.f32.mrf.mxu0
      %1512 = vdwg.mxu0
      %v1513 = vmax.f32 %v1412, 0.0
      %v1514 = vmax.f32 %v1415, 0.0
      %v1515 = vmax.f32 %v1420, 0.0
      %v1516 = vmax.f32 %v1423, 0.0
      %v1517 = vmax.f32 %v1428, 0.0
      %v1518 = vmax.f32 %v1431, 0.0
      %v1519 = vmax.f32 %v1436, 0.0
      %v1520 = vmax.f32 %v1439, 0.0
      %v1521 = vmax.f32 %v1444, 0.0
      %v1522 = vmax.f32 %v1447, 0.0
      %v1523 = vmax.f32 %v1452, 0.0
      %v1524 = vmax.f32 %v1455, 0.0
      %v1525 = vmax.f32 %v1460, 0.0
      %v1526 = vmax.f32 %v1463, 0.0
      %v1527 = vmax.f32 %v1468, 0.0
      %v1528 = vmax.f32 %v1471, 0.0
      %v1529 = vmax.f32 %v1476, 0.0
      %v1530 = vmax.f32 %v1479, 0.0
      %v1531 = vmax.f32 %v1484, 0.0
      %v1532 = vmax.f32 %v1487, 0.0
      %v1533 = vmax.f32 %v1492, 0.0
      %v1534 = vmax.f32 %v1495, 0.0
      %v1535 = vmax.f32 %v1500, 0.0
      %v1536 = vmax.f32 %v1503, 0.0
      %v1537 = vmax.f32 %v1508, 0.0
      %v1538 = vmax.f32 %v1225, %v1513
      %v1539 = vmax.f32 %v1226, %v1514
      %v1540 = vmax.f32 %v1227, %v1515
      %v1541 = vmax.f32 %v1228, %v1516
      %v1542 = vmax.f32 %v1229, %v1517
      %v1543 = vmax.f32 %v1230, %v1518
      %v1544 = vmax.f32 %v1231, %v1519
      %v1545 = vmax.f32 %v1232, %v1520
      %v1546 = vmax.f32 %v1233, %v1521
      %v1547 = vmax.f32 %v1234, %v1522
      %v1548 = vmax.f32 %v1235, %v1523
      %v1549 = vmax.f32 %v1236, %v1524
      %v1550 = vmax.f32 %v1237, %v1525
      %v1551 = vmax.f32 %v1238, %v1526
      %v1552 = vmax.f32 %v1239, %v1527
      %v1553 = vmax.f32 %v1240, %v1528
      %v1554 = vmax.f32 %v1241, %v1529
      %v1555 = vmax.f32 %v1242, %v1530
      %v1556 = vmax.f32 %v1243, %v1531
      %v1557 = vmax.f32 %v1244, %v1532
      %v1558 = vmax.f32 %v1245, %v1533
      %v1559 = vmax.f32 %v1246, %v1534
      %v1560 = vmax.f32 %v1247, %v1535
      %v1561 = vmax.f32 %v1248, %v1536
      %v1562 = vmax.f32 %v1249, %v1537
      %v1563 = vmax.f32 %v937, %v1538
      %v1564 = vmax.f32 %v938, %v1539
      %v1565 = vmax.f32 %v939, %v1540
      %v1566 = vmax.f32 %v940, %v1541
      %v1567 = vmax.f32 %v941, %v1542
      %v1568 = vmax.f32 %v942, %v1543
      %v1569 = vmax.f32 %v943, %v1544
      %v1570 = vmax.f32 %v944, %v1545
      %v1571 = vmax.f32 %v945, %v1546
      %v1572 = vmax.f32 %v946, %v1547
      %v1573 = vmax.f32 %v947, %v1548
      %v1574 = vmax.f32 %v948, %v1549
      %v1575 = vmax.f32 %v949, %v1550
      %v1576 = vmax.f32 %v950, %v1551
      %v1577 = vmax.f32 %v951, %v1552
      %v1578 = vmax.f32 %v952, %v1553
      %v1579 = vmax.f32 %v953, %v1554
      %v1580 = vmax.f32 %v954, %v1555
      %v1581 = vmax.f32 %v955, %v1556
      %v1582 = vmax.f32 %v956, %v1557
      %v1583 = vmax.f32 %v957, %v1558
      %v1584 = vmax.f32 %v958, %v1559
      %v1585 = vmax.f32 %v959, %v1560
      %v1586 = vmax.f32 %v960, %v1561
      %v1587 = vmax.f32 %v961, %v1562
      %v1588 = vpack.c.bf16 %v1564, %v1563
      %v1589 = vpack.c.bf16 %v1566, %v1565
      %v1590 = vpack.c.bf16 %v1568, %v1567
      %v1591 = vpack.c.bf16 %v1570, %v1569
      %v1592 = vpack.c.bf16 %v1572, %v1571
      %v1593 = vpack.c.bf16 %v1574, %v1573
      %v1594 = vpack.c.bf16 %v1576, %v1575
      %v1595 = vpack.c.bf16 %v1578, %v1577
      %v1596 = vpack.c.bf16 %v1580, %v1579
      %v1597 = vpack.c.bf16 %v1582, %v1581
      %v1598 = vpack.c.bf16 %v1584, %v1583
      %v1599 = vpack.c.bf16 %v1586, %v1585
      %v1600 = vpack.c.bf16 %v1587, %v1587
      %v1614 = vunpack.c.l.b16 %v1588
      %v1615 = vunpack.c.h.b16 %v1588
      %v1616 = vunpack.c.l.b16 %v1589
      %v1617 = vunpack.c.h.b16 %v1589
      %v1618 = vunpack.c.l.b16 %v1590
      %v1619 = vunpack.c.h.b16 %v1590
      %v1620 = vunpack.c.l.b16 %v1591
      %v1621 = vunpack.c.h.b16 %v1591
      %v1622 = vunpack.c.l.b16 %v1592
      %v1623 = vunpack.c.h.b16 %v1592
      %v1624 = vunpack.c.l.b16 %v1593
      %v1625 = vunpack.c.h.b16 %v1593
      %v1626 = vunpack.c.l.b16 %v1594
      %v1627 = vunpack.c.h.b16 %v1594
      %v1628 = vunpack.c.l.b16 %v1595
      %v1629 = vunpack.c.h.b16 %v1595
      %v1630 = vunpack.c.l.b16 %v1596
      %v1631 = vunpack.c.h.b16 %v1596
      %v1632 = vunpack.c.l.b16 %v1597
      %v1633 = vunpack.c.h.b16 %v1597
      %v1634 = vunpack.c.l.b16 %v1598
      %v1635 = vunpack.c.h.b16 %v1598
      %v1636 = vunpack.c.l.b16 %v1599
      %v1637 = vunpack.c.h.b16 %v1599
      %v1638 = vunpack.c.l.b16 %v1600
      %v1639 = vpack.c.b16 %v1614, %v1614
      %v1640 = vpack.c.b16 %v1615, %v1615
      %v1641 = vpack.c.b16 %v1616, %v1616
      %v1642 = vpack.c.b16 %v1617, %v1617
      %v1643 = vpack.c.b16 %v1618, %v1618
      %v1644 = vpack.c.b16 %v1619, %v1619
      %v1645 = vpack.c.b16 %v1620, %v1620
      %v1646 = vpack.c.b16 %v1621, %v1621
      %v1647 = vpack.c.b16 %v1622, %v1622
      %v1648 = vpack.c.b16 %v1623, %v1623
      %v1649 = vpack.c.b16 %v1624, %v1624
      %v1650 = vpack.c.b16 %v1625, %v1625
      %v1651 = vpack.c.b16 %v1626, %v1626
      %v1652 = vpack.c.b16 %v1627, %v1627
      %v1653 = vpack.c.b16 %v1628, %v1628
      %v1654 = vpack.c.b16 %v1629, %v1629
      %v1655 = vpack.c.b16 %v1630, %v1630
      %v1656 = vpack.c.b16 %v1631, %v1631
      %v1657 = vpack.c.b16 %v1632, %v1632
      %v1658 = vpack.c.b16 %v1633, %v1633
      %v1659 = vpack.c.b16 %v1634, %v1634
      %v1660 = vpack.c.b16 %v1635, %v1635
      %v1661 = vpack.c.b16 %v1636, %v1636
      %v1662 = vpack.c.b16 %v1637, %v1637
      %v1663 = vpack.c.b16 %v1638, %v1638
      %1689 = vst [vmem:[%s311] sm:$0xf] %v1639
      %1690 = vst [vmem:[%s311 + $0x4] sm:$0xf] %v1640
      %1691 = vst [vmem:[%s311 + $0x8] sm:$0xf] %v1641
      %1692 = vst [vmem:[%s311 + $0xc] sm:$0xf] %v1642
      %1693 = vst [vmem:[%s311 + $0x10] sm:$0xf] %v1643
      %1694 = vst [vmem:[%s311 + $0x14] sm:$0xf] %v1644
      %1695 = vst [vmem:[%s311 + $0x18] sm:$0xf] %v1645
      %1696 = vst [vmem:[%s311 + $0x1c] sm:$0xf] %v1646
      %1697 = vst [vmem:[%s311 + $0x20] sm:$0xf] %v1647
      %1698 = vst [vmem:[%s311 + $0x24] sm:$0xf] %v1648
      %1699 = vst [vmem:[%s311 + $0x28] sm:$0xf] %v1649
      %1700 = vst [vmem:[%s311 + $0x2c] sm:$0xf] %v1650
      %1701 = vst [vmem:[%s311 + $0x30] sm:$0xf] %v1651
      %1702 = vst [vmem:[%s311 + $0x34] sm:$0xf] %v1652
      %1703 = vst [vmem:[%s311 + $0x38] sm:$0xf] %v1653
      %1704 = vst [vmem:[%s311 + $0x3c] sm:$0xf] %v1654
      %1705 = vst [vmem:[%s311 + $0x40] sm:$0xf] %v1655
      %1706 = vst [vmem:[%s311 + $0x44] sm:$0xf] %v1656
      %1707 = vst [vmem:[%s311 + $0x48] sm:$0xf] %v1657
      %1708 = vst [vmem:[%s311 + $0x4c] sm:$0xf] %v1658
      %1709 = vst [vmem:[%s311 + $0x50] sm:$0xf] %v1659
      %1710 = vst [vmem:[%s311 + $0x54] sm:$0xf] %v1660
      %1711 = vst [vmem:[%s311 + $0x58] sm:$0xf] %v1661
      %1712 = vst [vmem:[%s311 + $0x5c] sm:$0xf] %v1662
      %1713 = vst [vmem:[%s311 + $0x60] sm:$0x3] %v1663
      %p1714 = scmp.lt.s32.totalorder %s17, 1
      %s1715 = scalar_select %p1714, %s17, 1
      %s1716 = smul.addr %s1715, 25
      %s1717 = smul.addr %s1716, 4
      %s1718 = scalar_lea.vmem %s6, %s1717
      // Predicated region
      $region45: #{net_forward.3} parent=43 // pred_check
        %p1719 = pneg %p181
      $region46: #{net_forward.3} parent=43 // pred_check_branch
        %1721 = sbr.rel (%p1719) target = $region48
      $region47: #{net_forward.3} parent=43 // pred_region
        _
      $region48: #{net_forward.3} parent=43 // pred_fallthru
        _
    $region44: #{net_forward.3} parent=5 // pred_fallthru
      _
    %p1722 = scmp.le.s32.totalorder 2, %s12
    // Predicated region
    $region49: #{net_forward.3} parent=5 // pred_check
      %p1723 = pneg %p1722
    $region50: #{net_forward.3} parent=5 // pred_check_branch
      %1725 = sbr.rel (%p1723) target = $region52
    $region51: #{net_forward.3} parent=5 // pred_region
      %s1726 = ssub.s32 %s12, 2
      // Predicated region
      $region53: #{net_forward.3} parent=51 // pred_check
        %p1727 = pneg %p187
      $region54: #{net_forward.3} parent=51 // pred_check_branch
        %1729 = sbr.rel (%p1727) target = $region56
      $region55: #{net_forward.3} parent=51 // pred_region
        %p1730 = scmp.lt.s32.totalorder %s18, 1
        %s1731 = scalar_select %p1730, %s18, 1
        %s1732 = smul.addr %s1731, 25
        %s1733 = smul.addr %s1732, 4
        %s1734 = scalar_lea.vmem %s6, %s1733
      $region56: #{net_forward.3} parent=51 // pred_fallthru
        _
    $region52: #{net_forward.3} parent=5 // pred_fallthru
      _
  $region6: #{net_forward.3} parent=0 // loop_footer
    %s16 = sadd.s32 1, %s12
  $region7: #{net_forward.3} parent=0 // loop_footer_branch
    %11 = sbr.rel target = $region3
  $region8: #{net_forward.3} parent=0 // loop_exit
    _

// kernel: net_forward.4
$region0: #{net_forward.4}
  #allocation0 [shape = 'u32[]', space=smem, size = 0x4, offset = 0x4, fixed_abs, tag = 'smem constant byte address 0x4 - core index']
  #allocation1 [shape = 'u32[144,128]{1,0:T(1,128)}', space=vmem, size = 0x12000, scoped, tag = 'internal scratch']
  %s0 = inlined_call_operand.vmem [shape: bf16[2,25,160], index: 0, kind: input, shape index: {}]
  %s1 = inlined_call_operand.vmem [shape: bf16[2,25,160], index: 1, kind: input, shape index: {}]
  %s2 = inlined_call_operand.vmem [shape: bf16[2,25,160], index: 2, kind: input, shape index: {}]
  %s3 = inlined_call_operand.vmem [shape: bf16[2,25,160], index: 3, kind: input, shape index: {}]
  %s4 = inlined_call_operand.vmem [shape: bf16[160,128], index: 4, kind: input, shape index: {}]
  %s5 = inlined_call_operand.vmem [shape: f32[1,128], index: 5, kind: input, shape index: {}]
  %s6 = inlined_call_operand.vmem [shape: bf16[2,25,128], index: 6, kind: output, shape index: {}]
  %s7 = sld [smem:[#allocation0]]
  $region57: #{net_forward.4} parent=0
    _
  %s9 = ssub.s32 1, %s7
  %s10 = scalar_select 0, %s9, %s7
  loop: start=0, step=1, limit=4
  $region2: #{net_forward.4} parent=0 // loop_pre_header
    _
  $region3: #{net_forward.4} parent=0 // loop_header
    %s12 = sphi 0, %s16
    %p13 = scmp.ge.s32.totalorder %s12, 4
    %s22 = sphi 0, %s24
    %s25 = sphi 0, %s22
    %s26 = sphi 0, %s25
    %s42 = sphi 0, %s26
    %s48 = sphi 0, %s50
    %s51 = sphi 0, %s48
    %s52 = sphi 0, %s51
    %s68 = sphi 0, %s52
    %s74 = sphi 0, %s76
    %s77 = sphi 0, %s74
    %s78 = sphi 0, %s77
    %s94 = sphi 0, %s78
    %s100 = sphi 0, %s102
    %s103 = sphi 0, %s100
    %s104 = sphi 0, %s103
    %s120 = sphi 0, %s104
    %s124 = sphi 0, %s124
    %s126 = sphi 0, %s124
    %s127 = sphi 0, %s126
    %s141 = sphi 0, %s127
    %s145 = sphi 0, %s145
    %s147 = sphi 0, %s145
    %s148 = sphi 0, %s147
    %s162 = sphi 0, %s148
    %s168 = sphi 0, %s170
    %s171 = sphi 0, %s168
    %s172 = sphi 0, %s171
    %s188 = sphi 0, %s172
  $region4: #{net_forward.4} parent=0 // loop_header_branch
    %15 = sbr.rel (%p13) target = $region8
  $region5: #{net_forward.4} parent=0 // loop_body
    %s17 = ssub.s32 %s12, 1
    %s18 = ssub.s32 %s12, 2
    %s19 = sadd.s32 %s12, 1
    %s20 = ssub.s32 %s12, %s19
    %p21 = scmp.eq.s32.totalorder %s20, 0
    %s23 = sadd.s32 %s22, 1
    %s24 = scalar_select %p21, %s22, %s23
    %p27 = pneg %p21
    %p28 = scmp.eq.s32.totalorder %s12, 1
    %p29 = por %p27, %p28
    %p30 = scmp.ne.s32.totalorder %s22, %s25
    %p31 = scmp.eq.s32.totalorder %s12, 0
    %p32 = por %p30, %p31
    %p33 = scmp.ne.s32.totalorder %s22, %s25
    %p34 = scmp.eq.s32.totalorder %s17, 1
    %p35 = por %p33, %p34
    %p36 = scmp.ne.s32.totalorder %s25, %s26
    %p37 = scmp.eq.s32.totalorder %s17, 0
    %p38 = por %p36, %p37
    %p39 = scmp.ne.s32.totalorder %s25, %s26
    %p40 = scmp.eq.s32.totalorder %s18, 1
    %p41 = por %p39, %p40
    %p43 = scmp.ne.s32.totalorder %s26, %s42
    %p44 = scmp.eq.s32.totalorder %s18, 0
    %p45 = por %p43, %p44
    %s46 = ssub.s32 %s12, %s19
    %p47 = scmp.eq.s32.totalorder %s46, 0
    %s49 = sadd.s32 %s48, 1
    %s50 = scalar_select %p47, %s48, %s49
    %p53 = pneg %p47
    %p54 = scmp.eq.s32.totalorder %s12, 1
    %p55 = por %p53, %p54
    %p56 = scmp.ne.s32.totalorder %s48, %s51
    %p57 = scmp.eq.s32.totalorder %s12, 0
    %p58 = por %p56, %p57
    %p59 = scmp.ne.s32.totalorder %s48, %s51
    %p60 = scmp.eq.s32.totalorder %s17, 1
    %p61 = por %p59, %p60
    %p62 = scmp.ne.s32.totalorder %s51, %s52
    %p63 = scmp.eq.s32.totalorder %s17, 0
    %p64 = por %p62, %p63
    %p65 = scmp.ne.s32.totalorder %s51, %s52
    %p66 = scmp.eq.s32.totalorder %s18, 1
    %p67 = por %p65, %p66
    %p69 = scmp.ne.s32.totalorder %s52, %s68
    %p70 = scmp.eq.s32.totalorder %s18, 0
    %p71 = por %p69, %p70
    %s72 = ssub.s32 %s12, %s19
    %p73 = scmp.eq.s32.totalorder %s72, 0
    %s75 = sadd.s32 %s74, 1
    %s76 = scalar_select %p73, %s74, %s75
    %p79 = pneg %p73
    %p80 = scmp.eq.s32.totalorder %s12, 1
    %p81 = por %p79, %p80
    %p82 = scmp.ne.s32.totalorder %s74, %s77
    %p83 = scmp.eq.s32.totalorder %s12, 0
    %p84 = por %p82, %p83
    %p85 = scmp.ne.s32.totalorder %s74, %s77
    %p86 = scmp.eq.s32.totalorder %s17, 1
    %p87 = por %p85, %p86
    %p88 = scmp.ne.s32.totalorder %s77, %s78
    %p89 = scmp.eq.s32.totalorder %s17, 0
    %p90 = por %p88, %p89
    %p91 = scmp.ne.s32.totalorder %s77, %s78
    %p92 = scmp.eq.s32.totalorder %s18, 1
    %p93 = por %p91, %p92
    %p95 = scmp.ne.s32.totalorder %s78, %s94
    %p96 = scmp.eq.s32.totalorder %s18, 0
    %p97 = por %p95, %p96
    %s98 = ssub.s32 %s12, %s19
    %p99 = scmp.eq.s32.totalorder %s98, 0
    %s101 = sadd.s32 %s100, 1
    %s102 = scalar_select %p99, %s100, %s101
    %p105 = pneg %p99
    %p106 = scmp.eq.s32.totalorder %s12, 1
    %p107 = por %p105, %p106
    %p108 = scmp.ne.s32.totalorder %s100, %s103
    %p109 = scmp.eq.s32.totalorder %s12, 0
    %p110 = por %p108, %p109
    %p111 = scmp.ne.s32.totalorder %s100, %s103
    %p112 = scmp.eq.s32.totalorder %s17, 1
    %p113 = por %p111, %p112
    %p114 = scmp.ne.s32.totalorder %s103, %s104
    %p115 = scmp.eq.s32.totalorder %s17, 0
    %p116 = por %p114, %p115
    %p117 = scmp.ne.s32.totalorder %s103, %s104
    %p118 = scmp.eq.s32.totalorder %s18, 1
    %p119 = por %p117, %p118
    %p121 = scmp.ne.s32.totalorder %s104, %s120
    %p122 = scmp.eq.s32.totalorder %s18, 0
    %p123 = por %p121, %p122
    %s125 = sadd.s32 %s124, 1
    %p128 = scmp.eq.s32.totalorder %s12, 1
    %p129 = scmp.ne.s32.totalorder %s124, %s126
    %p130 = scmp.eq.s32.totalorder %s12, 0
    %p131 = por %p129, %p130
    %p132 = scmp.ne.s32.totalorder %s124, %s126
    %p133 = scmp.eq.s32.totalorder %s17, 1
    %p134 = por %p132, %p133
    %p135 = scmp.ne.s32.totalorder %s126, %s127
    %p136 = scmp.eq.s32.totalorder %s17, 0
    %p137 = por %p135, %p136
    %p138 = scmp.ne.s32.totalorder %s126, %s127
    %p139 = scmp.eq.s32.totalorder %s18, 1
    %p140 = por %p138, %p139
    %p142 = scmp.ne.s32.totalorder %s127, %s141
    %p143 = scmp.eq.s32.totalorder %s18, 0
    %p144 = por %p142, %p143
    %s146 = sadd.s32 %s145, 1
    %p149 = scmp.eq.s32.totalorder %s12, 1
    %p150 = scmp.ne.s32.totalorder %s145, %s147
    %p151 = scmp.eq.s32.totalorder %s12, 0
    %p152 = por %p150, %p151
    %p153 = scmp.ne.s32.totalorder %s145, %s147
    %p154 = scmp.eq.s32.totalorder %s17, 1
    %p155 = por %p153, %p154
    %p156 = scmp.ne.s32.totalorder %s147, %s148
    %p157 = scmp.eq.s32.totalorder %s17, 0
    %p158 = por %p156, %p157
    %p159 = scmp.ne.s32.totalorder %s147, %s148
    %p160 = scmp.eq.s32.totalorder %s18, 1
    %p161 = por %p159, %p160
    %p163 = scmp.ne.s32.totalorder %s148, %s162
    %p164 = scmp.eq.s32.totalorder %s18, 0
    %p165 = por %p163, %p164
    %s166 = ssub.s32 %s12, %s19
    %p167 = scmp.eq.s32.totalorder %s166, 0
    %s169 = sadd.s32 %s168, 1
    %s170 = scalar_select %p167, %s168, %s169
    %p173 = pneg %p167
    %p174 = scmp.eq.s32.totalorder %s12, 1
    %p175 = por %p173, %p174
    %p176 = scmp.ne.s32.totalorder %s168, %s171
    %p177 = scmp.eq.s32.totalorder %s12, 0
    %p178 = por %p176, %p177
    %p179 = scmp.ne.s32.totalorder %s168, %s171
    %p180 = scmp.eq.s32.totalorder %s17, 1
    %p181 = por %p179, %p180
    %p182 = scmp.ne.s32.totalorder %s171, %s172
    %p183 = scmp.eq.s32.totalorder %s17, 0
    %p184 = por %p182, %p183
    %p185 = scmp.ne.s32.totalorder %s171, %s172
    %p186 = scmp.eq.s32.totalorder %s18, 1
    %p187 = por %p185, %p186
    %p189 = scmp.ne.s32.totalorder %s172, %s188
    %p190 = scmp.eq.s32.totalorder %s18, 0
    %p191 = por %p189, %p190
    %p192 = scmp.le.s32.totalorder 1, %s12
    %p193 = scmp.lt.s32.totalorder %s12, 3
    %p194 = pnand %p192, %p193
    %p195 = pneg %p194
    // Predicated region
    $region9: #{net_forward.4} parent=5 // pred_check
      _
    $region10: #{net_forward.4} parent=5 // pred_check_branch
      %197 = sbr.rel (%p194) target = $region12
    $region11: #{net_forward.4} parent=5 // pred_region
      %s198 = ssub.s32 %s12, 1
      // Predicated region
      $region13: #{net_forward.4} parent=11 // pred_check
        %p199 = pneg %p137
      $region14: #{net_forward.4} parent=11 // pred_check_branch
        %201 = sbr.rel (%p199) target = $region16
      $region15: #{net_forward.4} parent=11 // pred_region
        _
      $region16: #{net_forward.4} parent=11 // pred_fallthru
        _
      // Predicated region
      $region17: #{net_forward.4} parent=11 // pred_check
        %p202 = pneg %p158
      $region18: #{net_forward.4} parent=11 // pred_check_branch
        %204 = sbr.rel (%p202) target = $region20
      $region19: #{net_forward.4} parent=11 // pred_region
        _
      $region20: #{net_forward.4} parent=11 // pred_fallthru
        _
    $region12: #{net_forward.4} parent=5 // pred_fallthru
      _
    %p205 = scmp.lt.s32.totalorder %s12, 2
    // Predicated region
    $region21: #{net_forward.4} parent=5 // pred_check
      %p206 = pneg %p205
    $region22: #{net_forward.4} parent=5 // pred_check_branch
      %208 = sbr.rel (%p206) target = $region24
    $region23: #{net_forward.4} parent=5 // pred_region
      // Predicated region
      $region25: #{net_forward.4} parent=23 // pred_check
        %p209 = pneg %p32
      $region26: #{net_forward.4} parent=23 // pred_check_branch
        %211 = sbr.rel (%p209) target = $region28
      $region27: #{net_forward.4} parent=23 // pred_region
        %p212 = scmp.lt.s32.totalorder %s12, 1
        %s213 = scalar_select %p212, %s12, 1
        %s214 = smul.addr %s213, 8
        %s215 = smul.addr %s214, 4
        %s216 = scalar_lea.vmem %s0, %s215
      $region28: #{net_forward.4} parent=23 // pred_fallthru
        _
      // Predicated region
      $region29: #{net_forward.4} parent=23 // pred_check
        %p217 = pneg %p58
      $region30: #{net_forward.4} parent=23 // pred_check_branch
        %219 = sbr.rel (%p217) target = $region32
      $region31: #{net_forward.4} parent=23 // pred_region
        %p220 = scmp.lt.s32.totalorder %s12, 1
        %s221 = scalar_select %p220, %s12, 1
        %s222 = smul.addr %s221, 8
        %s223 = smul.addr %s222, 4
        %s224 = scalar_lea.vmem %s1, %s223
      $region32: #{net_forward.4} parent=23 // pred_fallthru
        _
      // Predicated region
      $region33: #{net_forward.4} parent=23 // pred_check
        %p225 = pneg %p84
      $region34: #{net_forward.4} parent=23 // pred_check_branch
        %227 = sbr.rel (%p225) target = $region36
      $region35: #{net_forward.4} parent=23 // pred_region
        %p228 = scmp.lt.s32.totalorder %s12, 1
        %s229 = scalar_select %p228, %s12, 1
        %s230 = smul.addr %s229, 8
        %s231 = smul.addr %s230, 4
        %s232 = scalar_lea.vmem %s2, %s231
      $region36: #{net_forward.4} parent=23 // pred_fallthru
        _
      // Predicated region
      $region37: #{net_forward.4} parent=23 // pred_check
        %p233 = pneg %p110
      $region38: #{net_forward.4} parent=23 // pred_check_branch
        %235 = sbr.rel (%p233) target = $region40
      $region39: #{net_forward.4} parent=23 // pred_region
        %p236 = scmp.lt.s32.totalorder %s12, 1
        %s237 = scalar_select %p236, %s12, 1
        %s238 = smul.addr %s237, 8
        %s239 = smul.addr %s238, 4
        %s240 = scalar_lea.vmem %s3, %s239
      $region40: #{net_forward.4} parent=23 // pred_fallthru
        _
    $region24: #{net_forward.4} parent=5 // pred_fallthru
      _
    %p241 = scmp.le.s32.totalorder 1, %s12
    %p242 = scmp.lt.s32.totalorder %s12, 3
    %p243 = pnand %p241, %p242
    %p244 = pneg %p243
    // Predicated region
    $region41: #{net_forward.4} parent=5 // pred_check
      _
    $region42: #{net_forward.4} parent=5 // pred_check_branch
      %246 = sbr.rel (%p243) target = $region44
    $region43: #{net_forward.4} parent=5 // pred_region
      %s247 = ssub.s32 %s12, 1
      %p248 = scmp.lt.s32.totalorder %s17, 1
      %s249 = scalar_select %p248, %s17, 1
      %s250 = smul.addr %s249, 8
      %s251 = smul.addr %s250, 4
      %s252 = scalar_lea.vmem %s0, %s251
      %p253 = pneg %p38
      %p254 = pneg %p35
      %p255 = scmp.lt.s32.totalorder %s17, 1
      %s256 = scalar_select %p255, %s17, 1
      %s257 = smul.addr %s256, 8
      %s258 = smul.addr %s257, 4
      %s259 = scalar_lea.vmem %s1, %s258
      %p260 = pneg %p64
      %p261 = pneg %p61
      %p262 = scmp.lt.s32.totalorder %s17, 1
      %s263 = scalar_select %p262, %s17, 1
      %s264 = smul.addr %s263, 8
      %s265 = smul.addr %s264, 4
      %s266 = scalar_lea.vmem %s2, %s265
      %p267 = pneg %p90
      %p268 = pneg %p87
      %p269 = scmp.lt.s32.totalorder %s17, 1
      %s270 = scalar_select %p269, %s17, 1
      %s271 = smul.addr %s270, 8
      %s272 = smul.addr %s271, 4
      %s273 = scalar_lea.vmem %s3, %s272
      %p274 = pneg %p116
      %p275 = pneg %p113
      %p276 = pneg %p137
      %p277 = pneg %p134
      %p278 = pneg %p158
      %p279 = pneg %p155
      %p280 = pneg %p184
      %p281 = pneg %p181
      %p282 = scmp.lt.s32.totalorder %s17, 1
      %s283 = scalar_select %p282, %s17, 1
      %s284 = smul.addr %s283, 4
      %s285 = smul.addr %s284, 4
      %s286 = scalar_lea.vmem %s6, %s285
      %p287 = scmp.lt.s32.totalorder %s17, 1
      %s288 = scalar_select %p287, %s17, 1
      %s289 = smul.addr %s288, 8
      %s290 = smul.addr %s289, 4
      %s291 = scalar_lea.vmem %s0, %s290
      %p292 = scmp.lt.s32.totalorder %s17, 1
      %s293 = scalar_select %p292, %s17, 1
      %s294 = smul.addr %s293, 8
      %s295 = smul.addr %s294, 4
      %s296 = scalar_lea.vmem %s1, %s295
      %p297 = scmp.lt.s32.totalorder %s17, 1
      %s298 = scalar_select %p297, %s17, 1
      %s299 = smul.addr %s298, 8
      %s300 = smul.addr %s299, 4
      %s301 = scalar_lea.vmem %s2, %s300
      %p302 = scmp.lt.s32.totalorder %s17, 1
      %s303 = scalar_select %p302, %s17, 1
      %s304 = smul.addr %s303, 8
      %s305 = smul.addr %s304, 4
      %s306 = scalar_lea.vmem %s3, %s305
      %p307 = scmp.lt.s32.totalorder %s17, 1
      %s308 = scalar_select %p307, %s17, 1
      %s309 = smul.addr %s308, 4
      %s310 = smul.addr %s309, 4
      %s311 = scalar_lea.vmem %s6, %s310
      %v313 = vld [vmem:[%s4] sm:$0xf]
      %v314 = vld [vmem:[%s4 + $0x4] sm:$0xf]
      %v315 = vld [vmem:[%s4 + $0x8] sm:$0xf]
      %v316 = vld [vmem:[%s4 + $0xc] sm:$0xf]
      %v317 = vld [vmem:[%s4 + $0x10] sm:$0xf]
      %v318 = vld [vmem:[%s4 + $0x14] sm:$0xf]
      %v319 = vld [vmem:[%s4 + $0x18] sm:$0xf]
      %v320 = vld [vmem:[%s4 + $0x1c] sm:$0xf]
      %v321 = vld [vmem:[%s4 + $0x20] sm:$0xf]
      %v322 = vld [vmem:[%s4 + $0x24] sm:$0xf]
      %v323 = vld [vmem:[%s4 + $0x28] sm:$0xf]
      %v324 = vld [vmem:[%s4 + $0x2c] sm:$0xf]
      %v325 = vld [vmem:[%s4 + $0x30] sm:$0xf]
      %v326 = vld [vmem:[%s4 + $0x34] sm:$0xf]
      %v327 = vld [vmem:[%s4 + $0x38] sm:$0xf]
      %v328 = vld [vmem:[%s4 + $0x3c] sm:$0xf]
      %v329 = vld [vmem:[%s4 + $0x40] sm:$0xf]
      %v330 = vld [vmem:[%s4 + $0x44] sm:$0xf]
      %v331 = vld [vmem:[%s4 + $0x48] sm:$0xf]
      %v332 = vld [vmem:[%s4 + $0x4c] sm:$0xf]
      %v333 = vld [vmem:[%s5] sm:$0x1]
      %v334 = vld [vmem:[%s291] sm:$0xff]
      %v335 = vld [vmem:[%s291 + $0x8] sm:$0xff]
      %v336 = vld [vmem:[%s291 + $0x10] sm:$0xff]
      %v337 = vld [vmem:[%s291 + $0x18] sm:$0x11]
      %v339 = vlaneseq
      %v340 = vshrl.u32 %v339, 7
      %v341 = vsub.s32 0, %v340
      %v342 = vrot.slane %v333, %v341
      %v348 = vunpack.c.l.b16 %v334
      %v349 = vunpack.c.h.b16 %v334
      %v350 = vunpack.c.l.b16 %v335
      %v351 = vunpack.c.h.b16 %v335
      %v352 = vunpack.c.l.b16 %v336
      %v353 = vunpack.c.h.b16 %v336
      %v354 = vunpack.c.l.b16 %v337
      %v355 = vunpack.c.h.b16 %v337
      %v356 = vpack.c.b16 %v350, %v348
      %v357 = vpack.c.b16 %v351, %v349
      %v358 = vpack.c.b16 %v354, %v352
      %v359 = vpack.c.b16 %v355, %v353
      %v382 = vunpack.c.l.b16 %v313
      %v383 = vunpack.c.l.b16 %v314
      %v384 = vunpack.c.l.b16 %v315
      %v385 = vunpack.c.l.b16 %v316
      %v386 = vunpack.c.l.b16 %v317
      %v387 = vunpack.c.l.b16 %v318
      %v388 = vunpack.c.l.b16 %v319
      %v389 = vunpack.c.l.b16 %v320
      %v390 = vunpack.c.l.b16 %v321
      %v391 = vunpack.c.l.b16 %v322
      %v392 = vunpack.c.l.b16 %v323
      %v393 = vunpack.c.l.b16 %v324
      %v394 = vunpack.c.l.b16 %v325
      %v395 = vunpack.c.l.b16 %v326
      %v396 = vunpack.c.l.b16 %v327
      %v397 = vunpack.c.l.b16 %v328
      %v398 = vunpack.c.l.b16 %v329
      %v399 = vunpack.c.l.b16 %v330
      %v400 = vunpack.c.l.b16 %v331
      %v401 = vunpack.c.l.b16 %v332
      %v402 = vpack.c.b16 %v383, %v382
      %v403 = vpack.c.b16 %v385, %v384
      %v404 = vpack.c.b16 %v387, %v386
      %v405 = vpack.c.b16 %v389, %v388
      %v406 = vpack.c.b16 %v391, %v390
      %v407 = vpack.c.b16 %v393, %v392
      %v408 = vpack.c.b16 %v395, %v394
      %v409 = vpack.c.b16 %v397, %v396
      %v410 = vpack.c.b16 %v399, %v398
      %v411 = vpack.c.b16 %v401, %v400
      %vm422 = vcmask 261120
      %v424 = vsel %vm422, %v357, 0
      %v427 = vsel %vm422, %v359, 0
      %429 = vmatprep.subr.bf16.mxu0 0
      %430 = vmatpush1.bf16.msra.mxu0 %v409
      %431 = vmatprep.subr.bf16.mxu0 0
      %432 = vmatpush1.bf16.msra.mxu0 %v408
      %433 = vmatprep.subr.bf16.mxu0 0
      %434 = vmatpush1.bf16.msra.mxu0 %v407
      %435 = vmatprep.subr.bf16.mxu0 0
      %436 = vmatpush1.bf16.msra.mxu0 %v406
      %437 = vmatprep.subr.bf16.mxu0 0
      %438 = vmatpush1.bf16.msra.mxu0 %v405
      %439 = vmatprep.subr.bf16.mxu0 0
      %440 = vmatpush1.bf16.msra.mxu0 %v404
      %441 = vmatprep.subr.bf16.mxu0 0
      %442 = vmatpush1.bf16.msra.mxu0 %v403
      %443 = vmatprep.subr.bf16.mxu0 0
      %444 = vmatpush1.bf16.msra.mxu0 %v402
      %445 = vmatprep.subr.bf16.mxu0 0
      %446 = vmatpush2.bf16.msra.mxu0 0
      %447 = vmatprep.subr.bf16.mxu0 0
      %448 = vmatpush2.bf16.msra.mxu0 0
      %449 = vmatprep.subr.bf16.mxu0 0
      %450 = vmatpush2.bf16.msra.mxu0 0
      %451 = vmatprep.subr.bf16.mxu0 0
      %452 = vmatpush2.bf16.msra.mxu0 0
      %453 = vmatprep.subr.bf16.mxu0 0
      %454 = vmatpush2.bf16.msra.mxu0 0
      %455 = vmatprep.subr.bf16.mxu0 0
      %456 = vmatpush2.bf16.msra.mxu0 0
      %457 = vmatprep.subr.bf16.mxu0 0
      %458 = vmatpush2.bf16.msra.mxu0 %v411
      %459 = vmatprep.subr.bf16.mxu0 0
      %460 = vmatpush2.bf16.msra.mxu0 %v410
      %461 = vmatprep.mubr.bf16.mxu0 %v424
      %462 = vmatmul.mubr.bf16.gmra.mxu0 %v356
      %v463 = vpop.f32.mrf.mxu0
      %v464 = vadd.f32 %v342, %v463
      %v465 = vpop.f32.mrf.mxu0
      %v466 = vpop.f32.mrf.mxu0
      %v467 = vadd.f32 %v342, %v466
      %v468 = vpop.f32.mrf.mxu0
      %469 = vmatprep.mubr.bf16.mxu0 %v427
      %470 = vmatmul.mubr.bf16.gmra.mxu0 %v358
      %v471 = vpop.f32.mrf.mxu0
      %v472 = vadd.f32 %v342, %v471
      %v473 = vpop.f32.mrf.mxu0
      %v474 = vpop.f32.mrf.mxu0
      %v475 = vadd.f32 %v342, %v474
      %v476 = vpop.f32.mrf.mxu0
      %477 = vdwg.mxu0
      %v478 = vmax.f32 %v464, 0.0
      %v479 = vmax.f32 %v467, 0.0
      %v480 = vmax.f32 %v472, 0.0
      %v481 = vmax.f32 %v475, 0.0
      %v482 = vld [vmem:[%s296] sm:$0xff]
      %v483 = vld [vmem:[%s296 + $0x8] sm:$0xff]
      %v484 = vld [vmem:[%s296 + $0x10] sm:$0xff]
      %v485 = vld [vmem:[%s296 + $0x18] sm:$0x11]
      %v490 = vunpack.c.l.b16 %v482
      %v491 = vunpack.c.h.b16 %v482
      %v492 = vunpack.c.l.b16 %v483
      %v493 = vunpack.c.h.b16 %v483
      %v494 = vunpack.c.l.b16 %v484
      %v495 = vunpack.c.h.b16 %v484
      %v496 = vunpack.c.l.b16 %v485
      %v497 = vunpack.c.h.b16 %v485
      %v498 = vpack.c.b16 %v492, %v490
      %v499 = vpack.c.b16 %v493, %v491
      %v500 = vpack.c.b16 %v496, %v494
      %v501 = vpack.c.b16 %v497, %v495
      %v505 = vsel %vm422, %v499, 0
      %v508 = vsel %vm422, %v501, 0
      %510 = vmatprep.subr.bf16.mxu0 0
      %511 = vmatpush1.bf16.msra.mxu0 %v409
      %512 = vmatprep.subr.bf16.mxu0 0
      %513 = vmatpush1.bf16.msra.mxu0 %v408
      %514 = vmatprep.subr.bf16.mxu0 0
      %515 = vmatpush1.bf16.msra.mxu0 %v407
      %516 = vmatprep.subr.bf16.mxu0 0
      %517 = vmatpush1.bf16.msra.mxu0 %v406
      %518 = vmatprep.subr.bf16.mxu0 0
      %519 = vmatpush1.bf16.msra.mxu0 %v405
      %520 = vmatprep.subr.bf16.mxu0 0
      %521 = vmatpush1.bf16.msra.mxu0 %v404
      %522 = vmatprep.subr.bf16.mxu0 0
      %523 = vmatpush1.bf16.msra.mxu0 %v403
      %524 = vmatprep.subr.bf16.mxu0 0
      %525 = vmatpush1.bf16.msra.mxu0 %v402
      %526 = vmatprep.subr.bf16.mxu0 0
      %527 = vmatpush2.bf16.msra.mxu0 0
      %528 = vmatprep.subr.bf16.mxu0 0
      %529 = vmatpush2.bf16.msra.mxu0 0
      %530 = vmatprep.subr.bf16.mxu0 0
      %531 = vmatpush2.bf16.msra.mxu0 0
      %532 = vmatprep.subr.bf16.mxu0 0
      %533 = vmatpush2.bf16.msra.mxu0 0
      %534 = vmatprep.subr.bf16.mxu0 0
      %535 = vmatpush2.bf16.msra.mxu0 0
      %536 = vmatprep.subr.bf16.mxu0 0
      %537 = vmatpush2.bf16.msra.mxu0 0
      %538 = vmatprep.subr.bf16.mxu0 0
      %539 = vmatpush2.bf16.msra.mxu0 %v411
      %540 = vmatprep.subr.bf16.mxu0 0
      %541 = vmatpush2.bf16.msra.mxu0 %v410
      %542 = vmatprep.mubr.bf16.mxu0 %v505
      %543 = vmatmul.mubr.bf16.gmra.mxu0 %v498
      %v544 = vpop.f32.mrf.mxu0
      %v545 = vadd.f32 %v342, %v544
      %v546 = vpop.f32.mrf.mxu0
      %v547 = vpop.f32.mrf.mxu0
      %v548 = vadd.f32 %v342, %v547
      %v549 = vpop.f32.mrf.mxu0
      %550 = vmatprep.mubr.bf16.mxu0 %v508
      %551 = vmatmul.mubr.bf16.gmra.mxu0 %v500
      %v552 = vpop.f32.mrf.mxu0
      %v553 = vadd.f32 %v342, %v552
      %v554 = vpop.f32.mrf.mxu0
      %v555 = vpop.f32.mrf.mxu0
      %v556 = vadd.f32 %v342, %v555
      %v557 = vpop.f32.mrf.mxu0
      %558 = vdwg.mxu0
      %v559 = vmax.f32 %v545, 0.0
      %v560 = vmax.f32 %v548, 0.0
      %v561 = vmax.f32 %v553, 0.0
      %v562 = vmax.f32 %v556, 0.0
      %v563 = vmax.f32 %v478, %v559
      %v564 = vmax.f32 %v479, %v560
      %v565 = vmax.f32 %v480, %v561
      %v566 = vmax.f32 %v481, %v562
      %v567 = vld [vmem:[%s301] sm:$0xff]
      %v568 = vld [vmem:[%s301 + $0x8] sm:$0xff]
      %v569 = vld [vmem:[%s301 + $0x10] sm:$0xff]
      %v570 = vld [vmem:[%s301 + $0x18] sm:$0x11]
      %v575 = vunpack.c.l.b16 %v567
      %v576 = vunpack.c.h.b16 %v567
      %v577 = vunpack.c.l.b16 %v568
      %v578 = vunpack.c.h.b16 %v568
      %v579 = vunpack.c.l.b16 %v569
      %v580 = vunpack.c.h.b16 %v569
      %v581 = vunpack.c.l.b16 %v570
      %v582 = vunpack.c.h.b16 %v570
      %v583 = vpack.c.b16 %v577, %v575
      %v584 = vpack.c.b16 %v578, %v576
      %v585 = vpack.c.b16 %v581, %v579
      %v586 = vpack.c.b16 %v582, %v580
      %v590 = vsel %vm422, %v584, 0
      %v593 = vsel %vm422, %v586, 0
      %595 = vmatprep.subr.bf16.mxu0 0
      %596 = vmatpush1.bf16.msra.mxu0 %v409
      %597 = vmatprep.subr.bf16.mxu0 0
      %598 = vmatpush1.bf16.msra.mxu0 %v408
      %599 = vmatprep.subr.bf16.mxu0 0
      %600 = vmatpush1.bf16.msra.mxu0 %v407
      %601 = vmatprep.subr.bf16.mxu0 0
      %602 = vmatpush1.bf16.msra.mxu0 %v406
      %603 = vmatprep.subr.bf16.mxu0 0
      %604 = vmatpush1.bf16.msra.mxu0 %v405
      %605 = vmatprep.subr.bf16.mxu0 0
      %606 = vmatpush1.bf16.msra.mxu0 %v404
      %607 = vmatprep.subr.bf16.mxu0 0
      %608 = vmatpush1.bf16.msra.mxu0 %v403
      %609 = vmatprep.subr.bf16.mxu0 0
      %610 = vmatpush1.bf16.msra.mxu0 %v402
      %611 = vmatprep.subr.bf16.mxu0 0
      %612 = vmatpush2.bf16.msra.mxu0 0
      %613 = vmatprep.subr.bf16.mxu0 0
      %614 = vmatpush2.bf16.msra.mxu0 0
      %615 = vmatprep.subr.bf16.mxu0 0
      %616 = vmatpush2.bf16.msra.mxu0 0
      %617 = vmatprep.subr.bf16.mxu0 0
      %618 = vmatpush2.bf16.msra.mxu0 0
      %619 = vmatprep.subr.bf16.mxu0 0
      %620 = vmatpush2.bf16.msra.mxu0 0
      %621 = vmatprep.subr.bf16.mxu0 0
      %622 = vmatpush2.bf16.msra.mxu0 0
      %623 = vmatprep.subr.bf16.mxu0 0
      %624 = vmatpush2.bf16.msra.mxu0 %v411
      %625 = vmatprep.subr.bf16.mxu0 0
      %626 = vmatpush2.bf16.msra.mxu0 %v410
      %627 = vmatprep.mubr.bf16.mxu0 %v590
      %628 = vmatmul.mubr.bf16.gmra.mxu0 %v583
      %v629 = vpop.f32.mrf.mxu0
      %v630 = vadd.f32 %v342, %v629
      %v631 = vpop.f32.mrf.mxu0
      %v632 = vpop.f32.mrf.mxu0
      %v633 = vadd.f32 %v342, %v632
      %v634 = vpop.f32.mrf.mxu0
      %635 = vmatprep.mubr.bf16.mxu0 %v593
      %636 = vmatmul.mubr.bf16.gmra.mxu0 %v585
      %v637 = vpop.f32.mrf.mxu0
      %v638 = vadd.f32 %v342, %v637
      %v639 = vpop.f32.mrf.mxu0
      %v640 = vpop.f32.mrf.mxu0
      %v641 = vadd.f32 %v342, %v640
      %v642 = vpop.f32.mrf.mxu0
      %643 = vdwg.mxu0
      %v644 = vmax.f32 %v630, 0.0
      %v645 = vmax.f32 %v633, 0.0
      %v646 = vmax.f32 %v638, 0.0
      %v647 = vmax.f32 %v641, 0.0
      %v648 = vld [vmem:[%s306] sm:$0xff]
      %v649 = vld [vmem:[%s306 + $0x8] sm:$0xff]
      %v650 = vld [vmem:[%s306 + $0x10] sm:$0xff]
      %v651 = vld [vmem:[%s306 + $0x18] sm:$0x11]
      %v656 = vunpack.c.l.b16 %v648
      %v657 = vunpack.c.h.b16 %v648
      %v658 = vunpack.c.l.b16 %v649
      %v659 = vunpack.c.h.b16 %v649
      %v660 = vunpack.c.l.b16 %v650
      %v661 = vunpack.c.h.b16 %v650
      %v662 = vunpack.c.l.b16 %v651
      %v663 = vunpack.c.h.b16 %v651
      %v664 = vpack.c.b16 %v658, %v656
      %v665 = vpack.c.b16 %v659, %v657
      %v666 = vpack.c.b16 %v662, %v660
      %v667 = vpack.c.b16 %v663, %v661
      %v671 = vsel %vm422, %v665, 0
      %v674 = vsel %vm422, %v667, 0
      %676 = vmatprep.subr.bf16.mxu0 0
      %677 = vmatpush1.bf16.msra.mxu0 %v409
      %678 = vmatprep.subr.bf16.mxu0 0
      %679 = vmatpush1.bf16.msra.mxu0 %v408
      %680 = vmatprep.subr.bf16.mxu0 0
      %681 = vmatpush1.bf16.msra.mxu0 %v407
      %682 = vmatprep.subr.bf16.mxu0 0
      %683 = vmatpush1.bf16.msra.mxu0 %v406
      %684 = vmatprep.subr.bf16.mxu0 0
      %685 = vmatpush1.bf16.msra.mxu0 %v405
      %686 = vmatprep.subr.bf16.mxu0 0
      %687 = vmatpush1.bf16.msra.mxu0 %v404
      %688 = vmatprep.subr.bf16.mxu0 0
      %689 = vmatpush1.bf16.msra.mxu0 %v403
      %690 = vmatprep.subr.bf16.mxu0 0
      %691 = vmatpush1.bf16.msra.mxu0 %v402
      %692 = vmatprep.subr.bf16.mxu0 0
      %693 = vmatpush2.bf16.msra.mxu0 0
      %694 = vmatprep.subr.bf16.mxu0 0
      %695 = vmatpush2.bf16.msra.mxu0 0
      %696 = vmatprep.subr.bf16.mxu0 0
      %697 = vmatpush2.bf16.msra.mxu0 0
      %698 = vmatprep.subr.bf16.mxu0 0
      %699 = vmatpush2.bf16.msra.mxu0 0
      %700 = vmatprep.subr.bf16.mxu0 0
      %701 = vmatpush2.bf16.msra.mxu0 0
      %702 = vmatprep.subr.bf16.mxu0 0
      %703 = vmatpush2.bf16.msra.mxu0 0
      %704 = vmatprep.subr.bf16.mxu0 0
      %705 = vmatpush2.bf16.msra.mxu0 %v411
      %706 = vmatprep.subr.bf16.mxu0 0
      %707 = vmatpush2.bf16.msra.mxu0 %v410
      %708 = vmatprep.mubr.bf16.mxu0 %v671
      %709 = vmatmul.mubr.bf16.gmra.mxu0 %v664
      %v710 = vpop.f32.mrf.mxu0
      %v711 = vadd.f32 %v342, %v710
      %v712 = vpop.f32.mrf.mxu0
      %v713 = vpop.f32.mrf.mxu0
      %v714 = vadd.f32 %v342, %v713
      %v715 = vpop.f32.mrf.mxu0
      %716 = vmatprep.mubr.bf16.mxu0 %v674
      %717 = vmatmul.mubr.bf16.gmra.mxu0 %v666
      %v718 = vpop.f32.mrf.mxu0
      %v719 = vadd.f32 %v342, %v718
      %v720 = vpop.f32.mrf.mxu0
      %v721 = vpop.f32.mrf.mxu0
      %v722 = vadd.f32 %v342, %v721
      %v723 = vpop.f32.mrf.mxu0
      %724 = vdwg.mxu0
      %v725 = vmax.f32 %v711, 0.0
      %v726 = vmax.f32 %v714, 0.0
      %v727 = vmax.f32 %v719, 0.0
      %v728 = vmax.f32 %v722, 0.0
      %v729 = vmax.f32 %v644, %v725
      %v730 = vmax.f32 %v645, %v726
      %v731 = vmax.f32 %v646, %v727
      %v732 = vmax.f32 %v647, %v728
      %v733 = vmax.f32 %v563, %v729
      %v734 = vmax.f32 %v564, %v730
      %v735 = vmax.f32 %v565, %v731
      %v736 = vmax.f32 %v566, %v732
      %v737 = vpack.c.bf16 %v734, %v733
      %v738 = vpack.c.bf16 %v736, %v735
      %v741 = vunpack.c.l.b16 %v737
      %v742 = vunpack.c.h.b16 %v737
      %v743 = vunpack.c.l.b16 %v738
      %v744 = vunpack.c.h.b16 %v738
      %v745 = vpack.c.b16 %v741, %v741
      %v746 = vpack.c.b16 %v742, %v742
      %v747 = vpack.c.b16 %v743, %v743
      %v748 = vpack.c.b16 %v744, %v744
      %753 = vst [vmem:[%s311] sm:$0xf] %v745
      %754 = vst [vmem:[%s311 + $0x4] sm:$0xf] %v746
      %755 = vst [vmem:[%s311 + $0x8] sm:$0xf] %v747
      %vm756 = vcmask 1040384
      %vm757 = vsmask.f32 256
      %vm758 = vmand %vm756, %vm757
      %v759 = vld [vmem:[%s311 + $0xc] sm:$0x1]
      %v760 = vsel %vm758, %v748, %v759
      %761 = vst [vmem:[%s311 + $0xc] sm:$0x1] %v760
      %p762 = scmp.lt.s32.totalorder %s17, 1
      %s763 = scalar_select %p762, %s17, 1
      %s764 = smul.addr %s763, 4
      %s765 = smul.addr %s764, 4
      %s766 = scalar_lea.vmem %s6, %s765
      // Predicated region
      $region45: #{net_forward.4} parent=43 // pred_check
        %p767 = pneg %p181
      $region46: #{net_forward.4} parent=43 // pred_check_branch
        %769 = sbr.rel (%p767) target = $region48
      $region47: #{net_forward.4} parent=43 // pred_region
        _
      $region48: #{net_forward.4} parent=43 // pred_fallthru
        _
    $region44: #{net_forward.4} parent=5 // pred_fallthru
      _
    %p770 = scmp.le.s32.totalorder 2, %s12
    // Predicated region
    $region49: #{net_forward.4} parent=5 // pred_check
      %p771 = pneg %p770
    $region50: #{net_forward.4} parent=5 // pred_check_branch
      %773 = sbr.rel (%p771) target = $region52
    $region51: #{net_forward.4} parent=5 // pred_region
      %s774 = ssub.s32 %s12, 2
      // Predicated region
      $region53: #{net_forward.4} parent=51 // pred_check
        %p775 = pneg %p187
      $region54: #{net_forward.4} parent=51 // pred_check_branch
        %777 = sbr.rel (%p775) target = $region56
      $region55: #{net_forward.4} parent=51 // pred_region
        %p778 = scmp.lt.s32.totalorder %s18, 1
        %s779 = scalar_select %p778, %s18, 1
        %s780 = smul.addr %s779, 4
        %s781 = smul.addr %s780, 4
        %s782 = scalar_lea.vmem %s6, %s781
      $region56: #{net_forward.4} parent=51 // pred_fallthru
        _
    $region52: #{net_forward.4} parent=5 // pred_fallthru
      _
  $region6: #{net_forward.4} parent=0 // loop_footer
    %s16 = sadd.s32 1, %s12
  $region7: #{net_forward.4} parent=0 // loop_footer_branch
    %11 = sbr.rel target = $region3
  $region8: #{net_forward.4} parent=0 // loop_exit
    _

// kernel: net_forward.5
$region0: #{net_forward.5}
  #allocation0 [shape = 'u32[]', space=smem, size = 0x4, offset = 0x4, fixed_abs, tag = 'smem constant byte address 0x4 - core index']
  #allocation1 [shape = 'u32[144,128]{1,0:T(1,128)}', space=vmem, size = 0x12000, scoped, tag = 'internal scratch']
  %s0 = inlined_call_operand.vmem [shape: bf16[2,3200], index: 0, kind: input, shape index: {}]
  %s1 = inlined_call_operand.vmem [shape: bf16[3200,128], index: 1, kind: input, shape index: {}]
  %s2 = inlined_call_operand.vmem [shape: f32[1,128], index: 2, kind: input, shape index: {}]
  %s3 = inlined_call_operand.vmem [shape: bf16[128,128], index: 3, kind: input, shape index: {}]
  %s4 = inlined_call_operand.vmem [shape: f32[1,128], index: 4, kind: input, shape index: {}]
  %s5 = inlined_call_operand.vmem [shape: bf16[128,128], index: 5, kind: input, shape index: {}]
  %s6 = inlined_call_operand.vmem [shape: f32[1,128], index: 6, kind: input, shape index: {}]
  %s7 = inlined_call_operand.vmem [shape: f32[2,128], index: 7, kind: output, shape index: {}]
  %s8 = sld [smem:[#allocation0]]
  $region38: #{net_forward.5} parent=0
    _
  %s10 = ssub.s32 1, %s8
  %s11 = scalar_select 0, %s10, %s8
  // Predicated region
  $region2: #{net_forward.5} parent=0 // pred_check
    _
  $region3: #{net_forward.5} parent=0 // pred_check_branch
    %13 = sbr.rel (0) target = $region5
  $region4: #{net_forward.5} parent=0 // pred_region
    _
  $region5: #{net_forward.5} parent=0 // pred_fallthru
    _
  // Predicated region
  $region6: #{net_forward.5} parent=0 // pred_check
    _
  $region7: #{net_forward.5} parent=0 // pred_check_branch
    %15 = sbr.rel (0) target = $region9
  $region8: #{net_forward.5} parent=0 // pred_region
    _
  $region9: #{net_forward.5} parent=0 // pred_fallthru
    _
  // Predicated region
  $region10: #{net_forward.5} parent=0 // pred_check
    _
  $region11: #{net_forward.5} parent=0 // pred_check_branch
    %17 = sbr.rel (0) target = $region13
  $region12: #{net_forward.5} parent=0 // pred_region
    _
  $region13: #{net_forward.5} parent=0 // pred_fallthru
    _
  // Predicated region
  $region14: #{net_forward.5} parent=0 // pred_check
    _
  $region15: #{net_forward.5} parent=0 // pred_check_branch
    %19 = sbr.rel (0) target = $region17
  $region16: #{net_forward.5} parent=0 // pred_region
    _
  $region17: #{net_forward.5} parent=0 // pred_fallthru
    _
  // Predicated region
  $region18: #{net_forward.5} parent=0 // pred_check
    _
  $region19: #{net_forward.5} parent=0 // pred_check_branch
    %21 = sbr.rel (0) target = $region21
  $region20: #{net_forward.5} parent=0 // pred_region
    _
  $region21: #{net_forward.5} parent=0 // pred_fallthru
    _
  // Predicated region
  $region22: #{net_forward.5} parent=0 // pred_check
    _
  $region23: #{net_forward.5} parent=0 // pred_check_branch
    %23 = sbr.rel (0) target = $region25
  $region24: #{net_forward.5} parent=0 // pred_region
    _
  $region25: #{net_forward.5} parent=0 // pred_fallthru
    _
  // Predicated region
  $region26: #{net_forward.5} parent=0 // pred_check
    _
  $region27: #{net_forward.5} parent=0 // pred_check_branch
    %25 = sbr.rel (0) target = $region29
  $region28: #{net_forward.5} parent=0 // pred_region
    _
  $region29: #{net_forward.5} parent=0 // pred_fallthru
    _
  %v27 = vld [vmem:[%s0] sm:$0xff]
  %v28 = vld [vmem:[%s0 + $0x8] sm:$0xff]
  %v29 = vld [vmem:[%s0 + $0x10] sm:$0xff]
  %v30 = vld [vmem:[%s0 + $0x18] sm:$0x1]
  %v31 = vld [vmem:[%s1] sm:$0xf]
  %v32 = vld [vmem:[%s1 + $0x4] sm:$0xf]
  %v33 = vld [vmem:[%s1 + $0x8] sm:$0xf]
  %v34 = vld [vmem:[%s1 + $0xc] sm:$0xf]
  %v35 = vld [vmem:[%s1 + $0x10] sm:$0xf]
  %v36 = vld [vmem:[%s1 + $0x14] sm:$0xf]
  %v37 = vld [vmem:[%s1 + $0x18] sm:$0xf]
  %v38 = vld [vmem:[%s1 + $0x1c] sm:$0xf]
  %v39 = vld [vmem:[%s1 + $0x20] sm:$0xf]
  %v40 = vld [vmem:[%s1 + $0x24] sm:$0xf]
  %v41 = vld [vmem:[%s1 + $0x28] sm:$0xf]
  %v42 = vld [vmem:[%s1 + $0x2c] sm:$0xf]
  %v43 = vld [vmem:[%s1 + $0x30] sm:$0xf]
  %v44 = vld [vmem:[%s1 + $0x34] sm:$0xf]
  %v45 = vld [vmem:[%s1 + $0x38] sm:$0xf]
  %v46 = vld [vmem:[%s1 + $0x3c] sm:$0xf]
  %v47 = vld [vmem:[%s1 + $0x40] sm:$0xf]
  %v48 = vld [vmem:[%s1 + $0x44] sm:$0xf]
  %v49 = vld [vmem:[%s1 + $0x48] sm:$0xf]
  %v50 = vld [vmem:[%s1 + $0x4c] sm:$0xf]
  %v51 = vld [vmem:[%s1 + $0x50] sm:$0xf]
  %v52 = vld [vmem:[%s1 + $0x54] sm:$0xf]
  %v53 = vld [vmem:[%s1 + $0x58] sm:$0xf]
  %v54 = vld [vmem:[%s1 + $0x5c] sm:$0xf]
  %v55 = vld [vmem:[%s1 + $0x60] sm:$0xf]
  %v56 = vld [vmem:[%s1 + $0x64] sm:$0xf]
  %v57 = vld [vmem:[%s1 + $0x68] sm:$0xf]
  %v58 = vld [vmem:[%s1 + $0x6c] sm:$0xf]
  %v59 = vld [vmem:[%s1 + $0x70] sm:$0xf]
  %v60 = vld [vmem:[%s1 + $0x74] sm:$0xf]
  %v61 = vld [vmem:[%s1 + $0x78] sm:$0xf]
  %v62 = vld [vmem:[%s1 + $0x7c] sm:$0xf]
  %v63 = vld [vmem:[%s1 + $0x80] sm:$0xf]
  %v64 = vld [vmem:[%s1 + $0x84] sm:$0xf]
  %v65 = vld [vmem:[%s1 + $0x88] sm:$0xf]
  %v66 = vld [vmem:[%s1 + $0x8c] sm:$0xf]
  %v67 = vld [vmem:[%s1 + $0x90] sm:$0xf]
  %v68 = vld [vmem:[%s1 + $0x94] sm:$0xf]
  %v69 = vld [vmem:[%s1 + $0x98] sm:$0xf]
  %v70 = vld [vmem:[%s1 + $0x9c] sm:$0xf]
  %v71 = vld [vmem:[%s1 + $0xa0] sm:$0xf]
  %v72 = vld [vmem:[%s1 + $0xa4] sm:$0xf]
  %v73 = vld [vmem:[%s1 + $0xa8] sm:$0xf]
  %v74 = vld [vmem:[%s1 + $0xac] sm:$0xf]
  %v75 = vld [vmem:[%s1 + $0xb0] sm:$0xf]
  %v76 = vld [vmem:[%s1 + $0xb4] sm:$0xf]
  %v77 = vld [vmem:[%s1 + $0xb8] sm:$0xf]
  %v78 = vld [vmem:[%s1 + $0xbc] sm:$0xf]
  %v79 = vld [vmem:[%s1 + $0xc0] sm:$0xf]
  %v80 = vld [vmem:[%s1 + $0xc4] sm:$0xf]
  %v81 = vld [vmem:[%s1 + $0xc8] sm:$0xf]
  %v82 = vld [vmem:[%s1 + $0xcc] sm:$0xf]
  %v83 = vld [vmem:[%s1 + $0xd0] sm:$0xf]
  %v84 = vld [vmem:[%s1 + $0xd4] sm:$0xf]
  %v85 = vld [vmem:[%s1 + $0xd8] sm:$0xf]
  %v86 = vld [vmem:[%s1 + $0xdc] sm:$0xf]
  %v87 = vld [vmem:[%s1 + $0xe0] sm:$0xf]
  %v88 = vld [vmem:[%s1 + $0xe4] sm:$0xf]
  %v89 = vld [vmem:[%s1 + $0xe8] sm:$0xf]
  %v90 = vld [vmem:[%s1 + $0xec] sm:$0xf]
  %v91 = vld [vmem:[%s1 + $0xf0] sm:$0xf]
  %v92 = vld [vmem:[%s1 + $0xf4] sm:$0xf]
  %v93 = vld [vmem:[%s1 + $0xf8] sm:$0xf]
  %v94 = vld [vmem:[%s1 + $0xfc] sm:$0xf]
  %v95 = vld [vmem:[%s1 + $0x100] sm:$0xf]
  %v96 = vld [vmem:[%s1 + $0x104] sm:$0xf]
  %v97 = vld [vmem:[%s1 + $0x108] sm:$0xf]
  %v98 = vld [vmem:[%s1 + $0x10c] sm:$0xf]
  %v99 = vld [vmem:[%s1 + $0x110] sm:$0xf]
  %v100 = vld [vmem:[%s1 + $0x114] sm:$0xf]
  %v101 = vld [vmem:[%s1 + $0x118] sm:$0xf]
  %v102 = vld [vmem:[%s1 + $0x11c] sm:$0xf]
  %v103 = vld [vmem:[%s1 + $0x120] sm:$0xf]
  %v104 = vld [vmem:[%s1 + $0x124] sm:$0xf]
  %v105 = vld [vmem:[%s1 + $0x128] sm:$0xf]
  %v106 = vld [vmem:[%s1 + $0x12c] sm:$0xf]
  %v107 = vld [vmem:[%s1 + $0x130] sm:$0xf]
  %v108 = vld [vmem:[%s1 + $0x134] sm:$0xf]
  %v109 = vld [vmem:[%s1 + $0x138] sm:$0xf]
  %v110 = vld [vmem:[%s1 + $0x13c] sm:$0xf]
  %v111 = vld [vmem:[%s1 + $0x140] sm:$0xf]
  %v112 = vld [vmem:[%s1 + $0x144] sm:$0xf]
  %v113 = vld [vmem:[%s1 + $0x148] sm:$0xf]
  %v114 = vld [vmem:[%s1 + $0x14c] sm:$0xf]
  %v115 = vld [vmem:[%s1 + $0x150] sm:$0xf]
  %v116 = vld [vmem:[%s1 + $0x154] sm:$0xf]
  %v117 = vld [vmem:[%s1 + $0x158] sm:$0xf]
  %v118 = vld [vmem:[%s1 + $0x15c] sm:$0xf]
  %v119 = vld [vmem:[%s1 + $0x160] sm:$0xf]
  %v120 = vld [vmem:[%s1 + $0x164] sm:$0xf]
  %v121 = vld [vmem:[%s1 + $0x168] sm:$0xf]
  %v122 = vld [vmem:[%s1 + $0x16c] sm:$0xf]
  %v123 = vld [vmem:[%s1 + $0x170] sm:$0xf]
  %v124 = vld [vmem:[%s1 + $0x174] sm:$0xf]
  %v125 = vld [vmem:[%s1 + $0x178] sm:$0xf]
  %v126 = vld [vmem:[%s1 + $0x17c] sm:$0xf]
  %v127 = vld [vmem:[%s1 + $0x180] sm:$0xf]
  %v128 = vld [vmem:[%s1 + $0x184] sm:$0xf]
  %v129 = vld [vmem:[%s1 + $0x188] sm:$0xf]
  %v130 = vld [vmem:[%s1 + $0x18c] sm:$0xf]
  %v131 = vld [vmem:[%s1 + $0x190] sm:$0xf]
  %v132 = vld [vmem:[%s1 + $0x194] sm:$0xf]
  %v133 = vld [vmem:[%s1 + $0x198] sm:$0xf]
  %v134 = vld [vmem:[%s1 + $0x19c] sm:$0xf]
  %v135 = vld [vmem:[%s1 + $0x1a0] sm:$0xf]
  %v136 = vld [vmem:[%s1 + $0x1a4] sm:$0xf]
  %v137 = vld [vmem:[%s1 + $0x1a8] sm:$0xf]
  %v138 = vld [vmem:[%s1 + $0x1ac] sm:$0xf]
  %v139 = vld [vmem:[%s1 + $0x1b0] sm:$0xf]
  %v140 = vld [vmem:[%s1 + $0x1b4] sm:$0xf]
  %v141 = vld [vmem:[%s1 + $0x1b8] sm:$0xf]
  %v142 = vld [vmem:[%s1 + $0x1bc] sm:$0xf]
  %v143 = vld [vmem:[%s1 + $0x1c0] sm:$0xf]
  %v144 = vld [vmem:[%s1 + $0x1c4] sm:$0xf]
  %v145 = vld [vmem:[%s1 + $0x1c8] sm:$0xf]
  %v146 = vld [vmem:[%s1 + $0x1cc] sm:$0xf]
  %v147 = vld [vmem:[%s1 + $0x1d0] sm:$0xf]
  %v148 = vld [vmem:[%s1 + $0x1d4] sm:$0xf]
  %v149 = vld [vmem:[%s1 + $0x1d8] sm:$0xf]
  %v150 = vld [vmem:[%s1 + $0x1dc] sm:$0xf]
  %v151 = vld [vmem:[%s1 + $0x1e0] sm:$0xf]
  %v152 = vld [vmem:[%s1 + $0x1e4] sm:$0xf]
  %v153 = vld [vmem:[%s1 + $0x1e8] sm:$0xf]
  %v154 = vld [vmem:[%s1 + $0x1ec] sm:$0xf]
  %v155 = vld [vmem:[%s1 + $0x1f0] sm:$0xf]
  %v156 = vld [vmem:[%s1 + $0x1f4] sm:$0xf]
  %v157 = vld [vmem:[%s1 + $0x1f8] sm:$0xf]
  %v158 = vld [vmem:[%s1 + $0x1fc] sm:$0xf]
  %v159 = vld [vmem:[%s1 + $0x200] sm:$0xf]
  %v160 = vld [vmem:[%s1 + $0x204] sm:$0xf]
  %v161 = vld [vmem:[%s1 + $0x208] sm:$0xf]
  %v162 = vld [vmem:[%s1 + $0x20c] sm:$0xf]
  %v163 = vld [vmem:[%s1 + $0x210] sm:$0xf]
  %v164 = vld [vmem:[%s1 + $0x214] sm:$0xf]
  %v165 = vld [vmem:[%s1 + $0x218] sm:$0xf]
  %v166 = vld [vmem:[%s1 + $0x21c] sm:$0xf]
  %v167 = vld [vmem:[%s1 + $0x220] sm:$0xf]
  %v168 = vld [vmem:[%s1 + $0x224] sm:$0xf]
  %v169 = vld [vmem:[%s1 + $0x228] sm:$0xf]
  %v170 = vld [vmem:[%s1 + $0x22c] sm:$0xf]
  %v171 = vld [vmem:[%s1 + $0x230] sm:$0xf]
  %v172 = vld [vmem:[%s1 + $0x234] sm:$0xf]
  %v173 = vld [vmem:[%s1 + $0x238] sm:$0xf]
  %v174 = vld [vmem:[%s1 + $0x23c] sm:$0xf]
  %v175 = vld [vmem:[%s1 + $0x240] sm:$0xf]
  %v176 = vld [vmem:[%s1 + $0x244] sm:$0xf]
  %v177 = vld [vmem:[%s1 + $0x248] sm:$0xf]
  %v178 = vld [vmem:[%s1 + $0x24c] sm:$0xf]
  %v179 = vld [vmem:[%s1 + $0x250] sm:$0xf]
  %v180 = vld [vmem:[%s1 + $0x254] sm:$0xf]
  %v181 = vld [vmem:[%s1 + $0x258] sm:$0xf]
  %v182 = vld [vmem:[%s1 + $0x25c] sm:$0xf]
  %v183 = vld [vmem:[%s1 + $0x260] sm:$0xf]
  %v184 = vld [vmem:[%s1 + $0x264] sm:$0xf]
  %v185 = vld [vmem:[%s1 + $0x268] sm:$0xf]
  %v186 = vld [vmem:[%s1 + $0x26c] sm:$0xf]
  %v187 = vld [vmem:[%s1 + $0x270] sm:$0xf]
  %v188 = vld [vmem:[%s1 + $0x274] sm:$0xf]
  %v189 = vld [vmem:[%s1 + $0x278] sm:$0xf]
  %v190 = vld [vmem:[%s1 + $0x27c] sm:$0xf]
  %v191 = vld [vmem:[%s1 + $0x280] sm:$0xf]
  %v192 = vld [vmem:[%s1 + $0x284] sm:$0xf]
  %v193 = vld [vmem:[%s1 + $0x288] sm:$0xf]
  %v194 = vld [vmem:[%s1 + $0x28c] sm:$0xf]
  %v195 = vld [vmem:[%s1 + $0x290] sm:$0xf]
  %v196 = vld [vmem:[%s1 + $0x294] sm:$0xf]
  %v197 = vld [vmem:[%s1 + $0x298] sm:$0xf]
  %v198 = vld [vmem:[%s1 + $0x29c] sm:$0xf]
  %v199 = vld [vmem:[%s1 + $0x2a0] sm:$0xf]
  %v200 = vld [vmem:[%s1 + $0x2a4] sm:$0xf]
  %v201 = vld [vmem:[%s1 + $0x2a8] sm:$0xf]
  %v202 = vld [vmem:[%s1 + $0x2ac] sm:$0xf]
  %v203 = vld [vmem:[%s1 + $0x2b0] sm:$0xf]
  %v204 = vld [vmem:[%s1 + $0x2b4] sm:$0xf]
  %v205 = vld [vmem:[%s1 + $0x2b8] sm:$0xf]
  %v206 = vld [vmem:[%s1 + $0x2bc] sm:$0xf]
  %v207 = vld [vmem:[%s1 + $0x2c0] sm:$0xf]
  %v208 = vld [vmem:[%s1 + $0x2c4] sm:$0xf]
  %v209 = vld [vmem:[%s1 + $0x2c8] sm:$0xf]
  %v210 = vld [vmem:[%s1 + $0x2cc] sm:$0xf]
  %v211 = vld [vmem:[%s1 + $0x2d0] sm:$0xf]
  %v212 = vld [vmem:[%s1 + $0x2d4] sm:$0xf]
  %v213 = vld [vmem:[%s1 + $0x2d8] sm:$0xf]
  %v214 = vld [vmem:[%s1 + $0x2dc] sm:$0xf]
  %v215 = vld [vmem:[%s1 + $0x2e0] sm:$0xf]
  %v216 = vld [vmem:[%s1 + $0x2e4] sm:$0xf]
  %v217 = vld [vmem:[%s1 + $0x2e8] sm:$0xf]
  %v218 = vld [vmem:[%s1 + $0x2ec] sm:$0xf]
  %v219 = vld [vmem:[%s1 + $0x2f0] sm:$0xf]
  %v220 = vld [vmem:[%s1 + $0x2f4] sm:$0xf]
  %v221 = vld [vmem:[%s1 + $0x2f8] sm:$0xf]
  %v222 = vld [vmem:[%s1 + $0x2fc] sm:$0xf]
  %v223 = vld [vmem:[%s1 + $0x300] sm:$0xf]
  %v224 = vld [vmem:[%s1 + $0x304] sm:$0xf]
  %v225 = vld [vmem:[%s1 + $0x308] sm:$0xf]
  %v226 = vld [vmem:[%s1 + $0x30c] sm:$0xf]
  %v227 = vld [vmem:[%s1 + $0x310] sm:$0xf]
  %v228 = vld [vmem:[%s1 + $0x314] sm:$0xf]
  %v229 = vld [vmem:[%s1 + $0x318] sm:$0xf]
  %v230 = vld [vmem:[%s1 + $0x31c] sm:$0xf]
  %v231 = vld [vmem:[%s1 + $0x320] sm:$0xf]
  %v232 = vld [vmem:[%s1 + $0x324] sm:$0xf]
  %v233 = vld [vmem:[%s1 + $0x328] sm:$0xf]
  %v234 = vld [vmem:[%s1 + $0x32c] sm:$0xf]
  %v235 = vld [vmem:[%s1 + $0x330] sm:$0xf]
  %v236 = vld [vmem:[%s1 + $0x334] sm:$0xf]
  %v237 = vld [vmem:[%s1 + $0x338] sm:$0xf]
  %v238 = vld [vmem:[%s1 + $0x33c] sm:$0xf]
  %v239 = vld [vmem:[%s1 + $0x340] sm:$0xf]
  %v240 = vld [vmem:[%s1 + $0x344] sm:$0xf]
  %v241 = vld [vmem:[%s1 + $0x348] sm:$0xf]
  %v242 = vld [vmem:[%s1 + $0x34c] sm:$0xf]
  %v243 = vld [vmem:[%s1 + $0x350] sm:$0xf]
  %v244 = vld [vmem:[%s1 + $0x354] sm:$0xf]
  %v245 = vld [vmem:[%s1 + $0x358] sm:$0xf]
  %v246 = vld [vmem:[%s1 + $0x35c] sm:$0xf]
  %v247 = vld [vmem:[%s1 + $0x360] sm:$0xf]
  %v248 = vld [vmem:[%s1 + $0x364] sm:$0xf]
  %v249 = vld [vmem:[%s1 + $0x368] sm:$0xf]
  %v250 = vld [vmem:[%s1 + $0x36c] sm:$0xf]
  %v251 = vld [vmem:[%s1 + $0x370] sm:$0xf]
  %v252 = vld [vmem:[%s1 + $0x374] sm:$0xf]
  %v253 = vld [vmem:[%s1 + $0x378] sm:$0xf]
  %v254 = vld [vmem:[%s1 + $0x37c] sm:$0xf]
  %v255 = vld [vmem:[%s1 + $0x380] sm:$0xf]
  %v256 = vld [vmem:[%s1 + $0x384] sm:$0xf]
  %v257 = vld [vmem:[%s1 + $0x388] sm:$0xf]
  %v258 = vld [vmem:[%s1 + $0x38c] sm:$0xf]
  %v259 = vld [vmem:[%s1 + $0x390] sm:$0xf]
  %v260 = vld [vmem:[%s1 + $0x394] sm:$0xf]
  %v261 = vld [vmem:[%s1 + $0x398] sm:$0xf]
  %v262 = vld [vmem:[%s1 + $0x39c] sm:$0xf]
  %v263 = vld [vmem:[%s1 + $0x3a0] sm:$0xf]
  %v264 = vld [vmem:[%s1 + $0x3a4] sm:$0xf]
  %v265 = vld [vmem:[%s1 + $0x3a8] sm:$0xf]
  %v266 = vld [vmem:[%s1 + $0x3ac] sm:$0xf]
  %v267 = vld [vmem:[%s1 + $0x3b0] sm:$0xf]
  %v268 = vld [vmem:[%s1 + $0x3b4] sm:$0xf]
  %v269 = vld [vmem:[%s1 + $0x3b8] sm:$0xf]
  %v270 = vld [vmem:[%s1 + $0x3bc] sm:$0xf]
  %v271 = vld [vmem:[%s1 + $0x3c0] sm:$0xf]
  %v272 = vld [vmem:[%s1 + $0x3c4] sm:$0xf]
  %v273 = vld [vmem:[%s1 + $0x3c8] sm:$0xf]
  %v274 = vld [vmem:[%s1 + $0x3cc] sm:$0xf]
  %v275 = vld [vmem:[%s1 + $0x3d0] sm:$0xf]
  %v276 = vld [vmem:[%s1 + $0x3d4] sm:$0xf]
  %v277 = vld [vmem:[%s1 + $0x3d8] sm:$0xf]
  %v278 = vld [vmem:[%s1 + $0x3dc] sm:$0xf]
  %v279 = vld [vmem:[%s1 + $0x3e0] sm:$0xf]
  %v280 = vld [vmem:[%s1 + $0x3e4] sm:$0xf]
  %v281 = vld [vmem:[%s1 + $0x3e8] sm:$0xf]
  %v282 = vld [vmem:[%s1 + $0x3ec] sm:$0xf]
  %v283 = vld [vmem:[%s1 + $0x3f0] sm:$0xf]
  %v284 = vld [vmem:[%s1 + $0x3f4] sm:$0xf]
  %v285 = vld [vmem:[%s1 + $0x3f8] sm:$0xf]
  %v286 = vld [vmem:[%s1 + $0x3fc] sm:$0xf]
  %v287 = vld [vmem:[%s1 + $0x400] sm:$0xf]
  %v288 = vld [vmem:[%s1 + $0x404] sm:$0xf]
  %v289 = vld [vmem:[%s1 + $0x408] sm:$0xf]
  %v290 = vld [vmem:[%s1 + $0x40c] sm:$0xf]
  %v291 = vld [vmem:[%s1 + $0x410] sm:$0xf]
  %v292 = vld [vmem:[%s1 + $0x414] sm:$0xf]
  %v293 = vld [vmem:[%s1 + $0x418] sm:$0xf]
  %v294 = vld [vmem:[%s1 + $0x41c] sm:$0xf]
  %v295 = vld [vmem:[%s1 + $0x420] sm:$0xf]
  %v296 = vld [vmem:[%s1 + $0x424] sm:$0xf]
  %v297 = vld [vmem:[%s1 + $0x428] sm:$0xf]
  %v298 = vld [vmem:[%s1 + $0x42c] sm:$0xf]
  %v299 = vld [vmem:[%s1 + $0x430] sm:$0xf]
  %v300 = vld [vmem:[%s1 + $0x434] sm:$0xf]
  %v301 = vld [vmem:[%s1 + $0x438] sm:$0xf]
  %v302 = vld [vmem:[%s1 + $0x43c] sm:$0xf]
  %v303 = vld [vmem:[%s1 + $0x440] sm:$0xf]
  %v304 = vld [vmem:[%s1 + $0x444] sm:$0xf]
  %v305 = vld [vmem:[%s1 + $0x448] sm:$0xf]
  %v306 = vld [vmem:[%s1 + $0x44c] sm:$0xf]
  %v307 = vld [vmem:[%s1 + $0x450] sm:$0xf]
  %v308 = vld [vmem:[%s1 + $0x454] sm:$0xf]
  %v309 = vld [vmem:[%s1 + $0x458] sm:$0xf]
  %v310 = vld [vmem:[%s1 + $0x45c] sm:$0xf]
  %v311 = vld [vmem:[%s1 + $0x460] sm:$0xf]
  %v312 = vld [vmem:[%s1 + $0x464] sm:$0xf]
  %v313 = vld [vmem:[%s1 + $0x468] sm:$0xf]
  %v314 = vld [vmem:[%s1 + $0x46c] sm:$0xf]
  %v315 = vld [vmem:[%s1 + $0x470] sm:$0xf]
  %v316 = vld [vmem:[%s1 + $0x474] sm:$0xf]
  %v317 = vld [vmem:[%s1 + $0x478] sm:$0xf]
  %v318 = vld [vmem:[%s1 + $0x47c] sm:$0xf]
  %v319 = vld [vmem:[%s1 + $0x480] sm:$0xf]
  %v320 = vld [vmem:[%s1 + $0x484] sm:$0xf]
  %v321 = vld [vmem:[%s1 + $0x488] sm:$0xf]
  %v322 = vld [vmem:[%s1 + $0x48c] sm:$0xf]
  %v323 = vld [vmem:[%s1 + $0x490] sm:$0xf]
  %v324 = vld [vmem:[%s1 + $0x494] sm:$0xf]
  %v325 = vld [vmem:[%s1 + $0x498] sm:$0xf]
  %v326 = vld [vmem:[%s1 + $0x49c] sm:$0xf]
  %v327 = vld [vmem:[%s1 + $0x4a0] sm:$0xf]
  %v328 = vld [vmem:[%s1 + $0x4a4] sm:$0xf]
  %v329 = vld [vmem:[%s1 + $0x4a8] sm:$0xf]
  %v330 = vld [vmem:[%s1 + $0x4ac] sm:$0xf]
  %v331 = vld [vmem:[%s1 + $0x4b0] sm:$0xf]
  %v332 = vld [vmem:[%s1 + $0x4b4] sm:$0xf]
  %v333 = vld [vmem:[%s1 + $0x4b8] sm:$0xf]
  %v334 = vld [vmem:[%s1 + $0x4bc] sm:$0xf]
  %v335 = vld [vmem:[%s1 + $0x4c0] sm:$0xf]
  %v336 = vld [vmem:[%s1 + $0x4c4] sm:$0xf]
  %v337 = vld [vmem:[%s1 + $0x4c8] sm:$0xf]
  %v338 = vld [vmem:[%s1 + $0x4cc] sm:$0xf]
  %v339 = vld [vmem:[%s1 + $0x4d0] sm:$0xf]
  %v340 = vld [vmem:[%s1 + $0x4d4] sm:$0xf]
  %v341 = vld [vmem:[%s1 + $0x4d8] sm:$0xf]
  %v342 = vld [vmem:[%s1 + $0x4dc] sm:$0xf]
  %v343 = vld [vmem:[%s1 + $0x4e0] sm:$0xf]
  %v344 = vld [vmem:[%s1 + $0x4e4] sm:$0xf]
  %v345 = vld [vmem:[%s1 + $0x4e8] sm:$0xf]
  %v346 = vld [vmem:[%s1 + $0x4ec] sm:$0xf]
  %v347 = vld [vmem:[%s1 + $0x4f0] sm:$0xf]
  %v348 = vld [vmem:[%s1 + $0x4f4] sm:$0xf]
  %v349 = vld [vmem:[%s1 + $0x4f8] sm:$0xf]
  %v350 = vld [vmem:[%s1 + $0x4fc] sm:$0xf]
  %v351 = vld [vmem:[%s1 + $0x500] sm:$0xf]
  %v352 = vld [vmem:[%s1 + $0x504] sm:$0xf]
  %v353 = vld [vmem:[%s1 + $0x508] sm:$0xf]
  %v354 = vld [vmem:[%s1 + $0x50c] sm:$0xf]
  %v355 = vld [vmem:[%s1 + $0x510] sm:$0xf]
  %v356 = vld [vmem:[%s1 + $0x514] sm:$0xf]
  %v357 = vld [vmem:[%s1 + $0x518] sm:$0xf]
  %v358 = vld [vmem:[%s1 + $0x51c] sm:$0xf]
  %v359 = vld [vmem:[%s1 + $0x520] sm:$0xf]
  %v360 = vld [vmem:[%s1 + $0x524] sm:$0xf]
  %v361 = vld [vmem:[%s1 + $0x528] sm:$0xf]
  %v362 = vld [vmem:[%s1 + $0x52c] sm:$0xf]
  %v363 = vld [vmem:[%s1 + $0x530] sm:$0xf]
  %v364 = vld [vmem:[%s1 + $0x534] sm:$0xf]
  %v365 = vld [vmem:[%s1 + $0x538] sm:$0xf]
  %v366 = vld [vmem:[%s1 + $0x53c] sm:$0xf]
  %v367 = vld [vmem:[%s1 + $0x540] sm:$0xf]
  %v368 = vld [vmem:[%s1 + $0x544] sm:$0xf]
  %v369 = vld [vmem:[%s1 + $0x548] sm:$0xf]
  %v370 = vld [vmem:[%s1 + $0x54c] sm:$0xf]
  %v371 = vld [vmem:[%s1 + $0x550] sm:$0xf]
  %v372 = vld [vmem:[%s1 + $0x554] sm:$0xf]
  %v373 = vld [vmem:[%s1 + $0x558] sm:$0xf]
  %v374 = vld [vmem:[%s1 + $0x55c] sm:$0xf]
  %v375 = vld [vmem:[%s1 + $0x560] sm:$0xf]
  %v376 = vld [vmem:[%s1 + $0x564] sm:$0xf]
  %v377 = vld [vmem:[%s1 + $0x568] sm:$0xf]
  %v378 = vld [vmem:[%s1 + $0x56c] sm:$0xf]
  %v379 = vld [vmem:[%s1 + $0x570] sm:$0xf]
  %v380 = vld [vmem:[%s1 + $0x574] sm:$0xf]
  %v381 = vld [vmem:[%s1 + $0x578] sm:$0xf]
  %v382 = vld [vmem:[%s1 + $0x57c] sm:$0xf]
  %v383 = vld [vmem:[%s1 + $0x580] sm:$0xf]
  %v384 = vld [vmem:[%s1 + $0x584] sm:$0xf]
  %v385 = vld [vmem:[%s1 + $0x588] sm:$0xf]
  %v386 = vld [vmem:[%s1 + $0x58c] sm:$0xf]
  %v387 = vld [vmem:[%s1 + $0x590] sm:$0xf]
  %v388 = vld [vmem:[%s1 + $0x594] sm:$0xf]
  %v389 = vld [vmem:[%s1 + $0x598] sm:$0xf]
  %v390 = vld [vmem:[%s1 + $0x59c] sm:$0xf]
  %v391 = vld [vmem:[%s1 + $0x5a0] sm:$0xf]
  %v392 = vld [vmem:[%s1 + $0x5a4] sm:$0xf]
  %v393 = vld [vmem:[%s1 + $0x5a8] sm:$0xf]
  %v394 = vld [vmem:[%s1 + $0x5ac] sm:$0xf]
  %v395 = vld [vmem:[%s1 + $0x5b0] sm:$0xf]
  %v396 = vld [vmem:[%s1 + $0x5b4] sm:$0xf]
  %v397 = vld [vmem:[%s1 + $0x5b8] sm:$0xf]
  %v398 = vld [vmem:[%s1 + $0x5bc] sm:$0xf]
  %v399 = vld [vmem:[%s1 + $0x5c0] sm:$0xf]
  %v400 = vld [vmem:[%s1 + $0x5c4] sm:$0xf]
  %v401 = vld [vmem:[%s1 + $0x5c8] sm:$0xf]
  %v402 = vld [vmem:[%s1 + $0x5cc] sm:$0xf]
  %v403 = vld [vmem:[%s1 + $0x5d0] sm:$0xf]
  %v404 = vld [vmem:[%s1 + $0x5d4] sm:$0xf]
  %v405 = vld [vmem:[%s1 + $0x5d8] sm:$0xf]
  %v406 = vld [vmem:[%s1 + $0x5dc] sm:$0xf]
  %v407 = vld [vmem:[%s1 + $0x5e0] sm:$0xf]
  %v408 = vld [vmem:[%s1 + $0x5e4] sm:$0xf]
  %v409 = vld [vmem:[%s1 + $0x5e8] sm:$0xf]
  %v410 = vld [vmem:[%s1 + $0x5ec] sm:$0xf]
  %v411 = vld [vmem:[%s1 + $0x5f0] sm:$0xf]
  %v412 = vld [vmem:[%s1 + $0x5f4] sm:$0xf]
  %v413 = vld [vmem:[%s1 + $0x5f8] sm:$0xf]
  %v414 = vld [vmem:[%s1 + $0x5fc] sm:$0xf]
  %v415 = vld [vmem:[%s1 + $0x600] sm:$0xf]
  %v416 = vld [vmem:[%s1 + $0x604] sm:$0xf]
  %v417 = vld [vmem:[%s1 + $0x608] sm:$0xf]
  %v418 = vld [vmem:[%s1 + $0x60c] sm:$0xf]
  %v419 = vld [vmem:[%s1 + $0x610] sm:$0xf]
  %v420 = vld [vmem:[%s1 + $0x614] sm:$0xf]
  %v421 = vld [vmem:[%s1 + $0x618] sm:$0xf]
  %v422 = vld [vmem:[%s1 + $0x61c] sm:$0xf]
  %v423 = vld [vmem:[%s1 + $0x620] sm:$0xf]
  %v424 = vld [vmem:[%s1 + $0x624] sm:$0xf]
  %v425 = vld [vmem:[%s1 + $0x628] sm:$0xf]
  %v426 = vld [vmem:[%s1 + $0x62c] sm:$0xf]
  %v427 = vld [vmem:[%s1 + $0x630] sm:$0xf]
  %v428 = vld [vmem:[%s1 + $0x634] sm:$0xf]
  %v429 = vld [vmem:[%s1 + $0x638] sm:$0xf]
  %v430 = vld [vmem:[%s1 + $0x63c] sm:$0xf]
  %v431 = vld [vmem:[%s2] sm:$0x1]
  %v433 = vlaneseq
  %v434 = vshrl.u32 %v433, 7
  %v435 = vsub.s32 0, %v434
  %v436 = vrot.slane %v431, %v435
  %v442 = vcombine.high %v27, %v27
  %v444 = vunpack.c.l.s4 1966171168
  %v445 = vunpack.c.0.s8 %v444
  %v446 = vlaneseq
  %v447 = vshrl.u32 %v446, 7
  %v448 = vsub.s32 %v445, %v447
  %v449 = vrot.slane %v27, %v448
  %v451 = vunpack.c.l.s4 1966171168
  %v452 = vunpack.c.0.s8 %v451
  %v453 = vlaneseq
  %v454 = vshrl.u32 %v453, 7
  %v455 = vsub.s32 %v452, %v454
  %v456 = vrot.slane %v442, %v455
  %v457 = vcombine.high %v449, %v449
  %v458 = vcombine.high %v456, %v456
  %v460 = vunpack.c.l.s4 1966171168
  %v461 = vunpack.c.0.s8 %v460
  %v462 = vlaneseq
  %v463 = vshrl.u32 %v462, 7
  %v464 = vsub.s32 %v461, %v463
  %v465 = vrot.slane %v449, %v464
  %v467 = vunpack.c.l.s4 1966171168
  %v468 = vunpack.c.0.s8 %v467
  %v469 = vlaneseq
  %v470 = vshrl.u32 %v469, 7
  %v471 = vsub.s32 %v468, %v470
  %v472 = vrot.slane %v456, %v471
  %v474 = vunpack.c.l.s4 1966171168
  %v475 = vunpack.c.0.s8 %v474
  %v476 = vlaneseq
  %v477 = vshrl.u32 %v476, 7
  %v478 = vsub.s32 %v475, %v477
  %v479 = vrot.slane %v457, %v478
  %v481 = vunpack.c.l.s4 1966171168
  %v482 = vunpack.c.0.s8 %v481
  %v483 = vlaneseq
  %v484 = vshrl.u32 %v483, 7
  %v485 = vsub.s32 %v482, %v484
  %v486 = vrot.slane %v458, %v485
  %v487 = vcombine.high %v465, %v465
  %v488 = vcombine.high %v472, %v472
  %v489 = vcombine.high %v479, %v479
  %v490 = vcombine.high %v486, %v486
  %v491 = vcombine.high %v28, %v28
  %v493 = vunpack.c.l.s4 1966171168
  %v494 = vunpack.c.0.s8 %v493
  %v495 = vlaneseq
  %v496 = vshrl.u32 %v495, 7
  %v497 = vsub.s32 %v494, %v496
  %v498 = vrot.slane %v28, %v497
  %v500 = vunpack.c.l.s4 1966171168
  %v501 = vunpack.c.0.s8 %v500
  %v502 = vlaneseq
  %v503 = vshrl.u32 %v502, 7
  %v504 = vsub.s32 %v501, %v503
  %v505 = vrot.slane %v491, %v504
  %v506 = vcombine.high %v498, %v498
  %v507 = vcombine.high %v505, %v505
  %v509 = vunpack.c.l.s4 1966171168
  %v510 = vunpack.c.0.s8 %v509
  %v511 = vlaneseq
  %v512 = vshrl.u32 %v511, 7
  %v513 = vsub.s32 %v510, %v512
  %v514 = vrot.slane %v498, %v513
  %v516 = vunpack.c.l.s4 1966171168
  %v517 = vunpack.c.0.s8 %v516
  %v518 = vlaneseq
  %v519 = vshrl.u32 %v518, 7
  %v520 = vsub.s32 %v517, %v519
  %v521 = vrot.slane %v505, %v520
  %v523 = vunpack.c.l.s4 1966171168
  %v524 = vunpack.c.0.s8 %v523
  %v525 = vlaneseq
  %v526 = vshrl.u32 %v525, 7
  %v527 = vsub.s32 %v524, %v526
  %v528 = vrot.slane %v506, %v527
  %v530 = vunpack.c.l.s4 1966171168
  %v531 = vunpack.c.0.s8 %v530
  %v532 = vlaneseq
  %v533 = vshrl.u32 %v532, 7
  %v534 = vsub.s32 %v531, %v533
  %v535 = vrot.slane %v507, %v534
  %v536 = vcombine.high %v514, %v514
  %v537 = vcombine.high %v521, %v521
  %v538 = vcombine.high %v528, %v528
  %v539 = vcombine.high %v535, %v535
  %v540 = vcombine.high %v29, %v29
  %v542 = vunpack.c.l.s4 1966171168
  %v543 = vunpack.c.0.s8 %v542
  %v544 = vlaneseq
  %v545 = vshrl.u32 %v544, 7
  %v546 = vsub.s32 %v543, %v545
  %v547 = vrot.slane %v29, %v546
  %v549 = vunpack.c.l.s4 1966171168
  %v550 = vunpack.c.0.s8 %v549
  %v551 = vlaneseq
  %v552 = vshrl.u32 %v551, 7
  %v553 = vsub.s32 %v550, %v552
  %v554 = vrot.slane %v540, %v553
  %v555 = vcombine.high %v547, %v547
  %v556 = vcombine.high %v554, %v554
  %v558 = vunpack.c.l.s4 1966171168
  %v559 = vunpack.c.0.s8 %v558
  %v560 = vlaneseq
  %v561 = vshrl.u32 %v560, 7
  %v562 = vsub.s32 %v559, %v561
  %v563 = vrot.slane %v547, %v562
  %v565 = vunpack.c.l.s4 1966171168
  %v566 = vunpack.c.0.s8 %v565
  %v567 = vlaneseq
  %v568 = vshrl.u32 %v567, 7
  %v569 = vsub.s32 %v566, %v568
  %v570 = vrot.slane %v554, %v569
  %v572 = vunpack.c.l.s4 1966171168
  %v573 = vunpack.c.0.s8 %v572
  %v574 = vlaneseq
  %v575 = vshrl.u32 %v574, 7
  %v576 = vsub.s32 %v573, %v575
  %v577 = vrot.slane %v555, %v576
  %v579 = vunpack.c.l.s4 1966171168
  %v580 = vunpack.c.0.s8 %v579
  %v581 = vlaneseq
  %v582 = vshrl.u32 %v581, 7
  %v583 = vsub.s32 %v580, %v582
  %v584 = vrot.slane %v556, %v583
  %v585 = vcombine.high %v563, %v563
  %v586 = vcombine.high %v570, %v570
  %v587 = vcombine.high %v577, %v577
  %v588 = vcombine.high %v584, %v584
  %v590 = vunpack.c.l.s4 1966171168
  %v591 = vunpack.c.0.s8 %v590
  %v592 = vlaneseq
  %v593 = vshrl.u32 %v592, 7
  %v594 = vsub.s32 %v591, %v593
  %v595 = vrot.slane %v30, %v594
  %v597 = vunpack.c.l.s4 1966171168
  %v598 = vunpack.c.0.s8 %v597
  %v599 = vlaneseq
  %v600 = vshrl.u32 %v599, 7
  %v601 = vsub.s32 %v598, %v600
  %v602 = vrot.slane %v595, %v601
  %v1028 = vunpack.c.l.b16 %v31
  %v1029 = vunpack.c.l.b16 %v32
  %v1030 = vunpack.c.l.b16 %v33
  %v1031 = vunpack.c.l.b16 %v34
  %v1032 = vunpack.c.l.b16 %v35
  %v1033 = vunpack.c.l.b16 %v36
  %v1034 = vunpack.c.l.b16 %v37
  %v1035 = vunpack.c.l.b16 %v38
  %v1036 = vunpack.c.l.b16 %v39
  %v1037 = vunpack.c.l.b16 %v40
  %v1038 = vunpack.c.l.b16 %v41
  %v1039 = vunpack.c.l.b16 %v42
  %v1040 = vunpack.c.l.b16 %v43
  %v1041 = vunpack.c.l.b16 %v44
  %v1042 = vunpack.c.l.b16 %v45
  %v1043 = vunpack.c.l.b16 %v46
  %v1044 = vunpack.c.l.b16 %v47
  %v1045 = vunpack.c.l.b16 %v48
  %v1046 = vunpack.c.l.b16 %v49
  %v1047 = vunpack.c.l.b16 %v50
  %v1048 = vunpack.c.l.b16 %v51
  %v1049 = vunpack.c.l.b16 %v52
  %v1050 = vunpack.c.l.b16 %v53
  %v1051 = vunpack.c.l.b16 %v54
  %v1052 = vunpack.c.l.b16 %v55
  %v1053 = vunpack.c.l.b16 %v56
  %v1054 = vunpack.c.l.b16 %v57
  %v1055 = vunpack.c.l.b16 %v58
  %v1056 = vunpack.c.l.b16 %v59
  %v1057 = vunpack.c.l.b16 %v60
  %v1058 = vunpack.c.l.b16 %v61
  %v1059 = vunpack.c.l.b16 %v62
  %v1060 = vunpack.c.l.b16 %v63
  %v1061 = vunpack.c.l.b16 %v64
  %v1062 = vunpack.c.l.b16 %v65
  %v1063 = vunpack.c.l.b16 %v66
  %v1064 = vunpack.c.l.b16 %v67
  %v1065 = vunpack.c.l.b16 %v68
  %v1066 = vunpack.c.l.b16 %v69
  %v1067 = vunpack.c.l.b16 %v70
  %v1068 = vunpack.c.l.b16 %v71
  %v1069 = vunpack.c.l.b16 %v72
  %v1070 = vunpack.c.l.b16 %v73
  %v1071 = vunpack.c.l.b16 %v74
  %v1072 = vunpack.c.l.b16 %v75
  %v1073 = vunpack.c.l.b16 %v76
  %v1074 = vunpack.c.l.b16 %v77
  %v1075 = vunpack.c.l.b16 %v78
  %v1076 = vunpack.c.l.b16 %v79
  %v1077 = vunpack.c.l.b16 %v80
  %v1078 = vunpack.c.l.b16 %v81
  %v1079 = vunpack.c.l.b16 %v82
  %v1080 = vunpack.c.l.b16 %v83
  %v1081 = vunpack.c.l.b16 %v84
  %v1082 = vunpack.c.l.b16 %v85
  %v1083 = vunpack.c.l.b16 %v86
  %v1084 = vunpack.c.l.b16 %v87
  %v1085 = vunpack.c.l.b16 %v88
  %v1086 = vunpack.c.l.b16 %v89
  %v1087 = vunpack.c.l.b16 %v90
  %v1088 = vunpack.c.l.b16 %v91
  %v1089 = vunpack.c.l.b16 %v92
  %v1090 = vunpack.c.l.b16 %v93
  %v1091 = vunpack.c.l.b16 %v94
  %v1092 = vunpack.c.l.b16 %v95
  %v1093 = vunpack.c.l.b16 %v96
  %v1094 = vunpack.c.l.b16 %v97
  %v1095 = vunpack.c.l.b16 %v98
  %v1096 = vunpack.c.l.b16 %v99
  %v1097 = vunpack.c.l.b16 %v100
  %v1098 = vunpack.c.l.b16 %v101
  %v1099 = vunpack.c.l.b16 %v102
  %v1100 = vunpack.c.l.b16 %v103
  %v1101 = vunpack.c.l.b16 %v104
  %v1102 = vunpack.c.l.b16 %v105
  %v1103 = vunpack.c.l.b16 %v106
  %v1104 = vunpack.c.l.b16 %v107
  %v1105 = vunpack.c.l.b16 %v108
  %v1106 = vunpack.c.l.b16 %v109
  %v1107 = vunpack.c.l.b16 %v110
  %v1108 = vunpack.c.l.b16 %v111
  %v1109 = vunpack.c.l.b16 %v112
  %v1110 = vunpack.c.l.b16 %v113
  %v1111 = vunpack.c.l.b16 %v114
  %v1112 = vunpack.c.l.b16 %v115
  %v1113 = vunpack.c.l.b16 %v116
  %v1114 = vunpack.c.l.b16 %v117
  %v1115 = vunpack.c.l.b16 %v118
  %v1116 = vunpack.c.l.b16 %v119
  %v1117 = vunpack.c.l.b16 %v120
  %v1118 = vunpack.c.l.b16 %v121
  %v1119 = vunpack.c.l.b16 %v122
  %v1120 = vunpack.c.l.b16 %v123
  %v1121 = vunpack.c.l.b16 %v124
  %v1122 = vunpack.c.l.b16 %v125
  %v1123 = vunpack.c.l.b16 %v126
  %v1124 = vunpack.c.l.b16 %v127
  %v1125 = vunpack.c.l.b16 %v128
  %v1126 = vunpack.c.l.b16 %v129
  %v1127 = vunpack.c.l.b16 %v130
  %v1128 = vunpack.c.l.b16 %v131
  %v1129 = vunpack.c.l.b16 %v132
  %v1130 = vunpack.c.l.b16 %v133
  %v1131 = vunpack.c.l.b16 %v134
  %v1132 = vunpack.c.l.b16 %v135
  %v1133 = vunpack.c.l.b16 %v136
  %v1134 = vunpack.c.l.b16 %v137
  %v1135 = vunpack.c.l.b16 %v138
  %v1136 = vunpack.c.l.b16 %v139
  %v1137 = vunpack.c.l.b16 %v140
  %v1138 = vunpack.c.l.b16 %v141
  %v1139 = vunpack.c.l.b16 %v142
  %v1140 = vunpack.c.l.b16 %v143
  %v1141 = vunpack.c.l.b16 %v144
  %v1142 = vunpack.c.l.b16 %v145
  %v1143 = vunpack.c.l.b16 %v146
  %v1144 = vunpack.c.l.b16 %v147
  %v1145 = vunpack.c.l.b16 %v148
  %v1146 = vunpack.c.l.b16 %v149
  %v1147 = vunpack.c.l.b16 %v150
  %v1148 = vunpack.c.l.b16 %v151
  %v1149 = vunpack.c.l.b16 %v152
  %v1150 = vunpack.c.l.b16 %v153
  %v1151 = vunpack.c.l.b16 %v154
  %v1152 = vunpack.c.l.b16 %v155
  %v1153 = vunpack.c.l.b16 %v156
  %v1154 = vunpack.c.l.b16 %v157
  %v1155 = vunpack.c.l.b16 %v158
  %v1156 = vunpack.c.l.b16 %v159
  %v1157 = vunpack.c.l.b16 %v160
  %v1158 = vunpack.c.l.b16 %v161
  %v1159 = vunpack.c.l.b16 %v162
  %v1160 = vunpack.c.l.b16 %v163
  %v1161 = vunpack.c.l.b16 %v164
  %v1162 = vunpack.c.l.b16 %v165
  %v1163 = vunpack.c.l.b16 %v166
  %v1164 = vunpack.c.l.b16 %v167
  %v1165 = vunpack.c.l.b16 %v168
  %v1166 = vunpack.c.l.b16 %v169
  %v1167 = vunpack.c.l.b16 %v170
  %v1168 = vunpack.c.l.b16 %v171
  %v1169 = vunpack.c.l.b16 %v172
  %v1170 = vunpack.c.l.b16 %v173
  %v1171 = vunpack.c.l.b16 %v174
  %v1172 = vunpack.c.l.b16 %v175
  %v1173 = vunpack.c.l.b16 %v176
  %v1174 = vunpack.c.l.b16 %v177
  %v1175 = vunpack.c.l.b16 %v178
  %v1176 = vunpack.c.l.b16 %v179
  %v1177 = vunpack.c.l.b16 %v180
  %v1178 = vunpack.c.l.b16 %v181
  %v1179 = vunpack.c.l.b16 %v182
  %v1180 = vunpack.c.l.b16 %v183
  %v1181 = vunpack.c.l.b16 %v184
  %v1182 = vunpack.c.l.b16 %v185
  %v1183 = vunpack.c.l.b16 %v186
  %v1184 = vunpack.c.l.b16 %v187
  %v1185 = vunpack.c.l.b16 %v188
  %v1186 = vunpack.c.l.b16 %v189
  %v1187 = vunpack.c.l.b16 %v190
  %v1188 = vunpack.c.l.b16 %v191
  %v1189 = vunpack.c.l.b16 %v192
  %v1190 = vunpack.c.l.b16 %v193
  %v1191 = vunpack.c.l.b16 %v194
  %v1192 = vunpack.c.l.b16 %v195
  %v1193 = vunpack.c.l.b16 %v196
  %v1194 = vunpack.c.l.b16 %v197
  %v1195 = vunpack.c.l.b16 %v198
  %v1196 = vunpack.c.l.b16 %v199
  %v1197 = vunpack.c.l.b16 %v200
  %v1198 = vunpack.c.l.b16 %v201
  %v1199 = vunpack.c.l.b16 %v202
  %v1200 = vunpack.c.l.b16 %v203
  %v1201 = vunpack.c.l.b16 %v204
  %v1202 = vunpack.c.l.b16 %v205
  %v1203 = vunpack.c.l.b16 %v206
  %v1204 = vunpack.c.l.b16 %v207
  %v1205 = vunpack.c.l.b16 %v208
  %v1206 = vunpack.c.l.b16 %v209
  %v1207 = vunpack.c.l.b16 %v210
  %v1208 = vunpack.c.l.b16 %v211
  %v1209 = vunpack.c.l.b16 %v212
  %v1210 = vunpack.c.l.b16 %v213
  %v1211 = vunpack.c.l.b16 %v214
  %v1212 = vunpack.c.l.b16 %v215
  %v1213 = vunpack.c.l.b16 %v216
  %v1214 = vunpack.c.l.b16 %v217
  %v1215 = vunpack.c.l.b16 %v218
  %v1216 = vunpack.c.l.b16 %v219
  %v1217 = vunpack.c.l.b16 %v220
  %v1218 = vunpack.c.l.b16 %v221
  %v1219 = vunpack.c.l.b16 %v222
  %v1220 = vunpack.c.l.b16 %v223
  %v1221 = vunpack.c.l.b16 %v224
  %v1222 = vunpack.c.l.b16 %v225
  %v1223 = vunpack.c.l.b16 %v226
  %v1224 = vunpack.c.l.b16 %v227
  %v1225 = vunpack.c.l.b16 %v228
  %v1226 = vunpack.c.l.b16 %v229
  %v1227 = vunpack.c.l.b16 %v230
  %v1228 = vunpack.c.l.b16 %v231
  %v1229 = vunpack.c.l.b16 %v232
  %v1230 = vunpack.c.l.b16 %v233
  %v1231 = vunpack.c.l.b16 %v234
  %v1232 = vunpack.c.l.b16 %v235
  %v1233 = vunpack.c.l.b16 %v236
  %v1234 = vunpack.c.l.b16 %v237
  %v1235 = vunpack.c.l.b16 %v238
  %v1236 = vunpack.c.l.b16 %v239
  %v1237 = vunpack.c.l.b16 %v240
  %v1238 = vunpack.c.l.b16 %v241
  %v1239 = vunpack.c.l.b16 %v242
  %v1240 = vunpack.c.l.b16 %v243
  %v1241 = vunpack.c.l.b16 %v244
  %v1242 = vunpack.c.l.b16 %v245
  %v1243 = vunpack.c.l.b16 %v246
  %v1244 = vunpack.c.l.b16 %v247
  %v1245 = vunpack.c.l.b16 %v248
  %v1246 = vunpack.c.l.b16 %v249
  %v1247 = vunpack.c.l.b16 %v250
  %v1248 = vunpack.c.l.b16 %v251
  %v1249 = vunpack.c.l.b16 %v252
  %v1250 = vunpack.c.l.b16 %v253
  %v1251 = vunpack.c.l.b16 %v254
  %v1252 = vunpack.c.l.b16 %v255
  %v1253 = vunpack.c.l.b16 %v256
  %v1254 = vunpack.c.l.b16 %v257
  %v1255 = vunpack.c.l.b16 %v258
  %v1256 = vunpack.c.l.b16 %v259
  %v1257 = vunpack.c.l.b16 %v260
  %v1258 = vunpack.c.l.b16 %v261
  %v1259 = vunpack.c.l.b16 %v262
  %v1260 = vunpack.c.l.b16 %v263
  %v1261 = vunpack.c.l.b16 %v264
  %v1262 = vunpack.c.l.b16 %v265
  %v1263 = vunpack.c.l.b16 %v266
  %v1264 = vunpack.c.l.b16 %v267
  %v1265 = vunpack.c.l.b16 %v268
  %v1266 = vunpack.c.l.b16 %v269
  %v1267 = vunpack.c.l.b16 %v270
  %v1268 = vunpack.c.l.b16 %v271
  %v1269 = vunpack.c.l.b16 %v272
  %v1270 = vunpack.c.l.b16 %v273
  %v1271 = vunpack.c.l.b16 %v274
  %v1272 = vunpack.c.l.b16 %v275
  %v1273 = vunpack.c.l.b16 %v276
  %v1274 = vunpack.c.l.b16 %v277
  %v1275 = vunpack.c.l.b16 %v278
  %v1276 = vunpack.c.l.b16 %v279
  %v1277 = vunpack.c.l.b16 %v280
  %v1278 = vunpack.c.l.b16 %v281
  %v1279 = vunpack.c.l.b16 %v282
  %v1280 = vunpack.c.l.b16 %v283
  %v1281 = vunpack.c.l.b16 %v284
  %v1282 = vunpack.c.l.b16 %v285
  %v1283 = vunpack.c.l.b16 %v286
  %v1284 = vunpack.c.l.b16 %v287
  %v1285 = vunpack.c.l.b16 %v288
  %v1286 = vunpack.c.l.b16 %v289
  %v1287 = vunpack.c.l.b16 %v290
  %v1288 = vunpack.c.l.b16 %v291
  %v1289 = vunpack.c.l.b16 %v292
  %v1290 = vunpack.c.l.b16 %v293
  %v1291 = vunpack.c.l.b16 %v294
  %v1292 = vunpack.c.l.b16 %v295
  %v1293 = vunpack.c.l.b16 %v296
  %v1294 = vunpack.c.l.b16 %v297
  %v1295 = vunpack.c.l.b16 %v298
  %v1296 = vunpack.c.l.b16 %v299
  %v1297 = vunpack.c.l.b16 %v300
  %v1298 = vunpack.c.l.b16 %v301
  %v1299 = vunpack.c.l.b16 %v302
  %v1300 = vunpack.c.l.b16 %v303
  %v1301 = vunpack.c.l.b16 %v304
  %v1302 = vunpack.c.l.b16 %v305
  %v1303 = vunpack.c.l.b16 %v306
  %v1304 = vunpack.c.l.b16 %v307
  %v1305 = vunpack.c.l.b16 %v308
  %v1306 = vunpack.c.l.b16 %v309
  %v1307 = vunpack.c.l.b16 %v310
  %v1308 = vunpack.c.l.b16 %v311
  %v1309 = vunpack.c.l.b16 %v312
  %v1310 = vunpack.c.l.b16 %v313
  %v1311 = vunpack.c.l.b16 %v314
  %v1312 = vunpack.c.l.b16 %v315
  %v1313 = vunpack.c.l.b16 %v316
  %v1314 = vunpack.c.l.b16 %v317
  %v1315 = vunpack.c.l.b16 %v318
  %v1316 = vunpack.c.l.b16 %v319
  %v1317 = vunpack.c.l.b16 %v320
  %v1318 = vunpack.c.l.b16 %v321
  %v1319 = vunpack.c.l.b16 %v322
  %v1320 = vunpack.c.l.b16 %v323
  %v1321 = vunpack.c.l.b16 %v324
  %v1322 = vunpack.c.l.b16 %v325
  %v1323 = vunpack.c.l.b16 %v326
  %v1324 = vunpack.c.l.b16 %v327
  %v1325 = vunpack.c.l.b16 %v328
  %v1326 = vunpack.c.l.b16 %v329
  %v1327 = vunpack.c.l.b16 %v330
  %v1328 = vunpack.c.l.b16 %v331
  %v1329 = vunpack.c.l.b16 %v332
  %v1330 = vunpack.c.l.b16 %v333
  %v1331 = vunpack.c.l.b16 %v334
  %v1332 = vunpack.c.l.b16 %v335
  %v1333 = vunpack.c.l.b16 %v336
  %v1334 = vunpack.c.l.b16 %v337
  %v1335 = vunpack.c.l.b16 %v338
  %v1336 = vunpack.c.l.b16 %v339
  %v1337 = vunpack.c.l.b16 %v340
  %v1338 = vunpack.c.l.b16 %v341
  %v1339 = vunpack.c.l.b16 %v342
  %v1340 = vunpack.c.l.b16 %v343
  %v1341 = vunpack.c.l.b16 %v344
  %v1342 = vunpack.c.l.b16 %v345
  %v1343 = vunpack.c.l.b16 %v346
  %v1344 = vunpack.c.l.b16 %v347
  %v1345 = vunpack.c.l.b16 %v348
  %v1346 = vunpack.c.l.b16 %v349
  %v1347 = vunpack.c.l.b16 %v350
  %v1348 = vunpack.c.l.b16 %v351
  %v1349 = vunpack.c.l.b16 %v352
  %v1350 = vunpack.c.l.b16 %v353
  %v1351 = vunpack.c.l.b16 %v354
  %v1352 = vunpack.c.l.b16 %v355
  %v1353 = vunpack.c.l.b16 %v356
  %v1354 = vunpack.c.l.b16 %v357
  %v1355 = vunpack.c.l.b16 %v358
  %v1356 = vunpack.c.l.b16 %v359
  %v1357 = vunpack.c.l.b16 %v360
  %v1358 = vunpack.c.l.b16 %v361
  %v1359 = vunpack.c.l.b16 %v362
  %v1360 = vunpack.c.l.b16 %v363
  %v1361 = vunpack.c.l.b16 %v364
  %v1362 = vunpack.c.l.b16 %v365
  %v1363 = vunpack.c.l.b16 %v366
  %v1364 = vunpack.c.l.b16 %v367
  %v1365 = vunpack.c.l.b16 %v368
  %v1366 = vunpack.c.l.b16 %v369
  %v1367 = vunpack.c.l.b16 %v370
  %v1368 = vunpack.c.l.b16 %v371
  %v1369 = vunpack.c.l.b16 %v372
  %v1370 = vunpack.c.l.b16 %v373
  %v1371 = vunpack.c.l.b16 %v374
  %v1372 = vunpack.c.l.b16 %v375
  %v1373 = vunpack.c.l.b16 %v376
  %v1374 = vunpack.c.l.b16 %v377
  %v1375 = vunpack.c.l.b16 %v378
  %v1376 = vunpack.c.l.b16 %v379
  %v1377 = vunpack.c.l.b16 %v380
  %v1378 = vunpack.c.l.b16 %v381
  %v1379 = vunpack.c.l.b16 %v382
  %v1380 = vunpack.c.l.b16 %v383
  %v1381 = vunpack.c.l.b16 %v384
  %v1382 = vunpack.c.l.b16 %v385
  %v1383 = vunpack.c.l.b16 %v386
  %v1384 = vunpack.c.l.b16 %v387
  %v1385 = vunpack.c.l.b16 %v388
  %v1386 = vunpack.c.l.b16 %v389
  %v1387 = vunpack.c.l.b16 %v390
  %v1388 = vunpack.c.l.b16 %v391
  %v1389 = vunpack.c.l.b16 %v392
  %v1390 = vunpack.c.l.b16 %v393
  %v1391 = vunpack.c.l.b16 %v394
  %v1392 = vunpack.c.l.b16 %v395
  %v1393 = vunpack.c.l.b16 %v396
  %v1394 = vunpack.c.l.b16 %v397
  %v1395 = vunpack.c.l.b16 %v398
  %v1396 = vunpack.c.l.b16 %v399
  %v1397 = vunpack.c.l.b16 %v400
  %v1398 = vunpack.c.l.b16 %v401
  %v1399 = vunpack.c.l.b16 %v402
  %v1400 = vunpack.c.l.b16 %v403
  %v1401 = vunpack.c.l.b16 %v404
  %v1402 = vunpack.c.l.b16 %v405
  %v1403 = vunpack.c.l.b16 %v406
  %v1404 = vunpack.c.l.b16 %v407
  %v1405 = vunpack.c.l.b16 %v408
  %v1406 = vunpack.c.l.b16 %v409
  %v1407 = vunpack.c.l.b16 %v410
  %v1408 = vunpack.c.l.b16 %v411
  %v1409 = vunpack.c.l.b16 %v412
  %v1410 = vunpack.c.l.b16 %v413
  %v1411 = vunpack.c.l.b16 %v414
  %v1412 = vunpack.c.l.b16 %v415
  %v1413 = vunpack.c.l.b16 %v416
  %v1414 = vunpack.c.l.b16 %v417
  %v1415 = vunpack.c.l.b16 %v418
  %v1416 = vunpack.c.l.b16 %v419
  %v1417 = vunpack.c.l.b16 %v420
  %v1418 = vunpack.c.l.b16 %v421
  %v1419 = vunpack.c.l.b16 %v422
  %v1420 = vunpack.c.l.b16 %v423
  %v1421 = vunpack.c.l.b16 %v424
  %v1422 = vunpack.c.l.b16 %v425
  %v1423 = vunpack.c.l.b16 %v426
  %v1424 = vunpack.c.l.b16 %v427
  %v1425 = vunpack.c.l.b16 %v428
  %v1426 = vunpack.c.l.b16 %v429
  %v1427 = vunpack.c.l.b16 %v430
  %v1428 = vpack.c.b16 %v1029, %v1028
  %v1429 = vpack.c.b16 %v1031, %v1030
  %v1430 = vpack.c.b16 %v1033, %v1032
  %v1431 = vpack.c.b16 %v1035, %v1034
  %v1432 = vpack.c.b16 %v1037, %v1036
  %v1433 = vpack.c.b16 %v1039, %v1038
  %v1434 = vpack.c.b16 %v1041, %v1040
  %v1435 = vpack.c.b16 %v1043, %v1042
  %v1436 = vpack.c.b16 %v1045, %v1044
  %v1437 = vpack.c.b16 %v1047, %v1046
  %v1438 = vpack.c.b16 %v1049, %v1048
  %v1439 = vpack.c.b16 %v1051, %v1050
  %v1440 = vpack.c.b16 %v1053, %v1052
  %v1441 = vpack.c.b16 %v1055, %v1054
  %v1442 = vpack.c.b16 %v1057, %v1056
  %v1443 = vpack.c.b16 %v1059, %v1058
  %v1444 = vpack.c.b16 %v1061, %v1060
  %v1445 = vpack.c.b16 %v1063, %v1062
  %v1446 = vpack.c.b16 %v1065, %v1064
  %v1447 = vpack.c.b16 %v1067, %v1066
  %v1448 = vpack.c.b16 %v1069, %v1068
  %v1449 = vpack.c.b16 %v1071, %v1070
  %v1450 = vpack.c.b16 %v1073, %v1072
  %v1451 = vpack.c.b16 %v1075, %v1074
  %v1452 = vpack.c.b16 %v1077, %v1076
  %v1453 = vpack.c.b16 %v1079, %v1078
  %v1454 = vpack.c.b16 %v1081, %v1080
  %v1455 = vpack.c.b16 %v1083, %v1082
  %v1456 = vpack.c.b16 %v1085, %v1084
  %v1457 = vpack.c.b16 %v1087, %v1086
  %v1458 = vpack.c.b16 %v1089, %v1088
  %v1459 = vpack.c.b16 %v1091, %v1090
  %v1460 = vpack.c.b16 %v1093, %v1092
  %v1461 = vpack.c.b16 %v1095, %v1094
  %v1462 = vpack.c.b16 %v1097, %v1096
  %v1463 = vpack.c.b16 %v1099, %v1098
  %v1464 = vpack.c.b16 %v1101, %v1100
  %v1465 = vpack.c.b16 %v1103, %v1102
  %v1466 = vpack.c.b16 %v1105, %v1104
  %v1467 = vpack.c.b16 %v1107, %v1106
  %v1468 = vpack.c.b16 %v1109, %v1108
  %v1469 = vpack.c.b16 %v1111, %v1110
  %v1470 = vpack.c.b16 %v1113, %v1112
  %v1471 = vpack.c.b16 %v1115, %v1114
  %v1472 = vpack.c.b16 %v1117, %v1116
  %v1473 = vpack.c.b16 %v1119, %v1118
  %v1474 = vpack.c.b16 %v1121, %v1120
  %v1475 = vpack.c.b16 %v1123, %v1122
  %v1476 = vpack.c.b16 %v1125, %v1124
  %v1477 = vpack.c.b16 %v1127, %v1126
  %v1478 = vpack.c.b16 %v1129, %v1128
  %v1479 = vpack.c.b16 %v1131, %v1130
  %v1480 = vpack.c.b16 %v1133, %v1132
  %v1481 = vpack.c.b16 %v1135, %v1134
  %v1482 = vpack.c.b16 %v1137, %v1136
  %v1483 = vpack.c.b16 %v1139, %v1138
  %v1484 = vpack.c.b16 %v1141, %v1140
  %v1485 = vpack.c.b16 %v1143, %v1142
  %v1486 = vpack.c.b16 %v1145, %v1144
  %v1487 = vpack.c.b16 %v1147, %v1146
  %v1488 = vpack.c.b16 %v1149, %v1148
  %v1489 = vpack.c.b16 %v1151, %v1150
  %v1490 = vpack.c.b16 %v1153, %v1152
  %v1491 = vpack.c.b16 %v1155, %v1154
  %v1492 = vpack.c.b16 %v1157, %v1156
  %v1493 = vpack.c.b16 %v1159, %v1158
  %v1494 = vpack.c.b16 %v1161, %v1160
  %v1495 = vpack.c.b16 %v1163, %v1162
  %v1496 = vpack.c.b16 %v1165, %v1164
  %v1497 = vpack.c.b16 %v1167, %v1166
  %v1498 = vpack.c.b16 %v1169, %v1168
  %v1499 = vpack.c.b16 %v1171, %v1170
  %v1500 = vpack.c.b16 %v1173, %v1172
  %v1501 = vpack.c.b16 %v1175, %v1174
  %v1502 = vpack.c.b16 %v1177, %v1176
  %v1503 = vpack.c.b16 %v1179, %v1178
  %v1504 = vpack.c.b16 %v1181, %v1180
  %v1505 = vpack.c.b16 %v1183, %v1182
  %v1506 = vpack.c.b16 %v1185, %v1184
  %v1507 = vpack.c.b16 %v1187, %v1186
  %v1508 = vpack.c.b16 %v1189, %v1188
  %v1509 = vpack.c.b16 %v1191, %v1190
  %v1510 = vpack.c.b16 %v1193, %v1192
  %v1511 = vpack.c.b16 %v1195, %v1194
  %v1512 = vpack.c.b16 %v1197, %v1196
  %v1513 = vpack.c.b16 %v1199, %v1198
  %v1514 = vpack.c.b16 %v1201, %v1200
  %v1515 = vpack.c.b16 %v1203, %v1202
  %v1516 = vpack.c.b16 %v1205, %v1204
  %v1517 = vpack.c.b16 %v1207, %v1206
  %v1518 = vpack.c.b16 %v1209, %v1208
  %v1519 = vpack.c.b16 %v1211, %v1210
  %v1520 = vpack.c.b16 %v1213, %v1212
  %v1521 = vpack.c.b16 %v1215, %v1214
  %v1522 = vpack.c.b16 %v1217, %v1216
  %v1523 = vpack.c.b16 %v1219, %v1218
  %v1524 = vpack.c.b16 %v1221, %v1220
  %v1525 = vpack.c.b16 %v1223, %v1222
  %v1526 = vpack.c.b16 %v1225, %v1224
  %v1527 = vpack.c.b16 %v1227, %v1226
  %v1528 = vpack.c.b16 %v1229, %v1228
  %v1529 = vpack.c.b16 %v1231, %v1230
  %v1530 = vpack.c.b16 %v1233, %v1232
  %v1531 = vpack.c.b16 %v1235, %v1234
  %v1532 = vpack.c.b16 %v1237, %v1236
  %v1533 = vpack.c.b16 %v1239, %v1238
  %v1534 = vpack.c.b16 %v1241, %v1240
  %v1535 = vpack.c.b16 %v1243, %v1242
  %v1536 = vpack.c.b16 %v1245, %v1244
  %v1537 = vpack.c.b16 %v1247, %v1246
  %v1538 = vpack.c.b16 %v1249, %v1248
  %v1539 = vpack.c.b16 %v1251, %v1250
  %v1540 = vpack.c.b16 %v1253, %v1252
  %v1541 = vpack.c.b16 %v1255, %v1254
  %v1542 = vpack.c.b16 %v1257, %v1256
  %v1543 = vpack.c.b16 %v1259, %v1258
  %v1544 = vpack.c.b16 %v1261, %v1260
  %v1545 = vpack.c.b16 %v1263, %v1262
  %v1546 = vpack.c.b16 %v1265, %v1264
  %v1547 = vpack.c.b16 %v1267, %v1266
  %v1548 = vpack.c.b16 %v1269, %v1268
  %v1549 = vpack.c.b16 %v1271, %v1270
  %v1550 = vpack.c.b16 %v1273, %v1272
  %v1551 = vpack.c.b16 %v1275, %v1274
  %v1552 = vpack.c.b16 %v1277, %v1276
  %v1553 = vpack.c.b16 %v1279, %v1278
  %v1554 = vpack.c.b16 %v1281, %v1280
  %v1555 = vpack.c.b16 %v1283, %v1282
  %v1556 = vpack.c.b16 %v1285, %v1284
  %v1557 = vpack.c.b16 %v1287, %v1286
  %v1558 = vpack.c.b16 %v1289, %v1288
  %v1559 = vpack.c.b16 %v1291, %v1290
  %v1560 = vpack.c.b16 %v1293, %v1292
  %v1561 = vpack.c.b16 %v1295, %v1294
  %v1562 = vpack.c.b16 %v1297, %v1296
  %v1563 = vpack.c.b16 %v1299, %v1298
  %v1564 = vpack.c.b16 %v1301, %v1300
  %v1565 = vpack.c.b16 %v1303, %v1302
  %v1566 = vpack.c.b16 %v1305, %v1304
  %v1567 = vpack.c.b16 %v1307, %v1306
  %v1568 = vpack.c.b16 %v1309, %v1308
  %v1569 = vpack.c.b16 %v1311, %v1310
  %v1570 = vpack.c.b16 %v1313, %v1312
  %v1571 = vpack.c.b16 %v1315, %v1314
  %v1572 = vpack.c.b16 %v1317, %v1316
  %v1573 = vpack.c.b16 %v1319, %v1318
  %v1574 = vpack.c.b16 %v1321, %v1320
  %v1575 = vpack.c.b16 %v1323, %v1322
  %v1576 = vpack.c.b16 %v1325, %v1324
  %v1577 = vpack.c.b16 %v1327, %v1326
  %v1578 = vpack.c.b16 %v1329, %v1328
  %v1579 = vpack.c.b16 %v1331, %v1330
  %v1580 = vpack.c.b16 %v1333, %v1332
  %v1581 = vpack.c.b16 %v1335, %v1334
  %v1582 = vpack.c.b16 %v1337, %v1336
  %v1583 = vpack.c.b16 %v1339, %v1338
  %v1584 = vpack.c.b16 %v1341, %v1340
  %v1585 = vpack.c.b16 %v1343, %v1342
  %v1586 = vpack.c.b16 %v1345, %v1344
  %v1587 = vpack.c.b16 %v1347, %v1346
  %v1588 = vpack.c.b16 %v1349, %v1348
  %v1589 = vpack.c.b16 %v1351, %v1350
  %v1590 = vpack.c.b16 %v1353, %v1352
  %v1591 = vpack.c.b16 %v1355, %v1354
  %v1592 = vpack.c.b16 %v1357, %v1356
  %v1593 = vpack.c.b16 %v1359, %v1358
  %v1594 = vpack.c.b16 %v1361, %v1360
  %v1595 = vpack.c.b16 %v1363, %v1362
  %v1596 = vpack.c.b16 %v1365, %v1364
  %v1597 = vpack.c.b16 %v1367, %v1366
  %v1598 = vpack.c.b16 %v1369, %v1368
  %v1599 = vpack.c.b16 %v1371, %v1370
  %v1600 = vpack.c.b16 %v1373, %v1372
  %v1601 = vpack.c.b16 %v1375, %v1374
  %v1602 = vpack.c.b16 %v1377, %v1376
  %v1603 = vpack.c.b16 %v1379, %v1378
  %v1604 = vpack.c.b16 %v1381, %v1380
  %v1605 = vpack.c.b16 %v1383, %v1382
  %v1606 = vpack.c.b16 %v1385, %v1384
  %v1607 = vpack.c.b16 %v1387, %v1386
  %v1608 = vpack.c.b16 %v1389, %v1388
  %v1609 = vpack.c.b16 %v1391, %v1390
  %v1610 = vpack.c.b16 %v1393, %v1392
  %v1611 = vpack.c.b16 %v1395, %v1394
  %v1612 = vpack.c.b16 %v1397, %v1396
  %v1613 = vpack.c.b16 %v1399, %v1398
  %v1614 = vpack.c.b16 %v1401, %v1400
  %v1615 = vpack.c.b16 %v1403, %v1402
  %v1616 = vpack.c.b16 %v1405, %v1404
  %v1617 = vpack.c.b16 %v1407, %v1406
  %v1618 = vpack.c.b16 %v1409, %v1408
  %v1619 = vpack.c.b16 %v1411, %v1410
  %v1620 = vpack.c.b16 %v1413, %v1412
  %v1621 = vpack.c.b16 %v1415, %v1414
  %v1622 = vpack.c.b16 %v1417, %v1416
  %v1623 = vpack.c.b16 %v1419, %v1418
  %v1624 = vpack.c.b16 %v1421, %v1420
  %v1625 = vpack.c.b16 %v1423, %v1422
  %v1626 = vpack.c.b16 %v1425, %v1424
  %v1627 = vpack.c.b16 %v1427, %v1426
  %1828 = vmatprep.subr.bf16.mxu0 0
  %1829 = vmatpush1.bf16.msra.mxu0 %v1435
  %1830 = vmatprep.subr.bf16.mxu0 0
  %1831 = vmatpush1.bf16.msra.mxu0 %v1434
  %1832 = vmatprep.subr.bf16.mxu0 0
  %1833 = vmatpush1.bf16.msra.mxu0 %v1433
  %1834 = vmatprep.subr.bf16.mxu0 0
  %1835 = vmatpush1.bf16.msra.mxu0 %v1432
  %1836 = vmatprep.subr.bf16.mxu0 0
  %1837 = vmatpush1.bf16.msra.mxu0 %v1431
  %1838 = vmatprep.subr.bf16.mxu0 0
  %1839 = vmatpush1.bf16.msra.mxu0 %v1430
  %1840 = vmatprep.subr.bf16.mxu0 0
  %1841 = vmatpush1.bf16.msra.mxu0 %v1429
  %1842 = vmatprep.subr.bf16.mxu0 0
  %1843 = vmatpush1.bf16.msra.mxu0 %v1428
  %1844 = vmatprep.subr.bf16.mxu0 0
  %1845 = vmatpush2.bf16.msra.mxu0 %v1443
  %1846 = vmatprep.subr.bf16.mxu0 0
  %1847 = vmatpush2.bf16.msra.mxu0 %v1442
  %1848 = vmatprep.subr.bf16.mxu0 0
  %1849 = vmatpush2.bf16.msra.mxu0 %v1441
  %1850 = vmatprep.subr.bf16.mxu0 0
  %1851 = vmatpush2.bf16.msra.mxu0 %v1440
  %1852 = vmatprep.subr.bf16.mxu0 0
  %1853 = vmatpush2.bf16.msra.mxu0 %v1439
  %1854 = vmatprep.subr.bf16.mxu0 0
  %1855 = vmatpush2.bf16.msra.mxu0 %v1438
  %1856 = vmatprep.subr.bf16.mxu0 0
  %1857 = vmatpush2.bf16.msra.mxu0 %v1437
  %1858 = vmatprep.subr.bf16.mxu0 0
  %1859 = vmatpush2.bf16.msra.mxu0 %v1436
  %1860 = vmatprep.mubr.bf16.mxu0 %v479
  %1861 = vmatmul.mubr.bf16.gmra.mxu0 %v465
  %v1862 = vpop.f32.mrf.mxu0
  %v1863 = vadd.f32 %v436, %v1862
  %v1864 = vpop.f32.mrf.mxu0
  %v1865 = vpop.f32.mrf.mxu0
  %v1866 = vpop.f32.mrf.mxu0
  %1867 = vdwg.mxu0
  %1868 = vmatprep.subr.bf16.mxu0 0
  %1869 = vmatpush1.bf16.msra.mxu0 %v1451
  %1870 = vmatprep.subr.bf16.mxu0 0
  %1871 = vmatpush1.bf16.msra.mxu0 %v1450
  %1872 = vmatprep.subr.bf16.mxu0 0
  %1873 = vmatpush1.bf16.msra.mxu0 %v1449
  %1874 = vmatprep.subr.bf16.mxu0 0
  %1875 = vmatpush1.bf16.msra.mxu0 %v1448
  %1876 = vmatprep.subr.bf16.mxu0 0
  %1877 = vmatpush1.bf16.msra.mxu0 %v1447
  %1878 = vmatprep.subr.bf16.mxu0 0
  %1879 = vmatpush1.bf16.msra.mxu0 %v1446
  %1880 = vmatprep.subr.bf16.mxu0 0
  %1881 = vmatpush1.bf16.msra.mxu0 %v1445
  %1882 = vmatprep.subr.bf16.mxu0 0
  %1883 = vmatpush1.bf16.msra.mxu0 %v1444
  %1884 = vmatprep.subr.bf16.mxu0 0
  %1885 = vmatpush2.bf16.msra.mxu0 %v1459
  %1886 = vmatprep.subr.bf16.mxu0 0
  %1887 = vmatpush2.bf16.msra.mxu0 %v1458
  %1888 = vmatprep.subr.bf16.mxu0 0
  %1889 = vmatpush2.bf16.msra.mxu0 %v1457
  %1890 = vmatprep.subr.bf16.mxu0 0
  %1891 = vmatpush2.bf16.msra.mxu0 %v1456
  %1892 = vmatprep.subr.bf16.mxu0 0
  %1893 = vmatpush2.bf16.msra.mxu0 %v1455
  %1894 = vmatprep.subr.bf16.mxu0 0
  %1895 = vmatpush2.bf16.msra.mxu0 %v1454
  %1896 = vmatprep.subr.bf16.mxu0 0
  %1897 = vmatpush2.bf16.msra.mxu0 %v1453
  %1898 = vmatprep.subr.bf16.mxu0 0
  %1899 = vmatpush2.bf16.msra.mxu0 %v1452
  %1900 = vmatprep.mubr.bf16.mxu0 %v489
  %1901 = vmatmul.mubr.bf16.gmra.mxu0 %v487
  %v1902 = vpop.f32.mrf.mxu0
  %v1903 = vadd.f32 %v1863, %v1902
  %v1904 = vpop.f32.mrf.mxu0
  %v1905 = vpop.f32.mrf.mxu0
  %v1906 = vpop.f32.mrf.mxu0
  %1907 = vdwg.mxu0
  %1908 = vmatprep.subr.bf16.mxu0 0
  %1909 = vmatpush1.bf16.msra.mxu0 %v1467
  %1910 = vmatprep.subr.bf16.mxu0 0
  %1911 = vmatpush1.bf16.msra.mxu0 %v1466
  %1912 = vmatprep.subr.bf16.mxu0 0
  %1913 = vmatpush1.bf16.msra.mxu0 %v1465
  %1914 = vmatprep.subr.bf16.mxu0 0
  %1915 = vmatpush1.bf16.msra.mxu0 %v1464
  %1916 = vmatprep.subr.bf16.mxu0 0
  %1917 = vmatpush1.bf16.msra.mxu0 %v1463
  %1918 = vmatprep.subr.bf16.mxu0 0
  %1919 = vmatpush1.bf16.msra.mxu0 %v1462
  %1920 = vmatprep.subr.bf16.mxu0 0
  %1921 = vmatpush1.bf16.msra.mxu0 %v1461
  %1922 = vmatprep.subr.bf16.mxu0 0
  %1923 = vmatpush1.bf16.msra.mxu0 %v1460
  %1924 = vmatprep.subr.bf16.mxu0 0
  %1925 = vmatpush2.bf16.msra.mxu0 %v1475
  %1926 = vmatprep.subr.bf16.mxu0 0
  %1927 = vmatpush2.bf16.msra.mxu0 %v1474
  %1928 = vmatprep.subr.bf16.mxu0 0
  %1929 = vmatpush2.bf16.msra.mxu0 %v1473
  %1930 = vmatprep.subr.bf16.mxu0 0
  %1931 = vmatpush2.bf16.msra.mxu0 %v1472
  %1932 = vmatprep.subr.bf16.mxu0 0
  %1933 = vmatpush2.bf16.msra.mxu0 %v1471
  %1934 = vmatprep.subr.bf16.mxu0 0
  %1935 = vmatpush2.bf16.msra.mxu0 %v1470
  %1936 = vmatprep.subr.bf16.mxu0 0
  %1937 = vmatpush2.bf16.msra.mxu0 %v1469
  %1938 = vmatprep.subr.bf16.mxu0 0
  %1939 = vmatpush2.bf16.msra.mxu0 %v1468
  %1940 = vmatprep.mubr.bf16.mxu0 %v486
  %1941 = vmatmul.mubr.bf16.gmra.mxu0 %v472
  %v1942 = vpop.f32.mrf.mxu0
  %v1943 = vadd.f32 %v1903, %v1942
  %v1944 = vpop.f32.mrf.mxu0
  %v1945 = vpop.f32.mrf.mxu0
  %v1946 = vpop.f32.mrf.mxu0
  %1947 = vdwg.mxu0
  %1948 = vmatprep.subr.bf16.mxu0 0
  %1949 = vmatpush1.bf16.msra.mxu0 %v1483
  %1950 = vmatprep.subr.bf16.mxu0 0
  %1951 = vmatpush1.bf16.msra.mxu0 %v1482
  %1952 = vmatprep.subr.bf16.mxu0 0
  %1953 = vmatpush1.bf16.msra.mxu0 %v1481
  %1954 = vmatprep.subr.bf16.mxu0 0
  %1955 = vmatpush1.bf16.msra.mxu0 %v1480
  %1956 = vmatprep.subr.bf16.mxu0 0
  %1957 = vmatpush1.bf16.msra.mxu0 %v1479
  %1958 = vmatprep.subr.bf16.mxu0 0
  %1959 = vmatpush1.bf16.msra.mxu0 %v1478
  %1960 = vmatprep.subr.bf16.mxu0 0
  %1961 = vmatpush1.bf16.msra.mxu0 %v1477
  %1962 = vmatprep.subr.bf16.mxu0 0
  %1963 = vmatpush1.bf16.msra.mxu0 %v1476
  %1964 = vmatprep.subr.bf16.mxu0 0
  %1965 = vmatpush2.bf16.msra.mxu0 %v1491
  %1966 = vmatprep.subr.bf16.mxu0 0
  %1967 = vmatpush2.bf16.msra.mxu0 %v1490
  %1968 = vmatprep.subr.bf16.mxu0 0
  %1969 = vmatpush2.bf16.msra.mxu0 %v1489
  %1970 = vmatprep.subr.bf16.mxu0 0
  %1971 = vmatpush2.bf16.msra.mxu0 %v1488
  %1972 = vmatprep.subr.bf16.mxu0 0
  %1973 = vmatpush2.bf16.msra.mxu0 %v1487
  %1974 = vmatprep.subr.bf16.mxu0 0
  %1975 = vmatpush2.bf16.msra.mxu0 %v1486
  %1976 = vmatprep.subr.bf16.mxu0 0
  %1977 = vmatpush2.bf16.msra.mxu0 %v1485
  %1978 = vmatprep.subr.bf16.mxu0 0
  %1979 = vmatpush2.bf16.msra.mxu0 %v1484
  %1980 = vmatprep.mubr.bf16.mxu0 %v490
  %1981 = vmatmul.mubr.bf16.gmra.mxu0 %v488
  %v1982 = vpop.f32.mrf.mxu0
  %v1983 = vadd.f32 %v1943, %v1982
  %v1984 = vpop.f32.mrf.mxu0
  %v1985 = vpop.f32.mrf.mxu0
  %v1986 = vpop.f32.mrf.mxu0
  %1987 = vdwg.mxu0
  %1988 = vmatprep.subr.bf16.mxu0 0
  %1989 = vmatpush1.bf16.msra.mxu0 %v1499
  %1990 = vmatprep.subr.bf16.mxu0 0
  %1991 = vmatpush1.bf16.msra.mxu0 %v1498
  %1992 = vmatprep.subr.bf16.mxu0 0
  %1993 = vmatpush1.bf16.msra.mxu0 %v1497
  %1994 = vmatprep.subr.bf16.mxu0 0
  %1995 = vmatpush1.bf16.msra.mxu0 %v1496
  %1996 = vmatprep.subr.bf16.mxu0 0
  %1997 = vmatpush1.bf16.msra.mxu0 %v1495
  %1998 = vmatprep.subr.bf16.mxu0 0
  %1999 = vmatpush1.bf16.msra.mxu0 %v1494
  %2000 = vmatprep.subr.bf16.mxu0 0
  %2001 = vmatpush1.bf16.msra.mxu0 %v1493
  %2002 = vmatprep.subr.bf16.mxu0 0
  %2003 = vmatpush1.bf16.msra.mxu0 %v1492
  %2004 = vmatprep.subr.bf16.mxu0 0
  %2005 = vmatpush2.bf16.msra.mxu0 %v1507
  %2006 = vmatprep.subr.bf16.mxu0 0
  %2007 = vmatpush2.bf16.msra.mxu0 %v1506
  %2008 = vmatprep.subr.bf16.mxu0 0
  %2009 = vmatpush2.bf16.msra.mxu0 %v1505
  %2010 = vmatprep.subr.bf16.mxu0 0
  %2011 = vmatpush2.bf16.msra.mxu0 %v1504
  %2012 = vmatprep.subr.bf16.mxu0 0
  %2013 = vmatpush2.bf16.msra.mxu0 %v1503
  %2014 = vmatprep.subr.bf16.mxu0 0
  %2015 = vmatpush2.bf16.msra.mxu0 %v1502
  %2016 = vmatprep.subr.bf16.mxu0 0
  %2017 = vmatpush2.bf16.msra.mxu0 %v1501
  %2018 = vmatprep.subr.bf16.mxu0 0
  %2019 = vmatpush2.bf16.msra.mxu0 %v1500
  %2020 = vmatprep.mubr.bf16.mxu0 %v528
  %2021 = vmatmul.mubr.bf16.gmra.mxu0 %v514
  %v2022 = vpop.f32.mrf.mxu0
  %v2023 = vadd.f32 %v1983, %v2022
  %v2024 = vpop.f32.mrf.mxu0
  %v2025 = vpop.f32.mrf.mxu0
  %v2026 = vpop.f32.mrf.mxu0
  %2027 = vdwg.mxu0
  %2028 = vmatprep.subr.bf16.mxu0 0
  %2029 = vmatpush1.bf16.msra.mxu0 %v1515
  %2030 = vmatprep.subr.bf16.mxu0 0
  %2031 = vmatpush1.bf16.msra.mxu0 %v1514
  %2032 = vmatprep.subr.bf16.mxu0 0
  %2033 = vmatpush1.bf16.msra.mxu0 %v1513
  %2034 = vmatprep.subr.bf16.mxu0 0
  %2035 = vmatpush1.bf16.msra.mxu0 %v1512
  %2036 = vmatprep.subr.bf16.mxu0 0
  %2037 = vmatpush1.bf16.msra.mxu0 %v1511
  %2038 = vmatprep.subr.bf16.mxu0 0
  %2039 = vmatpush1.bf16.msra.mxu0 %v1510
  %2040 = vmatprep.subr.bf16.mxu0 0
  %2041 = vmatpush1.bf16.msra.mxu0 %v1509
  %2042 = vmatprep.subr.bf16.mxu0 0
  %2043 = vmatpush1.bf16.msra.mxu0 %v1508
  %2044 = vmatprep.subr.bf16.mxu0 0
  %2045 = vmatpush2.bf16.msra.mxu0 %v1523
  %2046 = vmatprep.subr.bf16.mxu0 0
  %2047 = vmatpush2.bf16.msra.mxu0 %v1522
  %2048 = vmatprep.subr.bf16.mxu0 0
  %2049 = vmatpush2.bf16.msra.mxu0 %v1521
  %2050 = vmatprep.subr.bf16.mxu0 0
  %2051 = vmatpush2.bf16.msra.mxu0 %v1520
  %2052 = vmatprep.subr.bf16.mxu0 0
  %2053 = vmatpush2.bf16.msra.mxu0 %v1519
  %2054 = vmatprep.subr.bf16.mxu0 0
  %2055 = vmatpush2.bf16.msra.mxu0 %v1518
  %2056 = vmatprep.subr.bf16.mxu0 0
  %2057 = vmatpush2.bf16.msra.mxu0 %v1517
  %2058 = vmatprep.subr.bf16.mxu0 0
  %2059 = vmatpush2.bf16.msra.mxu0 %v1516
  %2060 = vmatprep.mubr.bf16.mxu0 %v538
  %2061 = vmatmul.mubr.bf16.gmra.mxu0 %v536
  %v2062 = vpop.f32.mrf.mxu0
  %v2063 = vadd.f32 %v2023, %v2062
  %v2064 = vpop.f32.mrf.mxu0
  %v2065 = vpop.f32.mrf.mxu0
  %v2066 = vpop.f32.mrf.mxu0
  %2067 = vdwg.mxu0
  %2068 = vmatprep.subr.bf16.mxu0 0
  %2069 = vmatpush1.bf16.msra.mxu0 %v1531
  %2070 = vmatprep.subr.bf16.mxu0 0
  %2071 = vmatpush1.bf16.msra.mxu0 %v1530
  %2072 = vmatprep.subr.bf16.mxu0 0
  %2073 = vmatpush1.bf16.msra.mxu0 %v1529
  %2074 = vmatprep.subr.bf16.mxu0 0
  %2075 = vmatpush1.bf16.msra.mxu0 %v1528
  %2076 = vmatprep.subr.bf16.mxu0 0
  %2077 = vmatpush1.bf16.msra.mxu0 %v1527
  %2078 = vmatprep.subr.bf16.mxu0 0
  %2079 = vmatpush1.bf16.msra.mxu0 %v1526
  %2080 = vmatprep.subr.bf16.mxu0 0
  %2081 = vmatpush1.bf16.msra.mxu0 %v1525
  %2082 = vmatprep.subr.bf16.mxu0 0
  %2083 = vmatpush1.bf16.msra.mxu0 %v1524
  %2084 = vmatprep.subr.bf16.mxu0 0
  %2085 = vmatpush2.bf16.msra.mxu0 %v1539
  %2086 = vmatprep.subr.bf16.mxu0 0
  %2087 = vmatpush2.bf16.msra.mxu0 %v1538
  %2088 = vmatprep.subr.bf16.mxu0 0
  %2089 = vmatpush2.bf16.msra.mxu0 %v1537
  %2090 = vmatprep.subr.bf16.mxu0 0
  %2091 = vmatpush2.bf16.msra.mxu0 %v1536
  %2092 = vmatprep.subr.bf16.mxu0 0
  %2093 = vmatpush2.bf16.msra.mxu0 %v1535
  %2094 = vmatprep.subr.bf16.mxu0 0
  %2095 = vmatpush2.bf16.msra.mxu0 %v1534
  %2096 = vmatprep.subr.bf16.mxu0 0
  %2097 = vmatpush2.bf16.msra.mxu0 %v1533
  %2098 = vmatprep.subr.bf16.mxu0 0
  %2099 = vmatpush2.bf16.msra.mxu0 %v1532
  %2100 = vmatprep.mubr.bf16.mxu0 %v535
  %2101 = vmatmul.mubr.bf16.gmra.mxu0 %v521
  %v2102 = vpop.f32.mrf.mxu0
  %v2103 = vadd.f32 %v2063, %v2102
  %v2104 = vpop.f32.mrf.mxu0
  %v2105 = vpop.f32.mrf.mxu0
  %v2106 = vpop.f32.mrf.mxu0
  %2107 = vdwg.mxu0
  %2108 = vmatprep.subr.bf16.mxu0 0
  %2109 = vmatpush1.bf16.msra.mxu0 %v1547
  %2110 = vmatprep.subr.bf16.mxu0 0
  %2111 = vmatpush1.bf16.msra.mxu0 %v1546
  %2112 = vmatprep.subr.bf16.mxu0 0
  %2113 = vmatpush1.bf16.msra.mxu0 %v1545
  %2114 = vmatprep.subr.bf16.mxu0 0
  %2115 = vmatpush1.bf16.msra.mxu0 %v1544
  %2116 = vmatprep.subr.bf16.mxu0 0
  %2117 = vmatpush1.bf16.msra.mxu0 %v1543
  %2118 = vmatprep.subr.bf16.mxu0 0
  %2119 = vmatpush1.bf16.msra.mxu0 %v1542
  %2120 = vmatprep.subr.bf16.mxu0 0
  %2121 = vmatpush1.bf16.msra.mxu0 %v1541
  %2122 = vmatprep.subr.bf16.mxu0 0
  %2123 = vmatpush1.bf16.msra.mxu0 %v1540
  %2124 = vmatprep.subr.bf16.mxu0 0
  %2125 = vmatpush2.bf16.msra.mxu0 %v1555
  %2126 = vmatprep.subr.bf16.mxu0 0
  %2127 = vmatpush2.bf16.msra.mxu0 %v1554
  %2128 = vmatprep.subr.bf16.mxu0 0
  %2129 = vmatpush2.bf16.msra.mxu0 %v1553
  %2130 = vmatprep.subr.bf16.mxu0 0
  %2131 = vmatpush2.bf16.msra.mxu0 %v1552
  %2132 = vmatprep.subr.bf16.mxu0 0
  %2133 = vmatpush2.bf16.msra.mxu0 %v1551
  %2134 = vmatprep.subr.bf16.mxu0 0
  %2135 = vmatpush2.bf16.msra.mxu0 %v1550
  %2136 = vmatprep.subr.bf16.mxu0 0
  %2137 = vmatpush2.bf16.msra.mxu0 %v1549
  %2138 = vmatprep.subr.bf16.mxu0 0
  %2139 = vmatpush2.bf16.msra.mxu0 %v1548
  %2140 = vmatprep.mubr.bf16.mxu0 %v539
  %2141 = vmatmul.mubr.bf16.gmra.mxu0 %v537
  %v2142 = vpop.f32.mrf.mxu0
  %v2143 = vadd.f32 %v2103, %v2142
  %v2144 = vpop.f32.mrf.mxu0
  %v2145 = vpop.f32.mrf.mxu0
  %v2146 = vpop.f32.mrf.mxu0
  %2147 = vdwg.mxu0
  %2148 = vmatprep.subr.bf16.mxu0 0
  %2149 = vmatpush1.bf16.msra.mxu0 %v1563
  %2150 = vmatprep.subr.bf16.mxu0 0
  %2151 = vmatpush1.bf16.msra.mxu0 %v1562
  %2152 = vmatprep.subr.bf16.mxu0 0
  %2153 = vmatpush1.bf16.msra.mxu0 %v1561
  %2154 = vmatprep.subr.bf16.mxu0 0
  %2155 = vmatpush1.bf16.msra.mxu0 %v1560
  %2156 = vmatprep.subr.bf16.mxu0 0
  %2157 = vmatpush1.bf16.msra.mxu0 %v1559
  %2158 = vmatprep.subr.bf16.mxu0 0
  %2159 = vmatpush1.bf16.msra.mxu0 %v1558
  %2160 = vmatprep.subr.bf16.mxu0 0
  %2161 = vmatpush1.bf16.msra.mxu0 %v1557
  %2162 = vmatprep.subr.bf16.mxu0 0
  %2163 = vmatpush1.bf16.msra.mxu0 %v1556
  %2164 = vmatprep.subr.bf16.mxu0 0
  %2165 = vmatpush2.bf16.msra.mxu0 %v1571
  %2166 = vmatprep.subr.bf16.mxu0 0
  %2167 = vmatpush2.bf16.msra.mxu0 %v1570
  %2168 = vmatprep.subr.bf16.mxu0 0
  %2169 = vmatpush2.bf16.msra.mxu0 %v1569
  %2170 = vmatprep.subr.bf16.mxu0 0
  %2171 = vmatpush2.bf16.msra.mxu0 %v1568
  %2172 = vmatprep.subr.bf16.mxu0 0
  %2173 = vmatpush2.bf16.msra.mxu0 %v1567
  %2174 = vmatprep.subr.bf16.mxu0 0
  %2175 = vmatpush2.bf16.msra.mxu0 %v1566
  %2176 = vmatprep.subr.bf16.mxu0 0
  %2177 = vmatpush2.bf16.msra.mxu0 %v1565
  %2178 = vmatprep.subr.bf16.mxu0 0
  %2179 = vmatpush2.bf16.msra.mxu0 %v1564
  %2180 = vmatprep.mubr.bf16.mxu0 %v577
  %2181 = vmatmul.mubr.bf16.gmra.mxu0 %v563
  %v2182 = vpop.f32.mrf.mxu0
  %v2183 = vadd.f32 %v2143, %v2182
  %v2184 = vpop.f32.mrf.mxu0
  %v2185 = vpop.f32.mrf.mxu0
  %v2186 = vpop.f32.mrf.mxu0
  %2187 = vdwg.mxu0
  %2188 = vmatprep.subr.bf16.mxu0 0
  %2189 = vmatpush1.bf16.msra.mxu0 %v1579
  %2190 = vmatprep.subr.bf16.mxu0 0
  %2191 = vmatpush1.bf16.msra.mxu0 %v1578
  %2192 = vmatprep.subr.bf16.mxu0 0
  %2193 = vmatpush1.bf16.msra.mxu0 %v1577
  %2194 = vmatprep.subr.bf16.mxu0 0
  %2195 = vmatpush1.bf16.msra.mxu0 %v1576
  %2196 = vmatprep.subr.bf16.mxu0 0
  %2197 = vmatpush1.bf16.msra.mxu0 %v1575
  %2198 = vmatprep.subr.bf16.mxu0 0
  %2199 = vmatpush1.bf16.msra.mxu0 %v1574
  %2200 = vmatprep.subr.bf16.mxu0 0
  %2201 = vmatpush1.bf16.msra.mxu0 %v1573
  %2202 = vmatprep.subr.bf16.mxu0 0
  %2203 = vmatpush1.bf16.msra.mxu0 %v1572
  %2204 = vmatprep.subr.bf16.mxu0 0
  %2205 = vmatpush2.bf16.msra.mxu0 %v1587
  %2206 = vmatprep.subr.bf16.mxu0 0
  %2207 = vmatpush2.bf16.msra.mxu0 %v1586
  %2208 = vmatprep.subr.bf16.mxu0 0
  %2209 = vmatpush2.bf16.msra.mxu0 %v1585
  %2210 = vmatprep.subr.bf16.mxu0 0
  %2211 = vmatpush2.bf16.msra.mxu0 %v1584
  %2212 = vmatprep.subr.bf16.mxu0 0
  %2213 = vmatpush2.bf16.msra.mxu0 %v1583
  %2214 = vmatprep.subr.bf16.mxu0 0
  %2215 = vmatpush2.bf16.msra.mxu0 %v1582
  %2216 = vmatprep.subr.bf16.mxu0 0
  %2217 = vmatpush2.bf16.msra.mxu0 %v1581
  %2218 = vmatprep.subr.bf16.mxu0 0
  %2219 = vmatpush2.bf16.msra.mxu0 %v1580
  %2220 = vmatprep.mubr.bf16.mxu0 %v587
  %2221 = vmatmul.mubr.bf16.gmra.mxu0 %v585
  %v2222 = vpop.f32.mrf.mxu0
  %v2223 = vadd.f32 %v2183, %v2222
  %v2224 = vpop.f32.mrf.mxu0
  %v2225 = vpop.f32.mrf.mxu0
  %v2226 = vpop.f32.mrf.mxu0
  %2227 = vdwg.mxu0
  %2228 = vmatprep.subr.bf16.mxu0 0
  %2229 = vmatpush1.bf16.msra.mxu0 %v1595
  %2230 = vmatprep.subr.bf16.mxu0 0
  %2231 = vmatpush1.bf16.msra.mxu0 %v1594
  %2232 = vmatprep.subr.bf16.mxu0 0
  %2233 = vmatpush1.bf16.msra.mxu0 %v1593
  %2234 = vmatprep.subr.bf16.mxu0 0
  %2235 = vmatpush1.bf16.msra.mxu0 %v1592
  %2236 = vmatprep.subr.bf16.mxu0 0
  %2237 = vmatpush1.bf16.msra.mxu0 %v1591
  %2238 = vmatprep.subr.bf16.mxu0 0
  %2239 = vmatpush1.bf16.msra.mxu0 %v1590
  %2240 = vmatprep.subr.bf16.mxu0 0
  %2241 = vmatpush1.bf16.msra.mxu0 %v1589
  %2242 = vmatprep.subr.bf16.mxu0 0
  %2243 = vmatpush1.bf16.msra.mxu0 %v1588
  %2244 = vmatprep.subr.bf16.mxu0 0
  %2245 = vmatpush2.bf16.msra.mxu0 %v1603
  %2246 = vmatprep.subr.bf16.mxu0 0
  %2247 = vmatpush2.bf16.msra.mxu0 %v1602
  %2248 = vmatprep.subr.bf16.mxu0 0
  %2249 = vmatpush2.bf16.msra.mxu0 %v1601
  %2250 = vmatprep.subr.bf16.mxu0 0
  %2251 = vmatpush2.bf16.msra.mxu0 %v1600
  %2252 = vmatprep.subr.bf16.mxu0 0
  %2253 = vmatpush2.bf16.msra.mxu0 %v1599
  %2254 = vmatprep.subr.bf16.mxu0 0
  %2255 = vmatpush2.bf16.msra.mxu0 %v1598
  %2256 = vmatprep.subr.bf16.mxu0 0
  %2257 = vmatpush2.bf16.msra.mxu0 %v1597
  %2258 = vmatprep.subr.bf16.mxu0 0
  %2259 = vmatpush2.bf16.msra.mxu0 %v1596
  %2260 = vmatprep.mubr.bf16.mxu0 %v584
  %2261 = vmatmul.mubr.bf16.gmra.mxu0 %v570
  %v2262 = vpop.f32.mrf.mxu0
  %v2263 = vadd.f32 %v2223, %v2262
  %v2264 = vpop.f32.mrf.mxu0
  %v2265 = vpop.f32.mrf.mxu0
  %v2266 = vpop.f32.mrf.mxu0
  %2267 = vdwg.mxu0
  %2268 = vmatprep.subr.bf16.mxu0 0
  %2269 = vmatpush1.bf16.msra.mxu0 %v1611
  %2270 = vmatprep.subr.bf16.mxu0 0
  %2271 = vmatpush1.bf16.msra.mxu0 %v1610
  %2272 = vmatprep.subr.bf16.mxu0 0
  %2273 = vmatpush1.bf16.msra.mxu0 %v1609
  %2274 = vmatprep.subr.bf16.mxu0 0
  %2275 = vmatpush1.bf16.msra.mxu0 %v1608
  %2276 = vmatprep.subr.bf16.mxu0 0
  %2277 = vmatpush1.bf16.msra.mxu0 %v1607
  %2278 = vmatprep.subr.bf16.mxu0 0
  %2279 = vmatpush1.bf16.msra.mxu0 %v1606
  %2280 = vmatprep.subr.bf16.mxu0 0
  %2281 = vmatpush1.bf16.msra.mxu0 %v1605
  %2282 = vmatprep.subr.bf16.mxu0 0
  %2283 = vmatpush1.bf16.msra.mxu0 %v1604
  %2284 = vmatprep.subr.bf16.mxu0 0
  %2285 = vmatpush2.bf16.msra.mxu0 %v1619
  %2286 = vmatprep.subr.bf16.mxu0 0
  %2287 = vmatpush2.bf16.msra.mxu0 %v1618
  %2288 = vmatprep.subr.bf16.mxu0 0
  %2289 = vmatpush2.bf16.msra.mxu0 %v1617
  %2290 = vmatprep.subr.bf16.mxu0 0
  %2291 = vmatpush2.bf16.msra.mxu0 %v1616
  %2292 = vmatprep.subr.bf16.mxu0 0
  %2293 = vmatpush2.bf16.msra.mxu0 %v1615
  %2294 = vmatprep.subr.bf16.mxu0 0
  %2295 = vmatpush2.bf16.msra.mxu0 %v1614
  %2296 = vmatprep.subr.bf16.mxu0 0
  %2297 = vmatpush2.bf16.msra.mxu0 %v1613
  %2298 = vmatprep.subr.bf16.mxu0 0
  %2299 = vmatpush2.bf16.msra.mxu0 %v1612
  %2300 = vmatprep.mubr.bf16.mxu0 %v588
  %2301 = vmatmul.mubr.bf16.gmra.mxu0 %v586
  %v2302 = vpop.f32.mrf.mxu0
  %v2303 = vadd.f32 %v2263, %v2302
  %v2304 = vpop.f32.mrf.mxu0
  %v2305 = vpop.f32.mrf.mxu0
  %v2306 = vpop.f32.mrf.mxu0
  %2307 = vdwg.mxu0
  %2308 = vmatprep.subr.bf16.mxu0 0
  %2309 = vmatpush1.bf16.msra.mxu0 %v1627
  %2310 = vmatprep.subr.bf16.mxu0 0
  %2311 = vmatpush1.bf16.msra.mxu0 %v1626
  %2312 = vmatprep.subr.bf16.mxu0 0
  %2313 = vmatpush1.bf16.msra.mxu0 %v1625
  %2314 = vmatprep.subr.bf16.mxu0 0
  %2315 = vmatpush1.bf16.msra.mxu0 %v1624
  %2316 = vmatprep.subr.bf16.mxu0 0
  %2317 = vmatpush1.bf16.msra.mxu0 %v1623
  %2318 = vmatprep.subr.bf16.mxu0 0
  %2319 = vmatpush1.bf16.msra.mxu0 %v1622
  %2320 = vmatprep.subr.bf16.mxu0 0
  %2321 = vmatpush1.bf16.msra.mxu0 %v1621
  %2322 = vmatprep.subr.bf16.mxu0 0
  %2323 = vmatpush1.bf16.msra.mxu0 %v1620
  %2324 = vmatprep.subr.bf16.mxu0 0
  %2325 = vmatpush2.bf16.msra.mxu0 0
  %2326 = vmatprep.subr.bf16.mxu0 0
  %2327 = vmatpush2.bf16.msra.mxu0 0
  %2328 = vmatprep.subr.bf16.mxu0 0
  %2329 = vmatpush2.bf16.msra.mxu0 0
  %2330 = vmatprep.subr.bf16.mxu0 0
  %2331 = vmatpush2.bf16.msra.mxu0 0
  %2332 = vmatprep.subr.bf16.mxu0 0
  %2333 = vmatpush2.bf16.msra.mxu0 0
  %2334 = vmatprep.subr.bf16.mxu0 0
  %2335 = vmatpush2.bf16.msra.mxu0 0
  %2336 = vmatprep.subr.bf16.mxu0 0
  %2337 = vmatpush2.bf16.msra.mxu0 0
  %2338 = vmatprep.subr.bf16.mxu0 0
  %2339 = vmatpush2.bf16.msra.mxu0 0
  %2340 = vmatprep.mubr.bf16.mxu0 0
  %2341 = vmatmul.mubr.bf16.gmra.mxu0 %v602
  %v2342 = vpop.f32.mrf.mxu0
  %v2343 = vadd.f32 %v2303, %v2342
  %v2344 = vpop.f32.mrf.mxu0
  %v2345 = vpop.f32.mrf.mxu0
  %v2346 = vpop.f32.mrf.mxu0
  %2347 = vdwg.mxu0
  %v2348 = vmax.f32 %v2343, 0.0
  %v2349 = vpack.c.bf16 %v2348, %v2348
  %v2350 = vld [vmem:[%s3] sm:$0xf]
  %v2351 = vld [vmem:[%s3 + $0x4] sm:$0xf]
  %v2352 = vld [vmem:[%s3 + $0x8] sm:$0xf]
  %v2353 = vld [vmem:[%s3 + $0xc] sm:$0xf]
  %v2354 = vld [vmem:[%s3 + $0x10] sm:$0xf]
  %v2355 = vld [vmem:[%s3 + $0x14] sm:$0xf]
  %v2356 = vld [vmem:[%s3 + $0x18] sm:$0xf]
  %v2357 = vld [vmem:[%s3 + $0x1c] sm:$0xf]
  %v2358 = vld [vmem:[%s3 + $0x20] sm:$0xf]
  %v2359 = vld [vmem:[%s3 + $0x24] sm:$0xf]
  %v2360 = vld [vmem:[%s3 + $0x28] sm:$0xf]
  %v2361 = vld [vmem:[%s3 + $0x2c] sm:$0xf]
  %v2362 = vld [vmem:[%s3 + $0x30] sm:$0xf]
  %v2363 = vld [vmem:[%s3 + $0x34] sm:$0xf]
  %v2364 = vld [vmem:[%s3 + $0x38] sm:$0xf]
  %v2365 = vld [vmem:[%s3 + $0x3c] sm:$0xf]
  %v2366 = vld [vmem:[%s4] sm:$0x1]
  %v2368 = vlaneseq
  %v2369 = vshrl.u32 %v2368, 7
  %v2370 = vsub.s32 0, %v2369
  %v2371 = vrot.slane %v2366, %v2370
  %v2389 = vunpack.c.l.b16 %v2350
  %v2390 = vunpack.c.l.b16 %v2351
  %v2391 = vunpack.c.l.b16 %v2352
  %v2392 = vunpack.c.l.b16 %v2353
  %v2393 = vunpack.c.l.b16 %v2354
  %v2394 = vunpack.c.l.b16 %v2355
  %v2395 = vunpack.c.l.b16 %v2356
  %v2396 = vunpack.c.l.b16 %v2357
  %v2397 = vunpack.c.l.b16 %v2358
  %v2398 = vunpack.c.l.b16 %v2359
  %v2399 = vunpack.c.l.b16 %v2360
  %v2400 = vunpack.c.l.b16 %v2361
  %v2401 = vunpack.c.l.b16 %v2362
  %v2402 = vunpack.c.l.b16 %v2363
  %v2403 = vunpack.c.l.b16 %v2364
  %v2404 = vunpack.c.l.b16 %v2365
  %v2405 = vpack.c.b16 %v2390, %v2389
  %v2406 = vpack.c.b16 %v2392, %v2391
  %v2407 = vpack.c.b16 %v2394, %v2393
  %v2408 = vpack.c.b16 %v2396, %v2395
  %v2409 = vpack.c.b16 %v2398, %v2397
  %v2410 = vpack.c.b16 %v2400, %v2399
  %v2411 = vpack.c.b16 %v2402, %v2401
  %v2412 = vpack.c.b16 %v2404, %v2403
  %2421 = vmatprep.subr.bf16.mxu0 0
  %2422 = vmatpush1.bf16.msra.mxu0 %v2412
  %2423 = vmatprep.subr.bf16.mxu0 0
  %2424 = vmatpush1.bf16.msra.mxu0 %v2411
  %2425 = vmatprep.subr.bf16.mxu0 0
  %2426 = vmatpush1.bf16.msra.mxu0 %v2410
  %2427 = vmatprep.subr.bf16.mxu0 0
  %2428 = vmatpush1.bf16.msra.mxu0 %v2409
  %2429 = vmatprep.subr.bf16.mxu0 0
  %2430 = vmatpush1.bf16.msra.mxu0 %v2408
  %2431 = vmatprep.subr.bf16.mxu0 0
  %2432 = vmatpush1.bf16.msra.mxu0 %v2407
  %2433 = vmatprep.subr.bf16.mxu0 0
  %2434 = vmatpush1.bf16.msra.mxu0 %v2406
  %2435 = vmatprep.subr.bf16.mxu0 0
  %2436 = vmatpush1.bf16.msra.mxu0 %v2405
  %2437 = vmatprep.subr.bf16.mxu0 0
  %2438 = vmatpush2.bf16.msra.mxu0 0
  %2439 = vmatprep.subr.bf16.mxu0 0
  %2440 = vmatpush2.bf16.msra.mxu0 0
  %2441 = vmatprep.subr.bf16.mxu0 0
  %2442 = vmatpush2.bf16.msra.mxu0 0
  %2443 = vmatprep.subr.bf16.mxu0 0
  %2444 = vmatpush2.bf16.msra.mxu0 0
  %2445 = vmatprep.subr.bf16.mxu0 0
  %2446 = vmatpush2.bf16.msra.mxu0 0
  %2447 = vmatprep.subr.bf16.mxu0 0
  %2448 = vmatpush2.bf16.msra.mxu0 0
  %2449 = vmatprep.subr.bf16.mxu0 0
  %2450 = vmatpush2.bf16.msra.mxu0 0
  %2451 = vmatprep.subr.bf16.mxu0 0
  %2452 = vmatpush2.bf16.msra.mxu0 0
  %2453 = vmatprep.mubr.bf16.mxu0 0
  %2454 = vmatmul.mubr.bf16.gmra.mxu0 %v2349
  %v2455 = vpop.f32.mrf.mxu0
  %v2456 = vadd.f32 %v2371, %v2455
  %v2457 = vpop.f32.mrf.mxu0
  %v2458 = vpop.f32.mrf.mxu0
  %v2459 = vpop.f32.mrf.mxu0
  %2460 = vdwg.mxu0
  %v2461 = vmax.f32 %v2456, 0.0
  %v2462 = vpack.c.bf16 %v2461, %v2461
  %v2463 = vld [vmem:[%s5] sm:$0xf]
  %v2464 = vld [vmem:[%s5 + $0x4] sm:$0xf]
  %v2465 = vld [vmem:[%s5 + $0x8] sm:$0xf]
  %v2466 = vld [vmem:[%s5 + $0xc] sm:$0xf]
  %v2467 = vld [vmem:[%s5 + $0x10] sm:$0xf]
  %v2468 = vld [vmem:[%s5 + $0x14] sm:$0xf]
  %v2469 = vld [vmem:[%s5 + $0x18] sm:$0xf]
  %v2470 = vld [vmem:[%s5 + $0x1c] sm:$0xf]
  %v2471 = vld [vmem:[%s5 + $0x20] sm:$0xf]
  %v2472 = vld [vmem:[%s5 + $0x24] sm:$0xf]
  %v2473 = vld [vmem:[%s5 + $0x28] sm:$0xf]
  %v2474 = vld [vmem:[%s5 + $0x2c] sm:$0xf]
  %v2475 = vld [vmem:[%s5 + $0x30] sm:$0xf]
  %v2476 = vld [vmem:[%s5 + $0x34] sm:$0xf]
  %v2477 = vld [vmem:[%s5 + $0x38] sm:$0xf]
  %v2478 = vld [vmem:[%s5 + $0x3c] sm:$0xf]
  %v2479 = vld [vmem:[%s6] sm:$0x1]
  %v2481 = vlaneseq
  %v2482 = vshrl.u32 %v2481, 7
  %v2483 = vsub.s32 0, %v2482
  %v2484 = vrot.slane %v2479, %v2483
  %v2502 = vunpack.c.l.b16 %v2463
  %v2503 = vunpack.c.l.b16 %v2464
  %v2504 = vunpack.c.l.b16 %v2465
  %v2505 = vunpack.c.l.b16 %v2466
  %v2506 = vunpack.c.l.b16 %v2467
  %v2507 = vunpack.c.l.b16 %v2468
  %v2508 = vunpack.c.l.b16 %v2469
  %v2509 = vunpack.c.l.b16 %v2470
  %v2510 = vunpack.c.l.b16 %v2471
  %v2511 = vunpack.c.l.b16 %v2472
  %v2512 = vunpack.c.l.b16 %v2473
  %v2513 = vunpack.c.l.b16 %v2474
  %v2514 = vunpack.c.l.b16 %v2475
  %v2515 = vunpack.c.l.b16 %v2476
  %v2516 = vunpack.c.l.b16 %v2477
  %v2517 = vunpack.c.l.b16 %v2478
  %v2518 = vpack.c.b16 %v2503, %v2502
  %v2519 = vpack.c.b16 %v2505, %v2504
  %v2520 = vpack.c.b16 %v2507, %v2506
  %v2521 = vpack.c.b16 %v2509, %v2508
  %v2522 = vpack.c.b16 %v2511, %v2510
  %v2523 = vpack.c.b16 %v2513, %v2512
  %v2524 = vpack.c.b16 %v2515, %v2514
  %v2525 = vpack.c.b16 %v2517, %v2516
  %2534 = vmatprep.subr.bf16.mxu0 0
  %2535 = vmatpush1.bf16.msra.mxu0 %v2525
  %2536 = vmatprep.subr.bf16.mxu0 0
  %2537 = vmatpush1.bf16.msra.mxu0 %v2524
  %2538 = vmatprep.subr.bf16.mxu0 0
  %2539 = vmatpush1.bf16.msra.mxu0 %v2523
  %2540 = vmatprep.subr.bf16.mxu0 0
  %2541 = vmatpush1.bf16.msra.mxu0 %v2522
  %2542 = vmatprep.subr.bf16.mxu0 0
  %2543 = vmatpush1.bf16.msra.mxu0 %v2521
  %2544 = vmatprep.subr.bf16.mxu0 0
  %2545 = vmatpush1.bf16.msra.mxu0 %v2520
  %2546 = vmatprep.subr.bf16.mxu0 0
  %2547 = vmatpush1.bf16.msra.mxu0 %v2519
  %2548 = vmatprep.subr.bf16.mxu0 0
  %2549 = vmatpush1.bf16.msra.mxu0 %v2518
  %2550 = vmatprep.subr.bf16.mxu0 0
  %2551 = vmatpush2.bf16.msra.mxu0 0
  %2552 = vmatprep.subr.bf16.mxu0 0
  %2553 = vmatpush2.bf16.msra.mxu0 0
  %2554 = vmatprep.subr.bf16.mxu0 0
  %2555 = vmatpush2.bf16.msra.mxu0 0
  %2556 = vmatprep.subr.bf16.mxu0 0
  %2557 = vmatpush2.bf16.msra.mxu0 0
  %2558 = vmatprep.subr.bf16.mxu0 0
  %2559 = vmatpush2.bf16.msra.mxu0 0
  %2560 = vmatprep.subr.bf16.mxu0 0
  %2561 = vmatpush2.bf16.msra.mxu0 0
  %2562 = vmatprep.subr.bf16.mxu0 0
  %2563 = vmatpush2.bf16.msra.mxu0 0
  %2564 = vmatprep.subr.bf16.mxu0 0
  %2565 = vmatpush2.bf16.msra.mxu0 0
  %2566 = vmatprep.mubr.bf16.mxu0 0
  %2567 = vmatmul.mubr.bf16.gmra.mxu0 %v2462
  %v2568 = vpop.f32.mrf.mxu0
  %v2569 = vadd.f32 %v2484, %v2568
  %v2570 = vpop.f32.mrf.mxu0
  %v2571 = vpop.f32.mrf.mxu0
  %v2572 = vpop.f32.mrf.mxu0
  %2573 = vdwg.mxu0
  %v2574 = vsub.f32 0.0, %v2569
  %v2575 = vmul.f32 %v2574, 1.442695
  %v2576 = vpow.pop %v2575
  %v2577 = vadd.f32 %v2576, 1.0
  %v2578 = vrcp.pop %v2577
  %v2579 = vmul.f32 1.0, %v2578
  %2580 = vst [vmem:[%s7] sm:$0x3] %v2579
  // Predicated region
  $region30: #{net_forward.5} parent=0 // pred_check
    _
  $region31: #{net_forward.5} parent=0 // pred_check_branch
    %2582 = sbr.rel (0) target = $region33
  $region32: #{net_forward.5} parent=0 // pred_region
    _
  $region33: #{net_forward.5} parent=0 // pred_fallthru
    _
  // Predicated region
  $region34: #{net_forward.5} parent=0 // pred_check
    _
  $region35: #{net_forward.5} parent=0 // pred_check_branch
    %2584 = sbr.rel (0) target = $region37
  $region36: #{net_forward.5} parent=0 // pred_region
    _
  $region37: #{net_forward.5} parent=0 // pred_fallthru
    _

</llo_original>
